<compile_context>
chip_gen: v7x
topology: tpu7x:2x2x1
jax: 0.10.0
libtpu: 0.0.40
codegen_flags: <defaults>
</compile_context>

<pallas_src>
import math
from functools import partial

import jax
import jax.numpy as jnp
from jax.experimental import pallas as pl
from jax.experimental.pallas import tpu as pltpu

# MXU operand dtype and inter-kernel activation dtype. Accumulation / elementwise math
# (LayerNorm, softmax, bias, residual) is always f32 (v5e has no bf16 VPU/EUP).
COMPUTE_DTYPE = jnp.bfloat16


def _pick_tile(dim, candidates):
    """Largest candidate that evenly divides dim, else the full dim (always legal)."""
    for c in candidates:
        if dim % c == 0:
            return c
    return dim


def _round_up(x, m):
    return ((x + m - 1) // m) * m


# ----------------------------------------------------------------------------
# Kernel 1: tiled matmul + bias (+ optional ReLU, + optional fused residual add)
# ----------------------------------------------------------------------------
def _matmul_kernel(*refs, activation, has_residual):
    if has_residual:
        x_ref, w_ref, b_ref, r_ref, o_ref, acc_ref = refs
    else:
        x_ref, w_ref, b_ref, o_ref, acc_ref = refs
        r_ref = None
    k = pl.program_id(2)

    @pl.when(k == 0)
    def _():
        acc_ref[...] = jnp.zeros_like(acc_ref)

    acc_ref[...] += jnp.dot(
        x_ref[...].astype(COMPUTE_DTYPE),
        w_ref[...].astype(COMPUTE_DTYPE),
        preferred_element_type=jnp.float32)

    @pl.when(k == pl.num_programs(2) - 1)
    def _():
        y = acc_ref[...] + b_ref[...].astype(jnp.float32)
        if activation == "relu":
            y = jnp.maximum(y, 0.0)
        if has_residual:
            y = y + r_ref[...].astype(jnp.float32)
        o_ref[...] = y.astype(o_ref.dtype)


def matmul_bias(x, w, b, residual=None, activation=None, out_dtype=COMPUTE_DTYPE):
    """(M, K) @ (K, N) + b [+ ReLU] [+ residual]; bf16 MXU operands, f32 accumulator.

    Rows are padded to a multiple of 8 (and sliced back) so output stores stay
    sublane-dense instead of falling back to a ragged full-M block.
    """
    M, K = x.shape
    K2, N = w.shape
    assert K == K2
    Mp = _round_up(M, 8)
    if Mp != M:
        x = jnp.pad(x, ((0, Mp - M), (0, 0)))
        if residual is not None:
            residual = jnp.pad(residual, ((0, Mp - M), (0, 0)))
    tm = _pick_tile(Mp, (256, 128, 64, 32, 16, 8))
    tn = _pick_tile(N, (512, 256, 128))
    tk = _pick_tile(K, (512, 256, 128))

    in_specs = [
        pl.BlockSpec((tm, tk), lambda i, j, k: (i, k)),
        pl.BlockSpec((tk, tn), lambda i, j, k: (k, j)),
        pl.BlockSpec((1, tn), lambda i, j, k: (0, j)),
    ]
    args = [x, w, b.reshape(1, N)]
    if residual is not None:
        in_specs.append(pl.BlockSpec((tm, tn), lambda i, j, k: (i, j)))
        args.append(residual)

    bytes_accessed = (Mp * K * x.dtype.itemsize + K * N * w.dtype.itemsize
                      + N * 4 + Mp * N * jnp.dtype(out_dtype).itemsize)
    if residual is not None:
        bytes_accessed += Mp * N * residual.dtype.itemsize

    out = pl.pallas_call(
        partial(_matmul_kernel, activation=activation,
                has_residual=residual is not None),
        out_shape=jax.ShapeDtypeStruct((Mp, N), out_dtype),
        grid=(Mp // tm, N // tn, K // tk),
        in_specs=in_specs,
        out_specs=pl.BlockSpec((tm, tn), lambda i, j, k: (i, j)),
        scratch_shapes=[pltpu.VMEM((tm, tn), jnp.float32)],
        compiler_params=pltpu.CompilerParams(
            dimension_semantics=("parallel", "parallel", "arbitrary")),
        cost_estimate=pl.CostEstimate(flops=2 * Mp * N * K, transcendentals=0,
                                      bytes_accessed=bytes_accessed),
    )(*args)
    return out[:M] if Mp != M else out


# ----------------------------------------------------------------------------
# Kernel 2: fused pre-norm LayerNorm + matmul + bias (QKV projection)
#           Full-width output tile: LN and the x DMA are done once per row tile.
# ----------------------------------------------------------------------------
def _ln_matmul_kernel(x_ref, g_ref, bt_ref, w_ref, b_ref, o_ref, *, eps):
    x = x_ref[...].astype(jnp.float32)
    mean = jnp.mean(x, axis=-1, keepdims=True)
    c = x - mean
    var = jnp.mean(c * c, axis=-1, keepdims=True)
    xn = c * jax.lax.rsqrt(var + eps) * g_ref[...] + bt_ref[...]
    y = jnp.dot(xn.astype(COMPUTE_DTYPE), w_ref[...].astype(COMPUTE_DTYPE),
                preferred_element_type=jnp.float32) + b_ref[...]
    o_ref[...] = y.astype(o_ref.dtype)


def ln_matmul_bias(x, gamma, beta, w, b, eps=1e-5):
    M, D = x.shape
    D2, N = w.shape
    assert D == D2 and M % 8 == 0
    tm = _pick_tile(M, (256, 128, 64, 32, 16, 8))
    # TODO(synk): on v7x (64 MiB VMEM) mark the grid-invariant w/b blocks
    # pipeline_mode=pl.Buffered(1) to halve their VMEM residency.
    return pl.pallas_call(
        partial(_ln_matmul_kernel, eps=eps),
        out_shape=jax.ShapeDtypeStruct((M, N), COMPUTE_DTYPE),
        grid=(M // tm,),
        in_specs=[
            pl.BlockSpec((tm, D), lambda i: (i, 0)),
            pl.BlockSpec((1, D), lambda i: (0, 0)),
            pl.BlockSpec((1, D), lambda i: (0, 0)),
            pl.BlockSpec((D, N), lambda i: (0, 0)),
            pl.BlockSpec((1, N), lambda i: (0, 0)),
        ],
        out_specs=pl.BlockSpec((tm, N), lambda i: (i, 0)),
        compiler_params=pltpu.CompilerParams(dimension_semantics=("parallel",)),
        cost_estimate=pl.CostEstimate(
            flops=2 * M * N * D + 8 * M * D, transcendentals=M,
            bytes_accessed=(M * D * x.dtype.itemsize + D * N * w.dtype.itemsize
                            + (N + 2 * D) * 4 + M * N * 2)),
    )(x, gamma.reshape(1, D), beta.reshape(1, D), w, b.reshape(1, N))


# ----------------------------------------------------------------------------
# Kernel 3: fused pre-norm LayerNorm + FFN (relu(x@w1+b1)@w2 + b2 + residual),
#           hidden dim processed in <=512-wide chunks to bound the live intermediate.
# ----------------------------------------------------------------------------
def _ln_ffn_kernel(x_ref, g_ref, bt_ref, w1_ref, b1_ref, w2_ref, b2_ref, o_ref,
                   *, eps, h_chunk):
    x = x_ref[...].astype(jnp.float32)              # (tm, D); also the residual
    mean = jnp.mean(x, axis=-1, keepdims=True)
    c = x - mean
    var = jnp.mean(c * c, axis=-1, keepdims=True)
    xn = (c * jax.lax.rsqrt(var + eps) * g_ref[...] + bt_ref[...]).astype(COMPUTE_DTYPE)
    Hd = w1_ref.shape[1]
    y = x + b2_ref[...]                              # residual + final bias, f32
    for c0 in range(0, Hd, h_chunk):                 # static, few iterations
        h = jnp.dot(xn, w1_ref[:, c0:c0 + h_chunk].astype(COMPUTE_DTYPE),
                    preferred_element_type=jnp.float32) + b1_ref[:, c0:c0 + h_chunk]
        h = jnp.maximum(h, 0.0).astype(COMPUTE_DTYPE)
        y = y + jnp.dot(h, w2_ref[c0:c0 + h_chunk, :].astype(COMPUTE_DTYPE),
                        preferred_element_type=jnp.float32)
    o_ref[...] = y.astype(o_ref.dtype)


def ln_ffn(x, gamma, beta, w1, b1, w2, b2, eps=1e-5):
    M, D = x.shape
    D2, Hd = w1.shape
    assert D == D2 and w2.shape == (Hd, D) and M % 8 == 0
    tm = _pick_tile(M, (128, 64, 32, 16, 8))
    h_chunk = _pick_tile(Hd, (512, 256, 128))
    # TODO(synk): on v7x single-buffer (pl.Buffered(1)) the grid-invariant w1/w2 blocks.
    return pl.pallas_call(
        partial(_ln_ffn_kernel, eps=eps, h_chunk=h_chunk),
        out_shape=jax.ShapeDtypeStruct((M, D), COMPUTE_DTYPE),
        grid=(M // tm,),
        in_specs=[
            pl.BlockSpec((tm, D), lambda i: (i, 0)),
            pl.BlockSpec((1, D), lambda i: (0, 0)),
            pl.BlockSpec((1, D), lambda i: (0, 0)),
            pl.BlockSpec((D, Hd), lambda i: (0, 0)),
            pl.BlockSpec((1, Hd), lambda i: (0, 0)),
            pl.BlockSpec((Hd, D), lambda i: (0, 0)),
            pl.BlockSpec((1, D), lambda i: (0, 0)),
        ],
        out_specs=pl.BlockSpec((tm, D), lambda i: (i, 0)),
        compiler_params=pltpu.CompilerParams(dimension_semantics=("parallel",)),
        cost_estimate=pl.CostEstimate(
            flops=4 * M * D * Hd + 8 * M * D, transcendentals=M,
            bytes_accessed=(M * D * (x.dtype.itemsize + 2)
                            + 2 * D * Hd * w1.dtype.itemsize + (Hd + 3 * D) * 4)),
    )(x, gamma.reshape(1, D), beta.reshape(1, D), w1, b1.reshape(1, Hd),
      w2, b2.reshape(1, D))


# ----------------------------------------------------------------------------
# Kernel 4: standalone row-tiled LayerNorm (after_norm), f32 output
# ----------------------------------------------------------------------------
def _layernorm_kernel(x_ref, g_ref, b_ref, o_ref, *, eps):
    x = x_ref[...].astype(jnp.float32)
    mean = jnp.mean(x, axis=-1, keepdims=True)
    c = x - mean
    var = jnp.mean(c * c, axis=-1, keepdims=True)
    o_ref[...] = c * jax.lax.rsqrt(var + eps) * g_ref[...] + b_ref[...]


def layernorm(x, gamma, beta, eps=1e-5):
    M, D = x.shape
    assert M % 8 == 0
    tm = _pick_tile(M, (512, 256, 128, 64, 32, 16, 8))
    return pl.pallas_call(
        partial(_layernorm_kernel, eps=eps),
        out_shape=jax.ShapeDtypeStruct((M, D), jnp.float32),
        grid=(M // tm,),
        in_specs=[
            pl.BlockSpec((tm, D), lambda i: (i, 0)),
            pl.BlockSpec((1, D), lambda i: (0, 0)),
            pl.BlockSpec((1, D), lambda i: (0, 0)),
        ],
        out_specs=pl.BlockSpec((tm, D), lambda i: (i, 0)),
        compiler_params=pltpu.CompilerParams(dimension_semantics=("parallel",)),
    )(x, gamma.reshape(1, D), beta.reshape(1, D))


# ----------------------------------------------------------------------------
# Kernel 5: masked-softmax self-attention, one batch per grid step.
#           Per-head q/k/v are read as ref slices (no full (T,3D) materialization)
#           and each head's context is stored directly into its o_ref lane slice.
# ----------------------------------------------------------------------------
def _attn_kernel(qkv_ref, bias_ref, o_ref, *, scale, heads):
    D3 = qkv_ref.shape[2]
    D = D3 // 3
    dk = D // heads
    bias = bias_ref[0].astype(jnp.float32)               # (1, T) additive: 0 / -1e9
    for h in range(heads):                                # heads is small & static
        q = qkv_ref[0, :, h * dk:(h + 1) * dk].astype(COMPUTE_DTYPE)
        k = qkv_ref[0, :, D + h * dk:D + (h + 1) * dk].astype(COMPUTE_DTYPE)
        v = qkv_ref[0, :, 2 * D + h * dk:2 * D + (h + 1) * dk].astype(COMPUTE_DTYPE)
        # q @ k^T without an explicit transpose: contract both on d_k.
        s = jax.lax.dot_general(q, k, (((1,), (1,)), ((), ())),
                                preferred_element_type=jnp.float32)
        s = s * scale + bias                              # masked keys -> ~-1e9 (finite)
        mx = jnp.max(s, axis=-1, keepdims=True)
        e = jnp.exp(s - mx)                               # masked keys underflow to 0
        denom = jnp.sum(e, axis=-1, keepdims=True)
        p = (e * (1.0 / denom)).astype(COMPUTE_DTYPE)     # exact normalization
        out = jnp.dot(p, v, preferred_element_type=jnp.float32)
        o_ref[0, :, h * dk:(h + 1) * dk] = out.astype(o_ref.dtype)


def attention(qkv, att_bias, scale, heads):
    """qkv: (B, T, 3D) bf16 from the fused QKV projection; att_bias: (B, 1, T) additive."""
    B, T, D3 = qkv.shape
    D = D3 // 3
    assert D % heads == 0
    # TODO(synk): for long sequences (T in the thousands, esp. v7x 64 MiB VMEM) switch to
    # an online-softmax (flash) form with (B, T/tq, T/tk) grid + running max/denominator.
    return pl.pallas_call(
        partial(_attn_kernel, scale=scale, heads=heads),
        out_shape=jax.ShapeDtypeStruct((B, T, D), COMPUTE_DTYPE),
        grid=(B,),
        in_specs=[
            pl.BlockSpec((1, T, D3), lambda b: (b, 0, 0)),
            pl.BlockSpec((1, 1, T), lambda b: (b, 0, 0)),
        ],
        out_specs=pl.BlockSpec((1, T, D), lambda b: (b, 0, 0)),
        compiler_params=pltpu.CompilerParams(dimension_semantics=("parallel",)),
        cost_estimate=pl.CostEstimate(
            flops=4 * B * T * T * D,
            transcendentals=B * heads * T * T,
            bytes_accessed=B * T * (D3 + D) * 2 + B * T * 4),
    )(qkv, att_bias)


# ----------------------------------------------------------------------------
# Plain-JAX glue (NHWC im2col, positional encoding, parameter setup)
# ----------------------------------------------------------------------------
def im2col_nhwc(x, kh, kw, stride):
    """x: (B, H, W, C) NHWC -> patches (B, Ho, Wo, kh*kw*C), (kh, kw, C) flatten order."""
    B, H, W, C = x.shape
    Ho = (H - kh) // stride + 1
    Wo = (W - kw) // stride + 1
    cols = []
    for i in range(kh):
        for j in range(kw):
            cols.append(x[:, i:i + stride * (Ho - 1) + 1:stride,
                             j:j + stride * (Wo - 1) + 1:stride, :])
    p = jnp.stack(cols, axis=3)                              # (B, Ho, Wo, kh*kw, C)
    return p.reshape(B, Ho, Wo, kh * kw * C), Ho, Wo
    # TODO(synk): fold im2col into the conv matmul via an (Ho,Wo)-patch index_map to
    # avoid materializing the patch tensor in HBM.


def sinusoid_pe(T, D):
    pos = jnp.arange(T, dtype=jnp.float32)[:, None]
    div = jnp.exp(jnp.arange(0, D, 2, dtype=jnp.float32) * (-math.log(10000.0) / D))
    pe = jnp.zeros((T, D), jnp.float32)
    pe = pe.at[:, 0::2].set(jnp.sin(pos * div))
    pe = pe.at[:, 1::2].set(jnp.cos(pos * div))
    return pe


def _normal(key, shape, scale=0.02):
    return scale * jax.random.normal(key, shape, dtype=jnp.float32)


def _w(key, shape):  # matmul weights stored in bf16 (halves HBM/VMEM weight traffic)
    return _normal(key, shape).astype(COMPUTE_DTYPE)


def init_params(key, input_size, d_model, heads, linear_units, num_blocks):
    # NOTE: conv/proj weights are stored directly in NHWC im2col / matmul layout
    # ((kh,kw,Cin)->Cout for the convs, (F2,D) row order for the projection); loading a
    # real PyTorch checkpoint requires the corresponding permutations.
    f1 = (input_size - 3) // 2 + 1
    f2 = (f1 - 3) // 2 + 1
    keys = iter(jax.random.split(key, 8 + num_blocks * 12))
    nk = lambda: next(keys)

    params = {
        "conv1_w": _w(nk(), (3 * 3 * 1, d_model)),
        "conv1_b": _normal(nk(), (d_model,)),
        "conv2_w": _w(nk(), (3 * 3 * d_model, d_model)),
        "conv2_b": _normal(nk(), (d_model,)),
        "proj_w": _w(nk(), (f2 * d_model, d_model)),
        "proj_b": _normal(nk(), (d_model,)),
        "an_g": jnp.ones((d_model,), jnp.float32),
        "an_b": jnp.zeros((d_model,), jnp.float32),
        "layers": [],
    }
    for _ in range(num_blocks):
        # Q|K|V projections fused into one (D, 3D) weight / (3D,) bias.
        wq, wk, wv = (_normal(nk(), (d_model, d_model)) for _ in range(3))
        bq, bk, bv = (_normal(nk(), (d_model,)) for _ in range(3))
        lp = {
            "ln1_g": jnp.ones((d_model,), jnp.float32),
            "ln1_b": jnp.zeros((d_model,), jnp.float32),
            "ln2_g": jnp.ones((d_model,), jnp.float32),
            "ln2_b": jnp.zeros((d_model,), jnp.float32),
            "wqkv": jnp.concatenate([wq, wk, wv], axis=1).astype(COMPUTE_DTYPE),
            "bqkv": jnp.concatenate([bq, bk, bv], axis=0),
            "wo": _w(nk(), (d_model, d_model)), "bo": _normal(nk(), (d_model,)),
            "w1": _w(nk(), (d_model, linear_units)), "b1": _normal(nk(), (linear_units,)),
            "w2": _w(nk(), (linear_units, d_model)), "b2": _normal(nk(), (d_model,)),
        }
        params["layers"].append(lp)
    return params
    # TODO(synk): on v7x the large weights (wqkv, w1, w2) could be fp8 with per-channel
    # scales folded into the bias epilogue (not portable to v5e/v6e MXUs).


def base_encoder_forward(params, xs, xs_lens, *, d_model, heads):
    """Equivalent of BaseEncoder.forward(xs, xs_lens) in eval mode (dropout = identity)."""
    B, T, F = xs.shape
    D = d_model
    H = heads
    dk = D // H

    # masks = ~make_pad_mask(xs_lens, T).unsqueeze(1)  -> (B, 1, T), True = valid
    masks = (jnp.arange(T)[None, :] < xs_lens[:, None])[:, None, :]

    # ---- embed: Conv2dSubsampling4, NHWC end-to-end (no NCHW transposes) ----
    x0 = xs.astype(COMPUTE_DTYPE)[:, :, :, None]             # (B, T, F, 1) NHWC
    p1, T1, F1 = im2col_nhwc(x0, 3, 3, 2)                     # (B, T1, F1, 9)
    y1 = matmul_bias(p1.reshape(B * T1 * F1, -1), params["conv1_w"], params["conv1_b"],
                     activation="relu").reshape(B, T1, F1, D)
    p2, T2, F2 = im2col_nhwc(y1, 3, 3, 2)                     # (B, T2, F2, 9D)
    y2 = matmul_bias(p2.reshape(B * T2 * F2, -1), params["conv2_w"], params["conv2_b"],
                     activation="relu").reshape(B, T2, F2, D)
    # proj consumes the NHWC (F2, D) flatten order directly (weight rows laid out for it)
    h = matmul_bias(y2.reshape(B * T2, F2 * D), params["proj_w"], params["proj_b"])
    h = h.reshape(B, T2, D)

    # abs_pos positional encoding: x * sqrt(D) + pe   (dropout = identity in eval)
    pe = sinusoid_pe(T2, D)
    h = (h.astype(jnp.float32) * math.sqrt(D) + pe[None]).astype(COMPUTE_DTYPE)

    # subsampled mask: x_mask[:, :, 2::2][:, :, 2::2]  (chunk_masks == masks here)
    masks = masks[:, :, 2::2][:, :, 2::2]                     # (B, 1, T2)

    # Pad T2 up to a multiple of 8: padded keys are masked off, padded query rows are
    # computed but dropped at the end, so every per-layer kernel sees aligned rows.
    T2p = _round_up(T2, 8)
    if T2p != T2:
        h = jnp.pad(h, ((0, 0), (0, T2p - T2), (0, 0)))
    mpad = jnp.pad(masks, ((0, 0), (0, 0), (0, T2p - T2)))
    att_bias = jnp.where(mpad, 0.0, -1e9).astype(jnp.float32)  # additive key-mask bias

    scale = 1.0 / math.sqrt(dk)
    x2d = h.reshape(B * T2p, D)                               # bf16 residual stream

    for lp in params["layers"]:
        # self-attention sub-block (pre-norm): LN1 fused into the QKV projection
        qkv = ln_matmul_bias(x2d, lp["ln1_g"], lp["ln1_b"], lp["wqkv"], lp["bqkv"])
        ctx = attention(qkv.reshape(B, T2p, 3 * D), att_bias, scale, H)
        x2d = matmul_bias(ctx.reshape(B * T2p, D), lp["wo"], lp["bo"], residual=x2d)
        # feed-forward sub-block (pre-norm): LN2 + w1 + ReLU + w2 + residual fused
        x2d = ln_ffn(x2d, lp["ln2_g"], lp["ln2_b"], lp["w1"], lp["b1"], lp["w2"], lp["b2"])

    # after_norm (normalize_before=True), f32 output; drop the padded rows.
    out = layernorm(x2d, params["an_g"], params["an_b"]).reshape(B, T2p, D)[:, :T2]
    return out, masks


# ----------------------------------------------------------------------------
if __name__ == "__main__":
    key = jax.random.PRNGKey(0)
    k_in, k_len, k_par = jax.random.split(key, 3)

    # small shapes consistent with the module: (B, T, input_size), output_size=32,
    # attention_heads=4, linear_units=64, num_blocks=2
    B, T, INPUT_SIZE = 2, 32, 16
    D_MODEL, HEADS, LINEAR_UNITS, NUM_BLOCKS = 32, 4, 64, 2

    xs = jax.random.normal(k_in, (B, T, INPUT_SIZE), dtype=jnp.float32)
    xs_lens = jnp.array([32, 20], dtype=jnp.int32)

    params = init_params(k_par, INPUT_SIZE, D_MODEL, HEADS, LINEAR_UNITS, NUM_BLOCKS)

    fwd = jax.jit(partial(base_encoder_forward, d_model=D_MODEL, heads=HEADS))
    out, masks = fwd(params, xs, xs_lens)
    jax.block_until_ready(out)
    jax.block_until_ready(masks)

    # sanity: T' = ((T-3)//2+1 - 3)//2 + 1 = 7 for T=32
    assert out.shape == (B, 7, D_MODEL), out.shape
    assert masks.shape == (B, 1, 7), masks.shape
    assert bool(jnp.all(jnp.isfinite(out)))
    print("KERNEL_OK")
</pallas_src>

<mosaic_0001>
module attributes {stable_mosaic.version = 11 : i64} {
  func.func @_matmul_kernel(%arg0: i32, %arg1: i32, %arg2: i32, %arg3: memref<8x9xbf16, #tpu.memory_space<vmem>>, %arg4: memref<9x32xbf16, #tpu.memory_space<vmem>>, %arg5: memref<1x32xf32, #tpu.memory_space<vmem>>, %arg6: memref<8x32xbf16, #tpu.memory_space<vmem>>, %arg7: memref<8x32xf32, #tpu.memory_space<vmem>>) attributes {dimension_semantics = [#tpu.dimension_semantics<parallel>, #tpu.dimension_semantics<parallel>, #tpu.dimension_semantics<arbitrary>], iteration_bounds = array<i64: 27, 1, 1>, scalar_prefetch = 0 : i64, scratch_operands = 1 : i64, tpu.core_type = #tpu.core_type<tc>, window_params = [{transform_indices = @transform_0, window_bounds = array<i64: 8, 9>}, {transform_indices = @transform_1, window_bounds = array<i64: 9, 32>}, {transform_indices = @transform_2, window_bounds = array<i64: 1, 32>}, {transform_indices = @transform_3, window_bounds = array<i64: 8, 32>}]} {
    %c0_i32 = arith.constant 0 : i32
    %0 = arith.cmpi eq, %arg2, %c0_i32 : i32
    %1 = arith.extui %0 : i1 to i32
    %c0_i32_0 = arith.constant 0 : i32
    %2 = arith.cmpi ne, %1, %c0_i32_0 : i32
    scf.if %2 {
      %cst_10 = arith.constant 0.000000e+00 : f32
      %12 = vector.broadcast %cst_10 : f32 to vector<8x32xf32>
      %c0_11 = arith.constant 0 : index
      %c0_12 = arith.constant 0 : index
      %13 = vector.load %arg7[%c0_11, %c0_12] : memref<8x32xf32, #tpu.memory_space<vmem>>, vector<8x32xf32>
      tpu.vector_store %arg7[%c0_11, %c0_12], %12 {strides = array<i32>} : memref<8x32xf32, #tpu.memory_space<vmem>>, vector<8x32xf32>,
    } else {
    }
    %c0 = arith.constant 0 : index
    %c0_1 = arith.constant 0 : index
    %3 = vector.load %arg7[%c0, %c0_1] : memref<8x32xf32, #tpu.memory_space<vmem>>, vector<8x32xf32>
    %c0_2 = arith.constant 0 : index
    %c0_3 = arith.constant 0 : index
    %4 = vector.load %arg3[%c0_2, %c0_3] : memref<8x9xbf16, #tpu.memory_space<vmem>>, vector<8x9xbf16>
    %c0_4 = arith.constant 0 : index
    %c0_5 = arith.constant 0 : index
    %5 = vector.load %arg4[%c0_4, %c0_5] : memref<9x32xbf16, #tpu.memory_space<vmem>>, vector<9x32xbf16>
    %cst = arith.constant dense<0.000000e+00> : vector<8x32xf32>
    %6 = tpu.matmul %4, %5, %cst {dimension_numbers = #tpu.dot_dimension_numbers<[1], [0], [0], [1], [0, 0, 1, 1], [], []>} : vector<8x9xbf16>, vector<9x32xbf16>, vector<8x32xf32> -> vector<8x32xf32>
    %7 = arith.addf %3, %6 : vector<8x32xf32>
    %c0_6 = arith.constant 0 : index
    %c0_7 = arith.constant 0 : index
    %8 = vector.load %arg7[%c0_6, %c0_7] : memref<8x32xf32, #tpu.memory_space<vmem>>, vector<8x32xf32>
    tpu.vector_store %arg7[%c0_6, %c0_7], %7 {strides = array<i32>} : memref<8x32xf32, #tpu.memory_space<vmem>>, vector<8x32xf32>,
    %c0_i32_8 = arith.constant 0 : i32
    %9 = arith.cmpi eq, %arg2, %c0_i32_8 : i32
    %10 = arith.extui %9 : i1 to i32
    %c0_i32_9 = arith.constant 0 : i32
    %11 = arith.cmpi ne, %10, %c0_i32_9 : i32
    scf.if %11 {
      %c0_10 = arith.constant 0 : index
      %c0_11 = arith.constant 0 : index
      %12 = vector.load %arg7[%c0_10, %c0_11] : memref<8x32xf32, #tpu.memory_space<vmem>>, vector<8x32xf32>
      %c0_12 = arith.constant 0 : index
      %c0_13 = arith.constant 0 : index
      %13 = vector.load %arg5[%c0_12, %c0_13] : memref<1x32xf32, #tpu.memory_space<vmem>>, vector<1x32xf32>
      %14 = vector.broadcast %13 : vector<1x32xf32> to vector<8x32xf32>
      %15 = arith.addf %12, %14 : vector<8x32xf32>
      %cst_14 = arith.constant 0.000000e+00 : f32
      %16 = vector.broadcast %cst_14 : f32 to vector<8x32xf32>
      %17 = arith.maximumf %15, %16 : vector<8x32xf32>
      %18 = arith.truncf %17 : vector<8x32xf32> to vector<8x32xbf16>
      %c0_15 = arith.constant 0 : index
      %c0_16 = arith.constant 0 : index
      %19 = vector.load %arg6[%c0_15, %c0_16] : memref<8x32xbf16, #tpu.memory_space<vmem>>, vector<8x32xbf16>
      tpu.vector_store %arg6[%c0_15, %c0_16], %18 {strides = array<i32>} : memref<8x32xbf16, #tpu.memory_space<vmem>>, vector<8x32xbf16>,
    } else {
    }
    return
  }
  func.func @transform_0(%arg0: i32, %arg1: i32, %arg2: i32) -> (i32, i32) {
    %c0_i32 = arith.constant 0 : i32
    return %arg0, %arg2 : i32, i32
  }
  func.func @transform_1(%arg0: i32, %arg1: i32, %arg2: i32) -> (i32, i32) {
    %c0_i32 = arith.constant 0 : i32
    return %arg2, %arg1 : i32, i32
  }
  func.func @transform_2(%arg0: i32, %arg1: i32, %arg2: i32) -> (i32, i32) {
    %c0_i32 = arith.constant 0 : i32
    %c0_i32_0 = arith.constant 0 : i32
    return %c0_i32, %arg1 : i32, i32
  }
  func.func @transform_3(%arg0: i32, %arg1: i32, %arg2: i32) -> (i32, i32) {
    %c0_i32 = arith.constant 0 : i32
    return %arg0, %arg1 : i32, i32
  }
}

module attributes {stable_mosaic.version = 11 : i64} {
  func.func @_matmul_kernel(%arg0: i32, %arg1: i32, %arg2: i32, %arg3: memref<16x288xbf16, #tpu.memory_space<vmem>>, %arg4: memref<288x32xbf16, #tpu.memory_space<vmem>>, %arg5: memref<1x32xf32, #tpu.memory_space<vmem>>, %arg6: memref<16x32xbf16, #tpu.memory_space<vmem>>, %arg7: memref<16x32xf32, #tpu.memory_space<vmem>>) attributes {dimension_semantics = [#tpu.dimension_semantics<parallel>, #tpu.dimension_semantics<parallel>, #tpu.dimension_semantics<arbitrary>], iteration_bounds = array<i64: 3, 1, 1>, scalar_prefetch = 0 : i64, scratch_operands = 1 : i64, tpu.core_type = #tpu.core_type<tc>, window_params = [{transform_indices = @transform_0, window_bounds = array<i64: 16, 288>}, {transform_indices = @transform_1, window_bounds = array<i64: 288, 32>}, {transform_indices = @transform_2, window_bounds = array<i64: 1, 32>}, {transform_indices = @transform_3, window_bounds = array<i64: 16, 32>}]} {
    %c0_i32 = arith.constant 0 : i32
    %0 = arith.cmpi eq, %arg2, %c0_i32 : i32
    %1 = arith.extui %0 : i1 to i32
    %c0_i32_0 = arith.constant 0 : i32
    %2 = arith.cmpi ne, %1, %c0_i32_0 : i32
    scf.if %2 {
      %cst_10 = arith.constant 0.000000e+00 : f32
      %12 = vector.broadcast %cst_10 : f32 to vector<16x32xf32>
      %c0_11 = arith.constant 0 : index
      %c0_12 = arith.constant 0 : index
      %13 = vector.load %arg7[%c0_11, %c0_12] : memref<16x32xf32, #tpu.memory_space<vmem>>, vector<16x32xf32>
      tpu.vector_store %arg7[%c0_11, %c0_12], %12 {strides = array<i32>} : memref<16x32xf32, #tpu.memory_space<vmem>>, vector<16x32xf32>,
    } else {
    }
    %c0 = arith.constant 0 : index
    %c0_1 = arith.constant 0 : index
    %3 = vector.load %arg7[%c0, %c0_1] : memref<16x32xf32, #tpu.memory_space<vmem>>, vector<16x32xf32>
    %c0_2 = arith.constant 0 : index
    %c0_3 = arith.constant 0 : index
    %4 = vector.load %arg3[%c0_2, %c0_3] : memref<16x288xbf16, #tpu.memory_space<vmem>>, vector<16x288xbf16>
    %c0_4 = arith.constant 0 : index
    %c0_5 = arith.constant 0 : index
    %5 = vector.load %arg4[%c0_4, %c0_5] : memref<288x32xbf16, #tpu.memory_space<vmem>>, vector<288x32xbf16>
    %cst = arith.constant dense<0.000000e+00> : vector<16x32xf32>
    %6 = tpu.matmul %4, %5, %cst {dimension_numbers = #tpu.dot_dimension_numbers<[1], [0], [0], [1], [0, 0, 1, 1], [], []>} : vector<16x288xbf16>, vector<288x32xbf16>, vector<16x32xf32> -> vector<16x32xf32>
    %7 = arith.addf %3, %6 : vector<16x32xf32>
    %c0_6 = arith.constant 0 : index
    %c0_7 = arith.constant 0 : index
    %8 = vector.load %arg7[%c0_6, %c0_7] : memref<16x32xf32, #tpu.memory_space<vmem>>, vector<16x32xf32>
    tpu.vector_store %arg7[%c0_6, %c0_7], %7 {strides = array<i32>} : memref<16x32xf32, #tpu.memory_space<vmem>>, vector<16x32xf32>,
    %c0_i32_8 = arith.constant 0 : i32
    %9 = arith.cmpi eq, %arg2, %c0_i32_8 : i32
    %10 = arith.extui %9 : i1 to i32
    %c0_i32_9 = arith.constant 0 : i32
    %11 = arith.cmpi ne, %10, %c0_i32_9 : i32
    scf.if %11 {
      %c0_10 = arith.constant 0 : index
      %c0_11 = arith.constant 0 : index
      %12 = vector.load %arg7[%c0_10, %c0_11] : memref<16x32xf32, #tpu.memory_space<vmem>>, vector<16x32xf32>
      %c0_12 = arith.constant 0 : index
      %c0_13 = arith.constant 0 : index
      %13 = vector.load %arg5[%c0_12, %c0_13] : memref<1x32xf32, #tpu.memory_space<vmem>>, vector<1x32xf32>
      %14 = vector.broadcast %13 : vector<1x32xf32> to vector<16x32xf32>
      %15 = arith.addf %12, %14 : vector<16x32xf32>
      %cst_14 = arith.constant 0.000000e+00 : f32
      %16 = vector.broadcast %cst_14 : f32 to vector<16x32xf32>
      %17 = arith.maximumf %15, %16 : vector<16x32xf32>
      %18 = arith.truncf %17 : vector<16x32xf32> to vector<16x32xbf16>
      %c0_15 = arith.constant 0 : index
      %c0_16 = arith.constant 0 : index
      %19 = vector.load %arg6[%c0_15, %c0_16] : memref<16x32xbf16, #tpu.memory_space<vmem>>, vector<16x32xbf16>
      tpu.vector_store %arg6[%c0_15, %c0_16], %18 {strides = array<i32>} : memref<16x32xbf16, #tpu.memory_space<vmem>>, vector<16x32xbf16>,
    } else {
    }
    return
  }
  func.func @transform_0(%arg0: i32, %arg1: i32, %arg2: i32) -> (i32, i32) {
    %c0_i32 = arith.constant 0 : i32
    return %arg0, %arg2 : i32, i32
  }
  func.func @transform_1(%arg0: i32, %arg1: i32, %arg2: i32) -> (i32, i32) {
    %c0_i32 = arith.constant 0 : i32
    return %arg2, %arg1 : i32, i32
  }
  func.func @transform_2(%arg0: i32, %arg1: i32, %arg2: i32) -> (i32, i32) {
    %c0_i32 = arith.constant 0 : i32
    %c0_i32_0 = arith.constant 0 : i32
    return %c0_i32, %arg1 : i32, i32
  }
  func.func @transform_3(%arg0: i32, %arg1: i32, %arg2: i32) -> (i32, i32) {
    %c0_i32 = arith.constant 0 : i32
    return %arg0, %arg1 : i32, i32
  }
}

module attributes {stable_mosaic.version = 11 : i64} {
  func.func @_matmul_kernel(%arg0: i32, %arg1: i32, %arg2: i32, %arg3: memref<16x96xbf16, #tpu.memory_space<vmem>>, %arg4: memref<96x32xbf16, #tpu.memory_space<vmem>>, %arg5: memref<1x32xf32, #tpu.memory_space<vmem>>, %arg6: memref<16x32xbf16, #tpu.memory_space<vmem>>, %arg7: memref<16x32xf32, #tpu.memory_space<vmem>>) attributes {dimension_semantics = [#tpu.dimension_semantics<parallel>, #tpu.dimension_semantics<parallel>, #tpu.dimension_semantics<arbitrary>], iteration_bounds = array<i64: 1, 1, 1>, scalar_prefetch = 0 : i64, scratch_operands = 1 : i64, tpu.core_type = #tpu.core_type<tc>, window_params = [{transform_indices = @transform_0, window_bounds = array<i64: 16, 96>}, {transform_indices = @transform_1, window_bounds = array<i64: 96, 32>}, {transform_indices = @transform_2, window_bounds = array<i64: 1, 32>}, {transform_indices = @transform_3, window_bounds = array<i64: 16, 32>}]} {
    %c0_i32 = arith.constant 0 : i32
    %0 = arith.cmpi eq, %arg2, %c0_i32 : i32
    %1 = arith.extui %0 : i1 to i32
    %c0_i32_0 = arith.constant 0 : i32
    %2 = arith.cmpi ne, %1, %c0_i32_0 : i32
    scf.if %2 {
      %cst_10 = arith.constant 0.000000e+00 : f32
      %12 = vector.broadcast %cst_10 : f32 to vector<16x32xf32>
      %c0_11 = arith.constant 0 : index
      %c0_12 = arith.constant 0 : index
      %13 = vector.load %arg7[%c0_11, %c0_12] : memref<16x32xf32, #tpu.memory_space<vmem>>, vector<16x32xf32>
      tpu.vector_store %arg7[%c0_11, %c0_12], %12 {strides = array<i32>} : memref<16x32xf32, #tpu.memory_space<vmem>>, vector<16x32xf32>,
    } else {
    }
    %c0 = arith.constant 0 : index
    %c0_1 = arith.constant 0 : index
    %3 = vector.load %arg7[%c0, %c0_1] : memref<16x32xf32, #tpu.memory_space<vmem>>, vector<16x32xf32>
    %c0_2 = arith.constant 0 : index
    %c0_3 = arith.constant 0 : index
    %4 = vector.load %arg3[%c0_2, %c0_3] : memref<16x96xbf16, #tpu.memory_space<vmem>>, vector<16x96xbf16>
    %c0_4 = arith.constant 0 : index
    %c0_5 = arith.constant 0 : index
    %5 = vector.load %arg4[%c0_4, %c0_5] : memref<96x32xbf16, #tpu.memory_space<vmem>>, vector<96x32xbf16>
    %cst = arith.constant dense<0.000000e+00> : vector<16x32xf32>
    %6 = tpu.matmul %4, %5, %cst {dimension_numbers = #tpu.dot_dimension_numbers<[1], [0], [0], [1], [0, 0, 1, 1], [], []>} : vector<16x96xbf16>, vector<96x32xbf16>, vector<16x32xf32> -> vector<16x32xf32>
    %7 = arith.addf %3, %6 : vector<16x32xf32>
    %c0_6 = arith.constant 0 : index
    %c0_7 = arith.constant 0 : index
    %8 = vector.load %arg7[%c0_6, %c0_7] : memref<16x32xf32, #tpu.memory_space<vmem>>, vector<16x32xf32>
    tpu.vector_store %arg7[%c0_6, %c0_7], %7 {strides = array<i32>} : memref<16x32xf32, #tpu.memory_space<vmem>>, vector<16x32xf32>,
    %c0_i32_8 = arith.constant 0 : i32
    %9 = arith.cmpi eq, %arg2, %c0_i32_8 : i32
    %10 = arith.extui %9 : i1 to i32
    %c0_i32_9 = arith.constant 0 : i32
    %11 = arith.cmpi ne, %10, %c0_i32_9 : i32
    scf.if %11 {
      %c0_10 = arith.constant 0 : index
      %c0_11 = arith.constant 0 : index
      %12 = vector.load %arg7[%c0_10, %c0_11] : memref<16x32xf32, #tpu.memory_space<vmem>>, vector<16x32xf32>
      %c0_12 = arith.constant 0 : index
      %c0_13 = arith.constant 0 : index
      %13 = vector.load %arg5[%c0_12, %c0_13] : memref<1x32xf32, #tpu.memory_space<vmem>>, vector<1x32xf32>
      %14 = vector.broadcast %13 : vector<1x32xf32> to vector<16x32xf32>
      %15 = arith.addf %12, %14 : vector<16x32xf32>
      %16 = arith.truncf %15 : vector<16x32xf32> to vector<16x32xbf16>
      %c0_14 = arith.constant 0 : index
      %c0_15 = arith.constant 0 : index
      %17 = vector.load %arg6[%c0_14, %c0_15] : memref<16x32xbf16, #tpu.memory_space<vmem>>, vector<16x32xbf16>
      tpu.vector_store %arg6[%c0_14, %c0_15], %16 {strides = array<i32>} : memref<16x32xbf16, #tpu.memory_space<vmem>>, vector<16x32xbf16>,
    } else {
    }
    return
  }
  func.func @transform_0(%arg0: i32, %arg1: i32, %arg2: i32) -> (i32, i32) {
    %c0_i32 = arith.constant 0 : i32
    return %arg0, %arg2 : i32, i32
  }
  func.func @transform_1(%arg0: i32, %arg1: i32, %arg2: i32) -> (i32, i32) {
    %c0_i32 = arith.constant 0 : i32
    return %arg2, %arg1 : i32, i32
  }
  func.func @transform_2(%arg0: i32, %arg1: i32, %arg2: i32) -> (i32, i32) {
    %c0_i32 = arith.constant 0 : i32
    %c0_i32_0 = arith.constant 0 : i32
    return %c0_i32, %arg1 : i32, i32
  }
  func.func @transform_3(%arg0: i32, %arg1: i32, %arg2: i32) -> (i32, i32) {
    %c0_i32 = arith.constant 0 : i32
    return %arg0, %arg1 : i32, i32
  }
}

module attributes {stable_mosaic.version = 11 : i64} {
  func.func @_attn_kernel(%arg0: i32, %arg1: memref<1x8x96xbf16, #tpu.memory_space<vmem>>, %arg2: memref<1x1x8xf32, #tpu.memory_space<vmem>>, %arg3: memref<1x8x32xbf16, #tpu.memory_space<vmem>>) attributes {dimension_semantics = [#tpu.dimension_semantics<parallel>], iteration_bounds = array<i64: 2>, scalar_prefetch = 0 : i64, scratch_operands = 0 : i64, tpu.core_type = #tpu.core_type<tc>, window_params = [{transform_indices = @transform_0, window_bounds = array<i64: 1, 8, 96>}, {transform_indices = @transform_1, window_bounds = array<i64: 1, 1, 8>}, {transform_indices = @transform_2, window_bounds = array<i64: 1, 8, 32>}]} {
    %c0 = arith.constant 0 : index
    %c0_0 = arith.constant 0 : index
    %c0_1 = arith.constant 0 : index
    %0 = vector.load %arg2[%c0, %c0_0, %c0_1] : memref<1x1x8xf32, #tpu.memory_space<vmem>>, vector<1x1x8xf32>
    %1 = vector.shape_cast %0 : vector<1x1x8xf32> to vector<1x8xf32>
    %c0_2 = arith.constant 0 : index
    %c0_3 = arith.constant 0 : index
    %c0_4 = arith.constant 0 : index
    %2 = vector.load %arg1[%c0_2, %c0_3, %c0_4] : memref<1x8x96xbf16, #tpu.memory_space<vmem>>, vector<1x8x8xbf16>
    %3 = vector.shape_cast %2 : vector<1x8x8xbf16> to vector<8x8xbf16>
    %c0_5 = arith.constant 0 : index
    %c0_6 = arith.constant 0 : index
    %c32 = arith.constant 32 : index
    %4 = vector.load %arg1[%c0_5, %c0_6, %c32] : memref<1x8x96xbf16, #tpu.memory_space<vmem>>, vector<1x8x8xbf16>
    %5 = vector.shape_cast %4 : vector<1x8x8xbf16> to vector<8x8xbf16>
    %c0_7 = arith.constant 0 : index
    %c0_8 = arith.constant 0 : index
    %c64 = arith.constant 64 : index
    %6 = vector.load %arg1[%c0_7, %c0_8, %c64] : memref<1x8x96xbf16, #tpu.memory_space<vmem>>, vector<1x8x8xbf16>
    %7 = vector.shape_cast %6 : vector<1x8x8xbf16> to vector<8x8xbf16>
    %cst = arith.constant dense<0.000000e+00> : vector<8x8xf32>
    %8 = tpu.matmul %3, %5, %cst {dimension_numbers = #tpu.dot_dimension_numbers<[1], [1], [0], [0], [0, 0, 1, 0], [], []>} : vector<8x8xbf16>, vector<8x8xbf16>, vector<8x8xf32> -> vector<8x8xf32>
    %cst_9 = arith.constant 0.353553385 : f32
    %9 = vector.broadcast %cst_9 : f32 to vector<8x8xf32>
    %10 = arith.mulf %8, %9 : vector<8x8xf32>
    %11 = vector.broadcast %1 : vector<1x8xf32> to vector<8x8xf32>
    %12 = arith.addf %10, %11 : vector<8x8xf32>
    %cst_10 = arith.constant dense<0xFF800000> : vector<8xf32>
    %13 = vector.multi_reduction <maximumf>, %12, %cst_10 [1] : vector<8x8xf32> to vector<8xf32>
    %14 = vector.shape_cast %13 : vector<8xf32> to vector<8x1xf32>
    %15 = vector.broadcast %14 : vector<8x1xf32> to vector<8x8xf32>
    %16 = arith.subf %12, %15 : vector<8x8xf32>
    %17 = math.exp %16 : vector<8x8xf32>
    %cst_11 = arith.constant dense<0.000000e+00> : vector<8xf32>
    %18 = vector.multi_reduction <add>, %17, %cst_11 [1] : vector<8x8xf32> to vector<8xf32>
    %19 = vector.shape_cast %18 : vector<8xf32> to vector<8x1xf32>
    %cst_12 = arith.constant 1.000000e+00 : f32
    %20 = vector.broadcast %cst_12 : f32 to vector<8x1xf32>
    %21 = arith.divf %20, %19 : vector<8x1xf32>
    %22 = vector.broadcast %21 : vector<8x1xf32> to vector<8x8xf32>
    %23 = arith.mulf %17, %22 : vector<8x8xf32>
    %24 = arith.truncf %23 : vector<8x8xf32> to vector<8x8xbf16>
    %cst_13 = arith.constant dense<0.000000e+00> : vector<8x8xf32>
    %25 = tpu.matmul %24, %7, %cst_13 {dimension_numbers = #tpu.dot_dimension_numbers<[1], [0], [0], [1], [0, 0, 1, 1], [], []>} : vector<8x8xbf16>, vector<8x8xbf16>, vector<8x8xf32> -> vector<8x8xf32>
    %26 = arith.truncf %25 : vector<8x8xf32> to vector<8x8xbf16>
    %c0_14 = arith.constant 0 : index
    %c0_15 = arith.constant 0 : index
    %c0_16 = arith.constant 0 : index
    %27 = vector.load %arg3[%c0_14, %c0_15, %c0_16] : memref<1x8x32xbf16, #tpu.memory_space<vmem>>, vector<1x8x8xbf16>
    %28 = vector.shape_cast %27 : vector<1x8x8xbf16> to vector<8x8xbf16>
    %29 = vector.shape_cast %26 : vector<8x8xbf16> to vector<1x8x8xbf16>
    tpu.vector_store %arg3[%c0_14, %c0_15, %c0_16], %29 {strides = array<i32>} : memref<1x8x32xbf16, #tpu.memory_space<vmem>>, vector<1x8x8xbf16>,
    %c0_17 = arith.constant 0 : index
    %c0_18 = arith.constant 0 : index
    %c8 = arith.constant 8 : index
    %30 = vector.load %arg1[%c0_17, %c0_18, %c8] : memref<1x8x96xbf16, #tpu.memory_space<vmem>>, vector<1x8x8xbf16>
    %31 = vector.shape_cast %30 : vector<1x8x8xbf16> to vector<8x8xbf16>
    %c0_19 = arith.constant 0 : index
    %c0_20 = arith.constant 0 : index
    %c40 = arith.constant 40 : index
    %32 = vector.load %arg1[%c0_19, %c0_20, %c40] : memref<1x8x96xbf16, #tpu.memory_space<vmem>>, vector<1x8x8xbf16>
    %33 = vector.shape_cast %32 : vector<1x8x8xbf16> to vector<8x8xbf16>
    %c0_21 = arith.constant 0 : index
    %c0_22 = arith.constant 0 : index
    %c72 = arith.constant 72 : index
    %34 = vector.load %arg1[%c0_21, %c0_22, %c72] : memref<1x8x96xbf16, #tpu.memory_space<vmem>>, vector<1x8x8xbf16>
    %35 = vector.shape_cast %34 : vector<1x8x8xbf16> to vector<8x8xbf16>
    %cst_23 = arith.constant dense<0.000000e+00> : vector<8x8xf32>
    %36 = tpu.matmul %31, %33, %cst_23 {dimension_numbers = #tpu.dot_dimension_numbers<[1], [1], [0], [0], [0, 0, 1, 0], [], []>} : vector<8x8xbf16>, vector<8x8xbf16>, vector<8x8xf32> -> vector<8x8xf32>
    %cst_24 = arith.constant 0.353553385 : f32
    %37 = vector.broadcast %cst_24 : f32 to vector<8x8xf32>
    %38 = arith.mulf %36, %37 : vector<8x8xf32>
    %39 = vector.broadcast %1 : vector<1x8xf32> to vector<8x8xf32>
    %40 = arith.addf %38, %39 : vector<8x8xf32>
    %cst_25 = arith.constant dense<0xFF800000> : vector<8xf32>
    %41 = vector.multi_reduction <maximumf>, %40, %cst_25 [1] : vector<8x8xf32> to vector<8xf32>
    %42 = vector.shape_cast %41 : vector<8xf32> to vector<8x1xf32>
    %43 = vector.broadcast %42 : vector<8x1xf32> to vector<8x8xf32>
    %44 = arith.subf %40, %43 : vector<8x8xf32>
    %45 = math.exp %44 : vector<8x8xf32>
    %cst_26 = arith.constant dense<0.000000e+00> : vector<8xf32>
    %46 = vector.multi_reduction <add>, %45, %cst_26 [1] : vector<8x8xf32> to vector<8xf32>
    %47 = vector.shape_cast %46 : vector<8xf32> to vector<8x1xf32>
    %cst_27 = arith.constant 1.000000e+00 : f32
    %48 = vector.broadcast %cst_27 : f32 to vector<8x1xf32>
    %49 = arith.divf %48, %47 : vector<8x1xf32>
    %50 = vector.broadcast %49 : vector<8x1xf32> to vector<8x8xf32>
    %51 = arith.mulf %45, %50 : vector<8x8xf32>
    %52 = arith.truncf %51 : vector<8x8xf32> to vector<8x8xbf16>
    %cst_28 = arith.constant dense<0.000000e+00> : vector<8x8xf32>
    %53 = tpu.matmul %52, %35, %cst_28 {dimension_numbers = #tpu.dot_dimension_numbers<[1], [0], [0], [1], [0, 0, 1, 1], [], []>} : vector<8x8xbf16>, vector<8x8xbf16>, vector<8x8xf32> -> vector<8x8xf32>
    %54 = arith.truncf %53 : vector<8x8xf32> to vector<8x8xbf16>
    %c0_29 = arith.constant 0 : index
    %c0_30 = arith.constant 0 : index
    %c8_31 = arith.constant 8 : index
    %55 = vector.load %arg3[%c0_29, %c0_30, %c8_31] : memref<1x8x32xbf16, #tpu.memory_space<vmem>>, vector<1x8x8xbf16>
    %56 = vector.shape_cast %55 : vector<1x8x8xbf16> to vector<8x8xbf16>
    %57 = vector.shape_cast %54 : vector<8x8xbf16> to vector<1x8x8xbf16>
    tpu.vector_store %arg3[%c0_29, %c0_30, %c8_31], %57 {strides = array<i32>} : memref<1x8x32xbf16, #tpu.memory_space<vmem>>, vector<1x8x8xbf16>,
    %c0_32 = arith.constant 0 : index
    %c0_33 = arith.constant 0 : index
    %c16 = arith.constant 16 : index
    %58 = vector.load %arg1[%c0_32, %c0_33, %c16] : memref<1x8x96xbf16, #tpu.memory_space<vmem>>, vector<1x8x8xbf16>
    %59 = vector.shape_cast %58 : vector<1x8x8xbf16> to vector<8x8xbf16>
    %c0_34 = arith.constant 0 : index
    %c0_35 = arith.constant 0 : index
    %c48 = arith.constant 48 : index
    %60 = vector.load %arg1[%c0_34, %c0_35, %c48] : memref<1x8x96xbf16, #tpu.memory_space<vmem>>, vector<1x8x8xbf16>
    %61 = vector.shape_cast %60 : vector<1x8x8xbf16> to vector<8x8xbf16>
    %c0_36 = arith.constant 0 : index
    %c0_37 = arith.constant 0 : index
    %c80 = arith.constant 80 : index
    %62 = vector.load %arg1[%c0_36, %c0_37, %c80] : memref<1x8x96xbf16, #tpu.memory_space<vmem>>, vector<1x8x8xbf16>
    %63 = vector.shape_cast %62 : vector<1x8x8xbf16> to vector<8x8xbf16>
    %cst_38 = arith.constant dense<0.000000e+00> : vector<8x8xf32>
    %64 = tpu.matmul %59, %61, %cst_38 {dimension_numbers = #tpu.dot_dimension_numbers<[1], [1], [0], [0], [0, 0, 1, 0], [], []>} : vector<8x8xbf16>, vector<8x8xbf16>, vector<8x8xf32> -> vector<8x8xf32>
    %cst_39 = arith.constant 0.353553385 : f32
    %65 = vector.broadcast %cst_39 : f32 to vector<8x8xf32>
    %66 = arith.mulf %64, %65 : vector<8x8xf32>
    %67 = vector.broadcast %1 : vector<1x8xf32> to vector<8x8xf32>
    %68 = arith.addf %66, %67 : vector<8x8xf32>
    %cst_40 = arith.constant dense<0xFF800000> : vector<8xf32>
    %69 = vector.multi_reduction <maximumf>, %68, %cst_40 [1] : vector<8x8xf32> to vector<8xf32>
    %70 = vector.shape_cast %69 : vector<8xf32> to vector<8x1xf32>
    %71 = vector.broadcast %70 : vector<8x1xf32> to vector<8x8xf32>
    %72 = arith.subf %68, %71 : vector<8x8xf32>
    %73 = math.exp %72 : vector<8x8xf32>
    %cst_41 = arith.constant dense<0.000000e+00> : vector<8xf32>
    %74 = vector.multi_reduction <add>, %73, %cst_41 [1] : vector<8x8xf32> to vector<8xf32>
    %75 = vector.shape_cast %74 : vector<8xf32> to vector<8x1xf32>
    %cst_42 = arith.constant 1.000000e+00 : f32
    %76 = vector.broadcast %cst_42 : f32 to vector<8x1xf32>
    %77 = arith.divf %76, %75 : vector<8x1xf32>
    %78 = vector.broadcast %77 : vector<8x1xf32> to vector<8x8xf32>
    %79 = arith.mulf %73, %78 : vector<8x8xf32>
    %80 = arith.truncf %79 : vector<8x8xf32> to vector<8x8xbf16>
    %cst_43 = arith.constant dense<0.000000e+00> : vector<8x8xf32>
    %81 = tpu.matmul %80, %63, %cst_43 {dimension_numbers = #tpu.dot_dimension_numbers<[1], [0], [0], [1], [0, 0, 1, 1], [], []>} : vector<8x8xbf16>, vector<8x8xbf16>, vector<8x8xf32> -> vector<8x8xf32>
    %82 = arith.truncf %81 : vector<8x8xf32> to vector<8x8xbf16>
    %c0_44 = arith.constant 0 : index
    %c0_45 = arith.constant 0 : index
    %c16_46 = arith.constant 16 : index
    %83 = vector.load %arg3[%c0_44, %c0_45, %c16_46] : memref<1x8x32xbf16, #tpu.memory_space<vmem>>, vector<1x8x8xbf16>
    %84 = vector.shape_cast %83 : vector<1x8x8xbf16> to vector<8x8xbf16>
    %85 = vector.shape_cast %82 : vector<8x8xbf16> to vector<1x8x8xbf16>
    tpu.vector_store %arg3[%c0_44, %c0_45, %c16_46], %85 {strides = array<i32>} : memref<1x8x32xbf16, #tpu.memory_space<vmem>>, vector<1x8x8xbf16>,
    %c0_47 = arith.constant 0 : index
    %c0_48 = arith.constant 0 : index
    %c24 = arith.constant 24 : index
    %86 = vector.load %arg1[%c0_47, %c0_48, %c24] : memref<1x8x96xbf16, #tpu.memory_space<vmem>>, vector<1x8x8xbf16>
    %87 = vector.shape_cast %86 : vector<1x8x8xbf16> to vector<8x8xbf16>
    %c0_49 = arith.constant 0 : index
    %c0_50 = arith.constant 0 : index
    %c56 = arith.constant 56 : index
    %88 = vector.load %arg1[%c0_49, %c0_50, %c56] : memref<1x8x96xbf16, #tpu.memory_space<vmem>>, vector<1x8x8xbf16>
    %89 = vector.shape_cast %88 : vector<1x8x8xbf16> to vector<8x8xbf16>
    %c0_51 = arith.constant 0 : index
    %c0_52 = arith.constant 0 : index
    %c88 = arith.constant 88 : index
    %90 = vector.load %arg1[%c0_51, %c0_52, %c88] : memref<1x8x96xbf16, #tpu.memory_space<vmem>>, vector<1x8x8xbf16>
    %91 = vector.shape_cast %90 : vector<1x8x8xbf16> to vector<8x8xbf16>
    %cst_53 = arith.constant dense<0.000000e+00> : vector<8x8xf32>
    %92 = tpu.matmul %87, %89, %cst_53 {dimension_numbers = #tpu.dot_dimension_numbers<[1], [1], [0], [0], [0, 0, 1, 0], [], []>} : vector<8x8xbf16>, vector<8x8xbf16>, vector<8x8xf32> -> vector<8x8xf32>
    %cst_54 = arith.constant 0.353553385 : f32
    %93 = vector.broadcast %cst_54 : f32 to vector<8x8xf32>
    %94 = arith.mulf %92, %93 : vector<8x8xf32>
    %95 = vector.broadcast %1 : vector<1x8xf32> to vector<8x8xf32>
    %96 = arith.addf %94, %95 : vector<8x8xf32>
    %cst_55 = arith.constant dense<0xFF800000> : vector<8xf32>
    %97 = vector.multi_reduction <maximumf>, %96, %cst_55 [1] : vector<8x8xf32> to vector<8xf32>
    %98 = vector.shape_cast %97 : vector<8xf32> to vector<8x1xf32>
    %99 = vector.broadcast %98 : vector<8x1xf32> to vector<8x8xf32>
    %100 = arith.subf %96, %99 : vector<8x8xf32>
    %101 = math.exp %100 : vector<8x8xf32>
    %cst_56 = arith.constant dense<0.000000e+00> : vector<8xf32>
    %102 = vector.multi_reduction <add>, %101, %cst_56 [1] : vector<8x8xf32> to vector<8xf32>
    %103 = vector.shape_cast %102 : vector<8xf32> to vector<8x1xf32>
    %cst_57 = arith.constant 1.000000e+00 : f32
    %104 = vector.broadcast %cst_57 : f32 to vector<8x1xf32>
    %105 = arith.divf %104, %103 : vector<8x1xf32>
    %106 = vector.broadcast %105 : vector<8x1xf32> to vector<8x8xf32>
    %107 = arith.mulf %101, %106 : vector<8x8xf32>
    %108 = arith.truncf %107 : vector<8x8xf32> to vector<8x8xbf16>
    %cst_58 = arith.constant dense<0.000000e+00> : vector<8x8xf32>
    %109 = tpu.matmul %108, %91, %cst_58 {dimension_numbers = #tpu.dot_dimension_numbers<[1], [0], [0], [1], [0, 0, 1, 1], [], []>} : vector<8x8xbf16>, vector<8x8xbf16>, vector<8x8xf32> -> vector<8x8xf32>
    %110 = arith.truncf %109 : vector<8x8xf32> to vector<8x8xbf16>
    %c0_59 = arith.constant 0 : index
    %c0_60 = arith.constant 0 : index
    %c24_61 = arith.constant 24 : index
    %111 = vector.load %arg3[%c0_59, %c0_60, %c24_61] : memref<1x8x32xbf16, #tpu.memory_space<vmem>>, vector<1x8x8xbf16>
    %112 = vector.shape_cast %111 : vector<1x8x8xbf16> to vector<8x8xbf16>
    %113 = vector.shape_cast %110 : vector<8x8xbf16> to vector<1x8x8xbf16>
    tpu.vector_store %arg3[%c0_59, %c0_60, %c24_61], %113 {strides = array<i32>} : memref<1x8x32xbf16, #tpu.memory_space<vmem>>, vector<1x8x8xbf16>,
    return
  }
  func.func @transform_0(%arg0: i32) -> (i32, i32, i32) {
    %c0_i32 = arith.constant 0 : i32
    %c0_i32_0 = arith.constant 0 : i32
    %c0_i32_1 = arith.constant 0 : i32
    return %arg0, %c0_i32, %c0_i32_0 : i32, i32, i32
  }
  func.func @transform_1(%arg0: i32) -> (i32, i32, i32) {
    %c0_i32 = arith.constant 0 : i32
    %c0_i32_0 = arith.constant 0 : i32
    %c0_i32_1 = arith.constant 0 : i32
    return %arg0, %c0_i32, %c0_i32_0 : i32, i32, i32
  }
  func.func @transform_2(%arg0: i32) -> (i32, i32, i32) {
    %c0_i32 = arith.constant 0 : i32
    %c0_i32_0 = arith.constant 0 : i32
    %c0_i32_1 = arith.constant 0 : i32
    return %arg0, %c0_i32, %c0_i32_0 : i32, i32, i32
  }
}

module attributes {stable_mosaic.version = 11 : i64} {
  func.func @_matmul_kernel(%arg0: i32, %arg1: i32, %arg2: i32, %arg3: memref<16x32xbf16, #tpu.memory_space<vmem>>, %arg4: memref<32x32xbf16, #tpu.memory_space<vmem>>, %arg5: memref<1x32xf32, #tpu.memory_space<vmem>>, %arg6: memref<16x32xbf16, #tpu.memory_space<vmem>>, %arg7: memref<16x32xbf16, #tpu.memory_space<vmem>>, %arg8: memref<16x32xf32, #tpu.memory_space<vmem>>) attributes {dimension_semantics = [#tpu.dimension_semantics<parallel>, #tpu.dimension_semantics<parallel>, #tpu.dimension_semantics<arbitrary>], iteration_bounds = array<i64: 1, 1, 1>, scalar_prefetch = 0 : i64, scratch_operands = 1 : i64, tpu.core_type = #tpu.core_type<tc>, window_params = [{transform_indices = @transform_0, window_bounds = array<i64: 16, 32>}, {transform_indices = @transform_1, window_bounds = array<i64: 32, 32>}, {transform_indices = @transform_2, window_bounds = array<i64: 1, 32>}, {transform_indices = @transform_3, window_bounds = array<i64: 16, 32>}, {transform_indices = @transform_4, window_bounds = array<i64: 16, 32>}]} {
    %c0_i32 = arith.constant 0 : i32
    %0 = arith.cmpi eq, %arg2, %c0_i32 : i32
    %1 = arith.extui %0 : i1 to i32
    %c0_i32_0 = arith.constant 0 : i32
    %2 = arith.cmpi ne, %1, %c0_i32_0 : i32
    scf.if %2 {
      %cst_10 = arith.constant 0.000000e+00 : f32
      %12 = vector.broadcast %cst_10 : f32 to vector<16x32xf32>
      %c0_11 = arith.constant 0 : index
      %c0_12 = arith.constant 0 : index
      %13 = vector.load %arg8[%c0_11, %c0_12] : memref<16x32xf32, #tpu.memory_space<vmem>>, vector<16x32xf32>
      tpu.vector_store %arg8[%c0_11, %c0_12], %12 {strides = array<i32>} : memref<16x32xf32, #tpu.memory_space<vmem>>, vector<16x32xf32>,
    } else {
    }
    %c0 = arith.constant 0 : index
    %c0_1 = arith.constant 0 : index
    %3 = vector.load %arg8[%c0, %c0_1] : memref<16x32xf32, #tpu.memory_space<vmem>>, vector<16x32xf32>
    %c0_2 = arith.constant 0 : index
    %c0_3 = arith.constant 0 : index
    %4 = vector.load %arg3[%c0_2, %c0_3] : memref<16x32xbf16, #tpu.memory_space<vmem>>, vector<16x32xbf16>
    %c0_4 = arith.constant 0 : index
    %c0_5 = arith.constant 0 : index
    %5 = vector.load %arg4[%c0_4, %c0_5] : memref<32x32xbf16, #tpu.memory_space<vmem>>, vector<32x32xbf16>
    %cst = arith.constant dense<0.000000e+00> : vector<16x32xf32>
    %6 = tpu.matmul %4, %5, %cst {dimension_numbers = #tpu.dot_dimension_numbers<[1], [0], [0], [1], [0, 0, 1, 1], [], []>} : vector<16x32xbf16>, vector<32x32xbf16>, vector<16x32xf32> -> vector<16x32xf32>
    %7 = arith.addf %3, %6 : vector<16x32xf32>
    %c0_6 = arith.constant 0 : index
    %c0_7 = arith.constant 0 : index
    %8 = vector.load %arg8[%c0_6, %c0_7] : memref<16x32xf32, #tpu.memory_space<vmem>>, vector<16x32xf32>
    tpu.vector_store %arg8[%c0_6, %c0_7], %7 {strides = array<i32>} : memref<16x32xf32, #tpu.memory_space<vmem>>, vector<16x32xf32>,
    %c0_i32_8 = arith.constant 0 : i32
    %9 = arith.cmpi eq, %arg2, %c0_i32_8 : i32
    %10 = arith.extui %9 : i1 to i32
    %c0_i32_9 = arith.constant 0 : i32
    %11 = arith.cmpi ne, %10, %c0_i32_9 : i32
    scf.if %11 {
      %c0_10 = arith.constant 0 : index
      %c0_11 = arith.constant 0 : index
      %12 = vector.load %arg8[%c0_10, %c0_11] : memref<16x32xf32, #tpu.memory_space<vmem>>, vector<16x32xf32>
      %c0_12 = arith.constant 0 : index
      %c0_13 = arith.constant 0 : index
      %13 = vector.load %arg5[%c0_12, %c0_13] : memref<1x32xf32, #tpu.memory_space<vmem>>, vector<1x32xf32>
      %14 = vector.broadcast %13 : vector<1x32xf32> to vector<16x32xf32>
      %15 = arith.addf %12, %14 : vector<16x32xf32>
      %c0_14 = arith.constant 0 : index
      %c0_15 = arith.constant 0 : index
      %16 = vector.load %arg6[%c0_14, %c0_15] : memref<16x32xbf16, #tpu.memory_space<vmem>>, vector<16x32xbf16>
      %17 = arith.extf %16 : vector<16x32xbf16> to vector<16x32xf32>
      %18 = arith.addf %15, %17 : vector<16x32xf32>
      %19 = arith.truncf %18 : vector<16x32xf32> to vector<16x32xbf16>
      %c0_16 = arith.constant 0 : index
      %c0_17 = arith.constant 0 : index
      %20 = vector.load %arg7[%c0_16, %c0_17] : memref<16x32xbf16, #tpu.memory_space<vmem>>, vector<16x32xbf16>
      tpu.vector_store %arg7[%c0_16, %c0_17], %19 {strides = array<i32>} : memref<16x32xbf16, #tpu.memory_space<vmem>>, vector<16x32xbf16>,
    } else {
    }
    return
  }
  func.func @transform_0(%arg0: i32, %arg1: i32, %arg2: i32) -> (i32, i32) {
    %c0_i32 = arith.constant 0 : i32
    return %arg0, %arg2 : i32, i32
  }
  func.func @transform_1(%arg0: i32, %arg1: i32, %arg2: i32) -> (i32, i32) {
    %c0_i32 = arith.constant 0 : i32
    return %arg2, %arg1 : i32, i32
  }
  func.func @transform_2(%arg0: i32, %arg1: i32, %arg2: i32) -> (i32, i32) {
    %c0_i32 = arith.constant 0 : i32
    %c0_i32_0 = arith.constant 0 : i32
    return %c0_i32, %arg1 : i32, i32
  }
  func.func @transform_3(%arg0: i32, %arg1: i32, %arg2: i32) -> (i32, i32) {
    %c0_i32 = arith.constant 0 : i32
    return %arg0, %arg1 : i32, i32
  }
  func.func @transform_4(%arg0: i32, %arg1: i32, %arg2: i32) -> (i32, i32) {
    %c0_i32 = arith.constant 0 : i32
    return %arg0, %arg1 : i32, i32
  }
}

module attributes {stable_mosaic.version = 11 : i64} {
  func.func @_ln_matmul_kernel(%arg0: i32, %arg1: memref<16x32xbf16, #tpu.memory_space<vmem>>, %arg2: memref<1x32xf32, #tpu.memory_space<vmem>>, %arg3: memref<1x32xf32, #tpu.memory_space<vmem>>, %arg4: memref<32x96xbf16, #tpu.memory_space<vmem>>, %arg5: memref<1x96xf32, #tpu.memory_space<vmem>>, %arg6: memref<16x96xbf16, #tpu.memory_space<vmem>>) attributes {dimension_semantics = [#tpu.dimension_semantics<parallel>], iteration_bounds = array<i64: 1>, scalar_prefetch = 0 : i64, scratch_operands = 0 : i64, tpu.core_type = #tpu.core_type<tc>, window_params = [{transform_indices = @transform_0, window_bounds = array<i64: 16, 32>}, {pipeline_mode = #tpu.pipeline_mode<synchronous>, transform_indices = @transform_1, window_bounds = array<i64: 1, 32>}, {pipeline_mode = #tpu.pipeline_mode<synchronous>, transform_indices = @transform_2, window_bounds = array<i64: 1, 32>}, {pipeline_mode = #tpu.pipeline_mode<synchronous>, transform_indices = @transform_3, window_bounds = array<i64: 32, 96>}, {pipeline_mode = #tpu.pipeline_mode<synchronous>, transform_indices = @transform_4, window_bounds = array<i64: 1, 96>}, {transform_indices = @transform_5, window_bounds = array<i64: 16, 96>}]} {
    %c0 = arith.constant 0 : index
    %c0_0 = arith.constant 0 : index
    %0 = vector.load %arg1[%c0, %c0_0] : memref<16x32xbf16, #tpu.memory_space<vmem>>, vector<16x32xbf16>
    %1 = arith.extf %0 : vector<16x32xbf16> to vector<16x32xf32>
    %cst = arith.constant dense<0.000000e+00> : vector<16xf32>
    %2 = vector.multi_reduction <add>, %1, %cst [1] : vector<16x32xf32> to vector<16xf32>
    %3 = vector.shape_cast %2 : vector<16xf32> to vector<16x1xf32>
    %cst_1 = arith.constant 3.200000e+01 : f32
    %4 = vector.broadcast %cst_1 : f32 to vector<16x1xf32>
    %5 = arith.divf %3, %4 : vector<16x1xf32>
    %6 = vector.broadcast %5 : vector<16x1xf32> to vector<16x32xf32>
    %7 = arith.subf %1, %6 : vector<16x32xf32>
    %8 = arith.mulf %7, %7 : vector<16x32xf32>
    %cst_2 = arith.constant dense<0.000000e+00> : vector<16xf32>
    %9 = vector.multi_reduction <add>, %8, %cst_2 [1] : vector<16x32xf32> to vector<16xf32>
    %10 = vector.shape_cast %9 : vector<16xf32> to vector<16x1xf32>
    %cst_3 = arith.constant 3.200000e+01 : f32
    %11 = vector.broadcast %cst_3 : f32 to vector<16x1xf32>
    %12 = arith.divf %10, %11 : vector<16x1xf32>
    %cst_4 = arith.constant 9.99999974E-6 : f32
    %13 = vector.broadcast %cst_4 : f32 to vector<16x1xf32>
    %14 = arith.addf %12, %13 : vector<16x1xf32>
    %15 = math.rsqrt %14 : vector<16x1xf32>
    %16 = vector.broadcast %15 : vector<16x1xf32> to vector<16x32xf32>
    %17 = arith.mulf %7, %16 : vector<16x32xf32>
    %c0_5 = arith.constant 0 : index
    %c0_6 = arith.constant 0 : index
    %18 = vector.load %arg2[%c0_5, %c0_6] : memref<1x32xf32, #tpu.memory_space<vmem>>, vector<1x32xf32>
    %19 = vector.broadcast %18 : vector<1x32xf32> to vector<16x32xf32>
    %20 = arith.mulf %17, %19 : vector<16x32xf32>
    %c0_7 = arith.constant 0 : index
    %c0_8 = arith.constant 0 : index
    %21 = vector.load %arg3[%c0_7, %c0_8] : memref<1x32xf32, #tpu.memory_space<vmem>>, vector<1x32xf32>
    %22 = vector.broadcast %21 : vector<1x32xf32> to vector<16x32xf32>
    %23 = arith.addf %20, %22 : vector<16x32xf32>
    %24 = arith.truncf %23 : vector<16x32xf32> to vector<16x32xbf16>
    %c0_9 = arith.constant 0 : index
    %c0_10 = arith.constant 0 : index
    %25 = vector.load %arg4[%c0_9, %c0_10] : memref<32x96xbf16, #tpu.memory_space<vmem>>, vector<32x96xbf16>
    %cst_11 = arith.constant dense<0.000000e+00> : vector<16x96xf32>
    %26 = tpu.matmul %24, %25, %cst_11 {dimension_numbers = #tpu.dot_dimension_numbers<[1], [0], [0], [1], [0, 0, 1, 1], [], []>} : vector<16x32xbf16>, vector<32x96xbf16>, vector<16x96xf32> -> vector<16x96xf32>
    %c0_12 = arith.constant 0 : index
    %c0_13 = arith.constant 0 : index
    %27 = vector.load %arg5[%c0_12, %c0_13] : memref<1x96xf32, #tpu.memory_space<vmem>>, vector<1x96xf32>
    %28 = vector.broadcast %27 : vector<1x96xf32> to vector<16x96xf32>
    %29 = arith.addf %26, %28 : vector<16x96xf32>
    %30 = arith.truncf %29 : vector<16x96xf32> to vector<16x96xbf16>
    %c0_14 = arith.constant 0 : index
    %c0_15 = arith.constant 0 : index
    %31 = vector.load %arg6[%c0_14, %c0_15] : memref<16x96xbf16, #tpu.memory_space<vmem>>, vector<16x96xbf16>
    tpu.vector_store %arg6[%c0_14, %c0_15], %30 {strides = array<i32>} : memref<16x96xbf16, #tpu.memory_space<vmem>>, vector<16x96xbf16>,
    return
  }
  func.func @transform_0(%arg0: i32) -> (i32, i32) {
    %c0_i32 = arith.constant 0 : i32
    %c0_i32_0 = arith.constant 0 : i32
    return %arg0, %c0_i32 : i32, i32
  }
  func.func @transform_1(%arg0: i32) -> (i32, i32) {
    %c0_i32 = arith.constant 0 : i32
    %c0_i32_0 = arith.constant 0 : i32
    %c0_i32_1 = arith.constant 0 : i32
    return %c0_i32, %c0_i32_0 : i32, i32
  }
  func.func @transform_2(%arg0: i32) -> (i32, i32) {
    %c0_i32 = arith.constant 0 : i32
    %c0_i32_0 = arith.constant 0 : i32
    %c0_i32_1 = arith.constant 0 : i32
    return %c0_i32, %c0_i32_0 : i32, i32
  }
  func.func @transform_3(%arg0: i32) -> (i32, i32) {
    %c0_i32 = arith.constant 0 : i32
    %c0_i32_0 = arith.constant 0 : i32
    %c0_i32_1 = arith.constant 0 : i32
    return %c0_i32, %c0_i32_0 : i32, i32
  }
  func.func @transform_4(%arg0: i32) -> (i32, i32) {
    %c0_i32 = arith.constant 0 : i32
    %c0_i32_0 = arith.constant 0 : i32
    %c0_i32_1 = arith.constant 0 : i32
    return %c0_i32, %c0_i32_0 : i32, i32
  }
  func.func @transform_5(%arg0: i32) -> (i32, i32) {
    %c0_i32 = arith.constant 0 : i32
    %c0_i32_0 = arith.constant 0 : i32
    return %arg0, %c0_i32 : i32, i32
  }
}

module attributes {stable_mosaic.version = 11 : i64} {
  func.func @_ln_ffn_kernel(%arg0: i32, %arg1: memref<16x32xbf16, #tpu.memory_space<vmem>>, %arg2: memref<1x32xf32, #tpu.memory_space<vmem>>, %arg3: memref<1x32xf32, #tpu.memory_space<vmem>>, %arg4: memref<32x64xbf16, #tpu.memory_space<vmem>>, %arg5: memref<1x64xf32, #tpu.memory_space<vmem>>, %arg6: memref<64x32xbf16, #tpu.memory_space<vmem>>, %arg7: memref<1x32xf32, #tpu.memory_space<vmem>>, %arg8: memref<16x32xbf16, #tpu.memory_space<vmem>>) attributes {dimension_semantics = [#tpu.dimension_semantics<parallel>], iteration_bounds = array<i64: 1>, scalar_prefetch = 0 : i64, scratch_operands = 0 : i64, tpu.core_type = #tpu.core_type<tc>, window_params = [{transform_indices = @transform_0, window_bounds = array<i64: 16, 32>}, {pipeline_mode = #tpu.pipeline_mode<synchronous>, transform_indices = @transform_1, window_bounds = array<i64: 1, 32>}, {pipeline_mode = #tpu.pipeline_mode<synchronous>, transform_indices = @transform_2, window_bounds = array<i64: 1, 32>}, {pipeline_mode = #tpu.pipeline_mode<synchronous>, transform_indices = @transform_3, window_bounds = array<i64: 32, 64>}, {pipeline_mode = #tpu.pipeline_mode<synchronous>, transform_indices = @transform_4, window_bounds = array<i64: 1, 64>}, {pipeline_mode = #tpu.pipeline_mode<synchronous>, transform_indices = @transform_5, window_bounds = array<i64: 64, 32>}, {pipeline_mode = #tpu.pipeline_mode<synchronous>, transform_indices = @transform_6, window_bounds = array<i64: 1, 32>}, {transform_indices = @transform_7, window_bounds = array<i64: 16, 32>}]} {
    %c0 = arith.constant 0 : index
    %c0_0 = arith.constant 0 : index
    %0 = vector.load %arg1[%c0, %c0_0] : memref<16x32xbf16, #tpu.memory_space<vmem>>, vector<16x32xbf16>
    %1 = arith.extf %0 : vector<16x32xbf16> to vector<16x32xf32>
    %cst = arith.constant dense<0.000000e+00> : vector<16xf32>
    %2 = vector.multi_reduction <add>, %1, %cst [1] : vector<16x32xf32> to vector<16xf32>
    %3 = vector.shape_cast %2 : vector<16xf32> to vector<16x1xf32>
    %cst_1 = arith.constant 3.200000e+01 : f32
    %4 = vector.broadcast %cst_1 : f32 to vector<16x1xf32>
    %5 = arith.divf %3, %4 : vector<16x1xf32>
    %6 = vector.broadcast %5 : vector<16x1xf32> to vector<16x32xf32>
    %7 = arith.subf %1, %6 : vector<16x32xf32>
    %8 = arith.mulf %7, %7 : vector<16x32xf32>
    %cst_2 = arith.constant dense<0.000000e+00> : vector<16xf32>
    %9 = vector.multi_reduction <add>, %8, %cst_2 [1] : vector<16x32xf32> to vector<16xf32>
    %10 = vector.shape_cast %9 : vector<16xf32> to vector<16x1xf32>
    %cst_3 = arith.constant 3.200000e+01 : f32
    %11 = vector.broadcast %cst_3 : f32 to vector<16x1xf32>
    %12 = arith.divf %10, %11 : vector<16x1xf32>
    %cst_4 = arith.constant 9.99999974E-6 : f32
    %13 = vector.broadcast %cst_4 : f32 to vector<16x1xf32>
    %14 = arith.addf %12, %13 : vector<16x1xf32>
    %15 = math.rsqrt %14 : vector<16x1xf32>
    %16 = vector.broadcast %15 : vector<16x1xf32> to vector<16x32xf32>
    %17 = arith.mulf %7, %16 : vector<16x32xf32>
    %c0_5 = arith.constant 0 : index
    %c0_6 = arith.constant 0 : index
    %18 = vector.load %arg2[%c0_5, %c0_6] : memref<1x32xf32, #tpu.memory_space<vmem>>, vector<1x32xf32>
    %19 = vector.broadcast %18 : vector<1x32xf32> to vector<16x32xf32>
    %20 = arith.mulf %17, %19 : vector<16x32xf32>
    %c0_7 = arith.constant 0 : index
    %c0_8 = arith.constant 0 : index
    %21 = vector.load %arg3[%c0_7, %c0_8] : memref<1x32xf32, #tpu.memory_space<vmem>>, vector<1x32xf32>
    %22 = vector.broadcast %21 : vector<1x32xf32> to vector<16x32xf32>
    %23 = arith.addf %20, %22 : vector<16x32xf32>
    %24 = arith.truncf %23 : vector<16x32xf32> to vector<16x32xbf16>
    %c0_9 = arith.constant 0 : index
    %c0_10 = arith.constant 0 : index
    %25 = vector.load %arg7[%c0_9, %c0_10] : memref<1x32xf32, #tpu.memory_space<vmem>>, vector<1x32xf32>
    %26 = vector.broadcast %25 : vector<1x32xf32> to vector<16x32xf32>
    %27 = arith.addf %1, %26 : vector<16x32xf32>
    %c0_11 = arith.constant 0 : index
    %c0_12 = arith.constant 0 : index
    %28 = vector.load %arg4[%c0_11, %c0_12] : memref<32x64xbf16, #tpu.memory_space<vmem>>, vector<32x64xbf16>
    %cst_13 = arith.constant dense<0.000000e+00> : vector<16x64xf32>
    %29 = tpu.matmul %24, %28, %cst_13 {dimension_numbers = #tpu.dot_dimension_numbers<[1], [0], [0], [1], [0, 0, 1, 1], [], []>} : vector<16x32xbf16>, vector<32x64xbf16>, vector<16x64xf32> -> vector<16x64xf32>
    %c0_14 = arith.constant 0 : index
    %c0_15 = arith.constant 0 : index
    %30 = vector.load %arg5[%c0_14, %c0_15] : memref<1x64xf32, #tpu.memory_space<vmem>>, vector<1x64xf32>
    %31 = vector.broadcast %30 : vector<1x64xf32> to vector<16x64xf32>
    %32 = arith.addf %29, %31 : vector<16x64xf32>
    %cst_16 = arith.constant 0.000000e+00 : f32
    %33 = vector.broadcast %cst_16 : f32 to vector<16x64xf32>
    %34 = arith.maximumf %32, %33 : vector<16x64xf32>
    %35 = arith.truncf %34 : vector<16x64xf32> to vector<16x64xbf16>
    %c0_17 = arith.constant 0 : index
    %c0_18 = arith.constant 0 : index
    %36 = vector.load %arg6[%c0_17, %c0_18] : memref<64x32xbf16, #tpu.memory_space<vmem>>, vector<64x32xbf16>
    %cst_19 = arith.constant dense<0.000000e+00> : vector<16x32xf32>
    %37 = tpu.matmul %35, %36, %cst_19 {dimension_numbers = #tpu.dot_dimension_numbers<[1], [0], [0], [1], [0, 0, 1, 1], [], []>} : vector<16x64xbf16>, vector<64x32xbf16>, vector<16x32xf32> -> vector<16x32xf32>
    %38 = arith.addf %27, %37 : vector<16x32xf32>
    %39 = arith.truncf %38 : vector<16x32xf32> to vector<16x32xbf16>
    %c0_20 = arith.constant 0 : index
    %c0_21 = arith.constant 0 : index
    %40 = vector.load %arg8[%c0_20, %c0_21] : memref<16x32xbf16, #tpu.memory_space<vmem>>, vector<16x32xbf16>
    tpu.vector_store %arg8[%c0_20, %c0_21], %39 {strides = array<i32>} : memref<16x32xbf16, #tpu.memory_space<vmem>>, vector<16x32xbf16>,
    return
  }
  func.func @transform_0(%arg0: i32) -> (i32, i32) {
    %c0_i32 = arith.constant 0 : i32
    %c0_i32_0 = arith.constant 0 : i32
    return %arg0, %c0_i32 : i32, i32
  }
  func.func @transform_1(%arg0: i32) -> (i32, i32) {
    %c0_i32 = arith.constant 0 : i32
    %c0_i32_0 = arith.constant 0 : i32
    %c0_i32_1 = arith.constant 0 : i32
    return %c0_i32, %c0_i32_0 : i32, i32
  }
  func.func @transform_2(%arg0: i32) -> (i32, i32) {
    %c0_i32 = arith.constant 0 : i32
    %c0_i32_0 = arith.constant 0 : i32
    %c0_i32_1 = arith.constant 0 : i32
    return %c0_i32, %c0_i32_0 : i32, i32
  }
  func.func @transform_3(%arg0: i32) -> (i32, i32) {
    %c0_i32 = arith.constant 0 : i32
    %c0_i32_0 = arith.constant 0 : i32
    %c0_i32_1 = arith.constant 0 : i32
    return %c0_i32, %c0_i32_0 : i32, i32
  }
  func.func @transform_4(%arg0: i32) -> (i32, i32) {
    %c0_i32 = arith.constant 0 : i32
    %c0_i32_0 = arith.constant 0 : i32
    %c0_i32_1 = arith.constant 0 : i32
    return %c0_i32, %c0_i32_0 : i32, i32
  }
  func.func @transform_5(%arg0: i32) -> (i32, i32) {
    %c0_i32 = arith.constant 0 : i32
    %c0_i32_0 = arith.constant 0 : i32
    %c0_i32_1 = arith.constant 0 : i32
    return %c0_i32, %c0_i32_0 : i32, i32
  }
  func.func @transform_6(%arg0: i32) -> (i32, i32) {
    %c0_i32 = arith.constant 0 : i32
    %c0_i32_0 = arith.constant 0 : i32
    %c0_i32_1 = arith.constant 0 : i32
    return %c0_i32, %c0_i32_0 : i32, i32
  }
  func.func @transform_7(%arg0: i32) -> (i32, i32) {
    %c0_i32 = arith.constant 0 : i32
    %c0_i32_0 = arith.constant 0 : i32
    return %arg0, %c0_i32 : i32, i32
  }
}

module attributes {stable_mosaic.version = 11 : i64} {
  func.func @_layernorm_kernel(%arg0: i32, %arg1: memref<16x32xbf16, #tpu.memory_space<vmem>>, %arg2: memref<1x32xf32, #tpu.memory_space<vmem>>, %arg3: memref<1x32xf32, #tpu.memory_space<vmem>>, %arg4: memref<16x32xf32, #tpu.memory_space<vmem>>) attributes {dimension_semantics = [#tpu.dimension_semantics<parallel>], iteration_bounds = array<i64: 1>, scalar_prefetch = 0 : i64, scratch_operands = 0 : i64, tpu.core_type = #tpu.core_type<tc>, window_params = [{transform_indices = @transform_0, window_bounds = array<i64: 16, 32>}, {pipeline_mode = #tpu.pipeline_mode<synchronous>, transform_indices = @transform_1, window_bounds = array<i64: 1, 32>}, {pipeline_mode = #tpu.pipeline_mode<synchronous>, transform_indices = @transform_2, window_bounds = array<i64: 1, 32>}, {transform_indices = @transform_3, window_bounds = array<i64: 16, 32>}]} {
    %c0 = arith.constant 0 : index
    %c0_0 = arith.constant 0 : index
    %0 = vector.load %arg1[%c0, %c0_0] : memref<16x32xbf16, #tpu.memory_space<vmem>>, vector<16x32xbf16>
    %1 = arith.extf %0 : vector<16x32xbf16> to vector<16x32xf32>
    %cst = arith.constant dense<0.000000e+00> : vector<16xf32>
    %2 = vector.multi_reduction <add>, %1, %cst [1] : vector<16x32xf32> to vector<16xf32>
    %3 = vector.shape_cast %2 : vector<16xf32> to vector<16x1xf32>
    %cst_1 = arith.constant 3.200000e+01 : f32
    %4 = vector.broadcast %cst_1 : f32 to vector<16x1xf32>
    %5 = arith.divf %3, %4 : vector<16x1xf32>
    %6 = vector.broadcast %5 : vector<16x1xf32> to vector<16x32xf32>
    %7 = arith.subf %1, %6 : vector<16x32xf32>
    %8 = arith.mulf %7, %7 : vector<16x32xf32>
    %cst_2 = arith.constant dense<0.000000e+00> : vector<16xf32>
    %9 = vector.multi_reduction <add>, %8, %cst_2 [1] : vector<16x32xf32> to vector<16xf32>
    %10 = vector.shape_cast %9 : vector<16xf32> to vector<16x1xf32>
    %cst_3 = arith.constant 3.200000e+01 : f32
    %11 = vector.broadcast %cst_3 : f32 to vector<16x1xf32>
    %12 = arith.divf %10, %11 : vector<16x1xf32>
    %cst_4 = arith.constant 9.99999974E-6 : f32
    %13 = vector.broadcast %cst_4 : f32 to vector<16x1xf32>
    %14 = arith.addf %12, %13 : vector<16x1xf32>
    %15 = math.rsqrt %14 : vector<16x1xf32>
    %16 = vector.broadcast %15 : vector<16x1xf32> to vector<16x32xf32>
    %17 = arith.mulf %7, %16 : vector<16x32xf32>
    %c0_5 = arith.constant 0 : index
    %c0_6 = arith.constant 0 : index
    %18 = vector.load %arg2[%c0_5, %c0_6] : memref<1x32xf32, #tpu.memory_space<vmem>>, vector<1x32xf32>
    %19 = vector.broadcast %18 : vector<1x32xf32> to vector<16x32xf32>
    %20 = arith.mulf %17, %19 : vector<16x32xf32>
    %c0_7 = arith.constant 0 : index
    %c0_8 = arith.constant 0 : index
    %21 = vector.load %arg3[%c0_7, %c0_8] : memref<1x32xf32, #tpu.memory_space<vmem>>, vector<1x32xf32>
    %22 = vector.broadcast %21 : vector<1x32xf32> to vector<16x32xf32>
    %23 = arith.addf %20, %22 : vector<16x32xf32>
    %c0_9 = arith.constant 0 : index
    %c0_10 = arith.constant 0 : index
    %24 = vector.load %arg4[%c0_9, %c0_10] : memref<16x32xf32, #tpu.memory_space<vmem>>, vector<16x32xf32>
    tpu.vector_store %arg4[%c0_9, %c0_10], %23 {strides = array<i32>} : memref<16x32xf32, #tpu.memory_space<vmem>>, vector<16x32xf32>,
    return
  }
  func.func @transform_0(%arg0: i32) -> (i32, i32) {
    %c0_i32 = arith.constant 0 : i32
    %c0_i32_0 = arith.constant 0 : i32
    return %arg0, %c0_i32 : i32, i32
  }
  func.func @transform_1(%arg0: i32) -> (i32, i32) {
    %c0_i32 = arith.constant 0 : i32
    %c0_i32_0 = arith.constant 0 : i32
    %c0_i32_1 = arith.constant 0 : i32
    return %c0_i32, %c0_i32_0 : i32, i32
  }
  func.func @transform_2(%arg0: i32) -> (i32, i32) {
    %c0_i32 = arith.constant 0 : i32
    %c0_i32_0 = arith.constant 0 : i32
    %c0_i32_1 = arith.constant 0 : i32
    return %c0_i32, %c0_i32_0 : i32, i32
  }
  func.func @transform_3(%arg0: i32) -> (i32, i32) {
    %c0_i32 = arith.constant 0 : i32
    %c0_i32_0 = arith.constant 0 : i32
    return %arg0, %c0_i32 : i32, i32
  }
}

</mosaic_0001>

<llo_original>
// kernel: base_encoder_forward.12
$region0: #{base_encoder_forward.12}
  #allocation0 [shape = 'u32[]', space=smem, size = 0x4, offset = 0x4, fixed_abs, tag = 'smem constant byte address 0x4 - core index']
  #allocation1 [shape = 'u32[144,128]{1,0:T(1,128)}', space=vmem, size = 0x12000, scoped, tag = 'internal scratch']
  #allocation2 [shape = 'f32[8,32]{1,0:T(8,128)}', space=vmem, size = 0x1000, scoped, tag = 'scratch operand']
  %s0 = inlined_call_operand.vmem [shape: bf16[216,9], index: 0, kind: input, shape index: {}]
  %s1 = inlined_call_operand.vmem [shape: bf16[9,32], index: 1, kind: input, shape index: {}]
  %s2 = inlined_call_operand.vmem [shape: f32[1,32], index: 2, kind: input, shape index: {}]
  %s3 = inlined_call_operand.vmem [shape: bf16[216,32], index: 3, kind: output, shape index: {}]
  %s4 = sld [smem:[#allocation0]]
  $region53: #{base_encoder_forward.12} parent=0
    _
  %s6 = ssub.s32 1, %s4
  %s7 = scalar_select 0, %s6, %s4
  loop: start=0, step=1, limit=29
  $region2: #{base_encoder_forward.12} parent=0 // loop_pre_header
    _
  $region3: #{base_encoder_forward.12} parent=0 // loop_header
    %s9 = sphi 0, %s13
    %p10 = scmp.ge.s32.totalorder %s9, 29
    %s16 = sphi 0, %s35
    %s17 = sphi 0, %s31
    %s18 = sphi 0, %s27
    %s19 = sphi 0, %s16
    %s20 = sphi 0, %s17
    %s21 = sphi 0, %s18
    %s22 = sphi 0, %s19
    %s23 = sphi 0, %s20
    %s24 = sphi 0, %s21
    %s40 = sphi 0, %s42
    %s43 = sphi 0, %s40
    %s44 = sphi 0, %s43
    %s60 = sphi 0, %s44
    %s68 = sphi 0, %s70
    %s71 = sphi 0, %s68
    %s72 = sphi 0, %s71
    %s88 = sphi 0, %s72
    %s94 = sphi 0, %s96
    %s97 = sphi 0, %s94
    %s98 = sphi 0, %s97
    %s114 = sphi 0, %s98
    %s122 = sphi 0, %s124
    %s125 = sphi 0, %s122
    %s126 = sphi 0, %s125
    %s142 = sphi 0, %s126
  $region4: #{base_encoder_forward.12} parent=0 // loop_header_branch
    %12 = sbr.rel (%p10) target = $region8
  $region5: #{base_encoder_forward.12} parent=0 // loop_body
    %s14 = ssub.s32 %s9, 1
    %s15 = ssub.s32 %s9, 2
    %s25 = sadd.s32 1, %s18
    %p26 = scmp.ge.s32.totalorder %s25, 1
    %s27 = scalar_select %p26, 0, %s25
    %s28 = sadd.s32 1, %s17
    %s29 = scalar_select %p26, %s28, %s17
    %p30 = scmp.ge.s32.totalorder %s29, 1
    %s31 = scalar_select %p30, 0, %s29
    %s32 = sadd.s32 1, %s16
    %s33 = scalar_select %p30, %s32, %s16
    %p34 = scmp.ge.s32.totalorder %s33, 27
    %s35 = scalar_select %p34, 0, %s33
    %s36 = ssub.s32 %s16, %s35
    %s37 = ssub.s32 %s18, %s27
    %s38 = sor.u32 %s36, %s37
    %p39 = scmp.eq.s32.totalorder %s38, 0
    %s41 = sadd.s32 %s40, 1
    %s42 = scalar_select %p39, %s40, %s41
    %p45 = pneg %p39
    %p46 = scmp.eq.s32.totalorder %s9, 26
    %p47 = por %p45, %p46
    %p48 = scmp.ne.s32.totalorder %s40, %s43
    %p49 = scmp.eq.s32.totalorder %s9, 0
    %p50 = por %p48, %p49
    %p51 = scmp.ne.s32.totalorder %s40, %s43
    %p52 = scmp.eq.s32.totalorder %s14, 26
    %p53 = por %p51, %p52
    %p54 = scmp.ne.s32.totalorder %s43, %s44
    %p55 = scmp.eq.s32.totalorder %s14, 0
    %p56 = por %p54, %p55
    %p57 = scmp.ne.s32.totalorder %s43, %s44
    %p58 = scmp.eq.s32.totalorder %s15, 26
    %p59 = por %p57, %p58
    %p61 = scmp.ne.s32.totalorder %s44, %s60
    %p62 = scmp.eq.s32.totalorder %s15, 0
    %p63 = por %p61, %p62
    %s64 = ssub.s32 %s18, %s27
    %s65 = ssub.s32 %s17, %s31
    %s66 = sor.u32 %s64, %s65
    %p67 = scmp.eq.s32.totalorder %s66, 0
    %s69 = sadd.s32 %s68, 1
    %s70 = scalar_select %p67, %s68, %s69
    %p73 = pneg %p67
    %p74 = scmp.eq.s32.totalorder %s9, 26
    %p75 = por %p73, %p74
    %p76 = scmp.ne.s32.totalorder %s68, %s71
    %p77 = scmp.eq.s32.totalorder %s9, 0
    %p78 = por %p76, %p77
    %p79 = scmp.ne.s32.totalorder %s68, %s71
    %p80 = scmp.eq.s32.totalorder %s14, 26
    %p81 = por %p79, %p80
    %p82 = scmp.ne.s32.totalorder %s71, %s72
    %p83 = scmp.eq.s32.totalorder %s14, 0
    %p84 = por %p82, %p83
    %p85 = scmp.ne.s32.totalorder %s71, %s72
    %p86 = scmp.eq.s32.totalorder %s15, 26
    %p87 = por %p85, %p86
    %p89 = scmp.ne.s32.totalorder %s72, %s88
    %p90 = scmp.eq.s32.totalorder %s15, 0
    %p91 = por %p89, %p90
    %s92 = ssub.s32 %s17, %s31
    %p93 = scmp.eq.s32.totalorder %s92, 0
    %s95 = sadd.s32 %s94, 1
    %s96 = scalar_select %p93, %s94, %s95
    %p99 = pneg %p93
    %p100 = scmp.eq.s32.totalorder %s9, 26
    %p101 = por %p99, %p100
    %p102 = scmp.ne.s32.totalorder %s94, %s97
    %p103 = scmp.eq.s32.totalorder %s9, 0
    %p104 = por %p102, %p103
    %p105 = scmp.ne.s32.totalorder %s94, %s97
    %p106 = scmp.eq.s32.totalorder %s14, 26
    %p107 = por %p105, %p106
    %p108 = scmp.ne.s32.totalorder %s97, %s98
    %p109 = scmp.eq.s32.totalorder %s14, 0
    %p110 = por %p108, %p109
    %p111 = scmp.ne.s32.totalorder %s97, %s98
    %p112 = scmp.eq.s32.totalorder %s15, 26
    %p113 = por %p111, %p112
    %p115 = scmp.ne.s32.totalorder %s98, %s114
    %p116 = scmp.eq.s32.totalorder %s15, 0
    %p117 = por %p115, %p116
    %s118 = ssub.s32 %s16, %s35
    %s119 = ssub.s32 %s17, %s31
    %s120 = sor.u32 %s118, %s119
    %p121 = scmp.eq.s32.totalorder %s120, 0
    %s123 = sadd.s32 %s122, 1
    %s124 = scalar_select %p121, %s122, %s123
    %p127 = pneg %p121
    %p128 = scmp.eq.s32.totalorder %s9, 26
    %p129 = por %p127, %p128
    %p130 = scmp.ne.s32.totalorder %s122, %s125
    %p131 = scmp.eq.s32.totalorder %s9, 0
    %p132 = por %p130, %p131
    %p133 = scmp.ne.s32.totalorder %s122, %s125
    %p134 = scmp.eq.s32.totalorder %s14, 26
    %p135 = por %p133, %p134
    %p136 = scmp.ne.s32.totalorder %s125, %s126
    %p137 = scmp.eq.s32.totalorder %s14, 0
    %p138 = por %p136, %p137
    %p139 = scmp.ne.s32.totalorder %s125, %s126
    %p140 = scmp.eq.s32.totalorder %s15, 26
    %p141 = por %p139, %p140
    %p143 = scmp.ne.s32.totalorder %s126, %s142
    %p144 = scmp.eq.s32.totalorder %s15, 0
    %p145 = por %p143, %p144
    %p146 = scmp.le.s32.totalorder 1, %s9
    %p147 = scmp.lt.s32.totalorder %s9, 28
    %p148 = pnand %p146, %p147
    %p149 = pneg %p148
    // Predicated region
    $region9: #{base_encoder_forward.12} parent=5 // pred_check
      _
    $region10: #{base_encoder_forward.12} parent=5 // pred_check_branch
      %151 = sbr.rel (%p148) target = $region12
    $region11: #{base_encoder_forward.12} parent=5 // pred_region
      %s152 = ssub.s32 %s9, 1
      // Predicated region
      $region13: #{base_encoder_forward.12} parent=11 // pred_check
        %p153 = pneg %p84
      $region14: #{base_encoder_forward.12} parent=11 // pred_check_branch
        %155 = sbr.rel (%p153) target = $region16
      $region15: #{base_encoder_forward.12} parent=11 // pred_region
        %s156 = smul.u32 2, %s21
        %p157 = scmp.lt.s32.totalorder %s156, 1
        %s158 = scalar_select %p157, %s156, 1
        %p159 = scmp.lt.s32.totalorder %s20, 0
        %s160 = scalar_select %p159, %s20, 0
        %s161 = sadd.s32 %s160, %s158
        %s162 = smul.addr %s161, 4
        %s163 = scalar_lea.vmem %s1, %s162
        %s164 = smul.u32 2, %s21
      $region16: #{base_encoder_forward.12} parent=11 // pred_fallthru
        _
      // Predicated region
      $region17: #{base_encoder_forward.12} parent=11 // pred_check
        %p165 = pneg %p110
      $region18: #{base_encoder_forward.12} parent=11 // pred_check_branch
        %167 = sbr.rel (%p165) target = $region20
      $region19: #{base_encoder_forward.12} parent=11 // pred_region
        %p168 = scmp.lt.s32.totalorder %s20, 0
        %s169 = scalar_select %p168, %s20, 0
        %s170 = scalar_lea.vmem %s2, %s169
      $region20: #{base_encoder_forward.12} parent=11 // pred_fallthru
        _
    $region12: #{base_encoder_forward.12} parent=5 // pred_fallthru
      _
    %p171 = scmp.lt.s32.totalorder %s9, 27
    // Predicated region
    $region21: #{base_encoder_forward.12} parent=5 // pred_check
      %p172 = pneg %p171
    $region22: #{base_encoder_forward.12} parent=5 // pred_check_branch
      %174 = sbr.rel (%p172) target = $region24
    $region23: #{base_encoder_forward.12} parent=5 // pred_region
      // Predicated region
      $region25: #{base_encoder_forward.12} parent=23 // pred_check
        %p175 = pneg %p50
      $region26: #{base_encoder_forward.12} parent=23 // pred_check_branch
        %177 = sbr.rel (%p175) target = $region28
      $region27: #{base_encoder_forward.12} parent=23 // pred_region
        %p178 = scmp.lt.s32.totalorder %s16, 26
        %s179 = scalar_select %p178, %s16, 26
        %p180 = scmp.lt.s32.totalorder %s18, 0
        %s181 = scalar_select %p180, %s18, 0
        %s182 = sadd.s32 %s181, %s179
        %s183 = smul.addr %s182, 4
        %s184 = scalar_lea.vmem %s0, %s183
      $region28: #{base_encoder_forward.12} parent=23 // pred_fallthru
        _
    $region24: #{base_encoder_forward.12} parent=5 // pred_fallthru
      _
    %p185 = scmp.le.s32.totalorder 1, %s9
    %p186 = scmp.lt.s32.totalorder %s9, 28
    %p187 = pnand %p185, %p186
    %p188 = pneg %p187
    // Predicated region
    $region29: #{base_encoder_forward.12} parent=5 // pred_check
      _
    $region30: #{base_encoder_forward.12} parent=5 // pred_check_branch
      %190 = sbr.rel (%p187) target = $region32
    $region31: #{base_encoder_forward.12} parent=5 // pred_region
      %s191 = ssub.s32 %s9, 1
      %p192 = scmp.lt.s32.totalorder %s19, 26
      %s193 = scalar_select %p192, %s19, 26
      %p194 = scmp.lt.s32.totalorder %s21, 0
      %s195 = scalar_select %p194, %s21, 0
      %s196 = sadd.s32 %s195, %s193
      %s197 = smul.addr %s196, 4
      %s198 = scalar_lea.vmem %s0, %s197
      %p199 = pneg %p56
      %p200 = pneg %p53
      %s201 = smul.u32 2, %s21
      %p202 = scmp.lt.s32.totalorder %s201, 1
      %s203 = scalar_select %p202, %s201, 1
      %p204 = scmp.lt.s32.totalorder %s20, 0
      %s205 = scalar_select %p204, %s20, 0
      %s206 = sadd.s32 %s205, %s203
      %s207 = smul.addr %s206, 4
      %s208 = scalar_lea.vmem %s1, %s207
      %p209 = pneg %p84
      %p210 = pneg %p81
      %p211 = scmp.lt.s32.totalorder %s20, 0
      %s212 = scalar_select %p211, %s20, 0
      %s213 = scalar_lea.vmem %s2, %s212
      %p214 = pneg %p110
      %p215 = pneg %p107
      %p216 = pneg %p138
      %p217 = pneg %p135
      %p218 = scmp.lt.s32.totalorder %s19, 26
      %s219 = scalar_select %p218, %s19, 26
      %p220 = scmp.lt.s32.totalorder %s20, 0
      %s221 = scalar_select %p220, %s20, 0
      %s222 = sadd.s32 %s221, %s219
      %s223 = smul.addr %s222, 4
      %s224 = scalar_lea.vmem %s3, %s223
      %p225 = scmp.lt.s32.totalorder %s19, 26
      %s226 = scalar_select %p225, %s19, 26
      %p227 = scmp.lt.s32.totalorder %s21, 0
      %s228 = scalar_select %p227, %s21, 0
      %s229 = sadd.s32 %s228, %s226
      %s230 = smul.addr %s229, 4
      %s231 = scalar_lea.vmem %s0, %s230
      %s232 = smul.u32 2, %s21
      %p233 = scmp.lt.s32.totalorder %s232, 1
      %s234 = scalar_select %p233, %s232, 1
      %p235 = scmp.lt.s32.totalorder %s20, 0
      %s236 = scalar_select %p235, %s20, 0
      %s237 = sadd.s32 %s236, %s234
      %s238 = smul.addr %s237, 4
      %s239 = scalar_lea.vmem %s1, %s238
      %s240 = smul.u32 2, %s21
      %p241 = scmp.lt.s32.totalorder %s20, 0
      %s242 = scalar_select %p241, %s20, 0
      %s243 = scalar_lea.vmem %s2, %s242
      %p244 = scmp.lt.s32.totalorder %s19, 26
      %s245 = scalar_select %p244, %s19, 26
      %p246 = scmp.lt.s32.totalorder %s20, 0
      %s247 = scalar_select %p246, %s20, 0
      %s248 = sadd.s32 %s247, %s245
      %s249 = smul.addr %s248, 4
      %s250 = scalar_lea.vmem %s3, %s249
      %p252 = scmp.eq.s32.totalorder %s21, 0
      // Predicated region
      $region33: #{base_encoder_forward.12} parent=31 // pred_check
        %p253 = pneg %p252
      $region34: #{base_encoder_forward.12} parent=31 // pred_check_branch
        %255 = sbr.rel (%p253) target = $region36
      $region35: #{base_encoder_forward.12} parent=31 // pred_region
        %vm256 = vcmask 261120
        %257 = vst.msk [vmem:[#allocation2] sm:$0xff] %vm256, 0.0
      $region36: #{base_encoder_forward.12} parent=31 // pred_fallthru
        _
      %v258 = vld [vmem:[#allocation2] sm:$0xff]
      %v259 = vld [vmem:[%s231] sm:$0xf]
      %v260 = vld [vmem:[%s239] sm:$0xf]
      %v261 = vld [vmem:[%s239 + $0x4] sm:$0x1]
      %v264 = vunpack.c.l.b16 %v260
      %v265 = vunpack.c.l.b16 %v261
      %v266 = vpack.c.b16 %v265, %v264
      %vm267 = vcmask 72704
      %v269 = vsel %vm267, %v259, 0
      %vm271 = vcmask 1043456
      %vm272 = vcmask 1044480
      %v273 = vsel %vm271, 4294967295, 65535
      %v274 = vsel %vm272, %v273, 0
      %v276 = vand.u32 %v266, %v274
      %278 = vmatprep.subr.bf16.mxu0 0
      %279 = vmatpush1.bf16.msra.mxu0 %v276
      %280 = vmatprep.subr.bf16.mxu0 0
      %281 = vmatpush1.bf16.msra.mxu0 0
      %282 = vmatprep.subr.bf16.mxu0 0
      %283 = vmatpush1.bf16.msra.mxu0 0
      %284 = vmatprep.subr.bf16.mxu0 0
      %285 = vmatpush1.bf16.msra.mxu0 0
      %286 = vmatprep.subr.bf16.mxu0 0
      %287 = vmatpush1.bf16.msra.mxu0 0
      %288 = vmatprep.subr.bf16.mxu0 0
      %289 = vmatpush1.bf16.msra.mxu0 0
      %290 = vmatprep.subr.bf16.mxu0 0
      %291 = vmatpush1.bf16.msra.mxu0 0
      %292 = vmatprep.subr.bf16.mxu0 0
      %293 = vmatpush1.bf16.msra.mxu0 0
      %294 = vmatprep.subr.bf16.mxu0 0
      %295 = vmatpush1.bf16.msra.mxu0 0
      %296 = vmatprep.subr.bf16.mxu0 0
      %297 = vmatpush1.bf16.msra.mxu0 0
      %298 = vmatprep.subr.bf16.mxu0 0
      %299 = vmatpush1.bf16.msra.mxu0 0
      %300 = vmatprep.subr.bf16.mxu0 0
      %301 = vmatpush1.bf16.msra.mxu0 0
      %302 = vmatprep.subr.bf16.mxu0 0
      %303 = vmatpush1.bf16.msra.mxu0 0
      %304 = vmatprep.subr.bf16.mxu0 0
      %305 = vmatpush1.bf16.msra.mxu0 0
      %306 = vmatprep.subr.bf16.mxu0 0
      %307 = vmatpush1.bf16.msra.mxu0 0
      %308 = vmatprep.subr.bf16.mxu0 0
      %309 = vmatpush1.bf16.msra.mxu0 0
      %310 = vmatprep.mubr.bf16.mxu0 0
      %311 = vmatmul.mubr.bf16.gmra.mrb[0].mxu0 %v269
      %v312 = vpop.f32.mrb[0].mxu0
      %v313 = vadd.f32 0.0, %v312
      %v314 = vpop.f32.mrb[0].mxu0
      %v315 = vpop.f32.mrb[0].mxu0
      %v316 = vpop.f32.mrb[0].mxu0
      %317 = vdwg.mxu0
      %v318 = vadd.f32 %v258, %v313
      %vm319 = vcmask 261120
      %320 = vst.msk [vmem:[#allocation2] sm:$0xff] %vm319, %v318
      // Predicated region
      $region37: #{base_encoder_forward.12} parent=31 // pred_check
        %p321 = pneg %p252
      $region38: #{base_encoder_forward.12} parent=31 // pred_check_branch
        %323 = sbr.rel (%p321) target = $region40
      $region39: #{base_encoder_forward.12} parent=31 // pred_region
        %v324 = vld [vmem:[#allocation2] sm:$0xff]
        %v325 = vld [vmem:[%s243] sm:$0x1]
        %v327 = vlaneseq
        %v328 = vshrl.u32 %v327, 7
        %v329 = vsub.s32 0, %v328
        %v330 = vrot.slane %v325, %v329
        %v332 = vadd.f32 %v324, %v330
        %v333 = vmax.f32 %v332, 0.0
        %v334 = vpack.c.bf16 %v333, %v333
        %vm335 = vcmask 257024
        %336 = vst.msk [vmem:[%s250] sm:$0xf] %vm335, %v334
      $region40: #{base_encoder_forward.12} parent=31 // pred_fallthru
        _
      %p337 = scmp.lt.s32.totalorder %s19, 26
      %s338 = scalar_select %p337, %s19, 26
      %p339 = scmp.lt.s32.totalorder %s20, 0
      %s340 = scalar_select %p339, %s20, 0
      %s341 = sadd.s32 %s340, %s338
      %s342 = smul.addr %s341, 4
      %s343 = scalar_lea.vmem %s3, %s342
      // Predicated region
      $region41: #{base_encoder_forward.12} parent=31 // pred_check
        %p344 = pneg %p135
      $region42: #{base_encoder_forward.12} parent=31 // pred_check_branch
        %346 = sbr.rel (%p344) target = $region44
      $region43: #{base_encoder_forward.12} parent=31 // pred_region
        _
      $region44: #{base_encoder_forward.12} parent=31 // pred_fallthru
        _
    $region32: #{base_encoder_forward.12} parent=5 // pred_fallthru
      _
    %p347 = scmp.le.s32.totalorder 2, %s9
    // Predicated region
    $region45: #{base_encoder_forward.12} parent=5 // pred_check
      %p348 = pneg %p347
    $region46: #{base_encoder_forward.12} parent=5 // pred_check_branch
      %350 = sbr.rel (%p348) target = $region48
    $region47: #{base_encoder_forward.12} parent=5 // pred_region
      %s351 = ssub.s32 %s9, 2
      // Predicated region
      $region49: #{base_encoder_forward.12} parent=47 // pred_check
        %p352 = pneg %p141
      $region50: #{base_encoder_forward.12} parent=47 // pred_check_branch
        %354 = sbr.rel (%p352) target = $region52
      $region51: #{base_encoder_forward.12} parent=47 // pred_region
        %p355 = scmp.lt.s32.totalorder %s22, 26
        %s356 = scalar_select %p355, %s22, 26
        %p357 = scmp.lt.s32.totalorder %s23, 0
        %s358 = scalar_select %p357, %s23, 0
        %s359 = sadd.s32 %s358, %s356
        %s360 = smul.addr %s359, 4
        %s361 = scalar_lea.vmem %s3, %s360
      $region52: #{base_encoder_forward.12} parent=47 // pred_fallthru
        _
    $region48: #{base_encoder_forward.12} parent=5 // pred_fallthru
      _
  $region6: #{base_encoder_forward.12} parent=0 // loop_footer
    %s13 = sadd.s32 1, %s9
  $region7: #{base_encoder_forward.12} parent=0 // loop_footer_branch
    %8 = sbr.rel target = $region3
  $region8: #{base_encoder_forward.12} parent=0 // loop_exit
    _

// kernel: base_encoder_forward.13
$region0: #{base_encoder_forward.13}
  #allocation0 [shape = 'u32[]', space=smem, size = 0x4, offset = 0x4, fixed_abs, tag = 'smem constant byte address 0x4 - core index']
  #allocation1 [shape = 'u32[144,128]{1,0:T(1,128)}', space=vmem, size = 0x12000, scoped, tag = 'internal scratch']
  #allocation2 [shape = 'f32[16,32]{1,0:T(8,128)}', space=vmem, size = 0x2000, scoped, tag = 'scratch operand']
  %s0 = inlined_call_operand.vmem [shape: bf16[48,288], index: 0, kind: input, shape index: {}]
  %s1 = inlined_call_operand.vmem [shape: bf16[288,32], index: 1, kind: input, shape index: {}]
  %s2 = inlined_call_operand.vmem [shape: f32[1,32], index: 2, kind: input, shape index: {}]
  %s3 = inlined_call_operand.vmem [shape: bf16[48,32], index: 3, kind: output, shape index: {}]
  %s4 = sld [smem:[#allocation0]]
  $region53: #{base_encoder_forward.13} parent=0
    _
  %s6 = ssub.s32 1, %s4
  %s7 = scalar_select 0, %s6, %s4
  loop: start=0, step=1, limit=5
  $region2: #{base_encoder_forward.13} parent=0 // loop_pre_header
    _
  $region3: #{base_encoder_forward.13} parent=0 // loop_header
    %s9 = sphi 0, %s13
    %p10 = scmp.ge.s32.totalorder %s9, 5
    %s16 = sphi 0, %s35
    %s17 = sphi 0, %s31
    %s18 = sphi 0, %s27
    %s19 = sphi 0, %s16
    %s20 = sphi 0, %s17
    %s21 = sphi 0, %s18
    %s22 = sphi 0, %s19
    %s23 = sphi 0, %s20
    %s24 = sphi 0, %s21
    %s40 = sphi 0, %s42
    %s43 = sphi 0, %s40
    %s44 = sphi 0, %s43
    %s60 = sphi 0, %s44
    %s68 = sphi 0, %s70
    %s71 = sphi 0, %s68
    %s72 = sphi 0, %s71
    %s88 = sphi 0, %s72
    %s94 = sphi 0, %s96
    %s97 = sphi 0, %s94
    %s98 = sphi 0, %s97
    %s114 = sphi 0, %s98
    %s122 = sphi 0, %s124
    %s125 = sphi 0, %s122
    %s126 = sphi 0, %s125
    %s142 = sphi 0, %s126
  $region4: #{base_encoder_forward.13} parent=0 // loop_header_branch
    %12 = sbr.rel (%p10) target = $region8
  $region5: #{base_encoder_forward.13} parent=0 // loop_body
    %s14 = ssub.s32 %s9, 1
    %s15 = ssub.s32 %s9, 2
    %s25 = sadd.s32 1, %s18
    %p26 = scmp.ge.s32.totalorder %s25, 1
    %s27 = scalar_select %p26, 0, %s25
    %s28 = sadd.s32 1, %s17
    %s29 = scalar_select %p26, %s28, %s17
    %p30 = scmp.ge.s32.totalorder %s29, 1
    %s31 = scalar_select %p30, 0, %s29
    %s32 = sadd.s32 1, %s16
    %s33 = scalar_select %p30, %s32, %s16
    %p34 = scmp.ge.s32.totalorder %s33, 3
    %s35 = scalar_select %p34, 0, %s33
    %s36 = ssub.s32 %s16, %s35
    %s37 = ssub.s32 %s18, %s27
    %s38 = sor.u32 %s36, %s37
    %p39 = scmp.eq.s32.totalorder %s38, 0
    %s41 = sadd.s32 %s40, 1
    %s42 = scalar_select %p39, %s40, %s41
    %p45 = pneg %p39
    %p46 = scmp.eq.s32.totalorder %s9, 2
    %p47 = por %p45, %p46
    %p48 = scmp.ne.s32.totalorder %s40, %s43
    %p49 = scmp.eq.s32.totalorder %s9, 0
    %p50 = por %p48, %p49
    %p51 = scmp.ne.s32.totalorder %s40, %s43
    %p52 = scmp.eq.s32.totalorder %s14, 2
    %p53 = por %p51, %p52
    %p54 = scmp.ne.s32.totalorder %s43, %s44
    %p55 = scmp.eq.s32.totalorder %s14, 0
    %p56 = por %p54, %p55
    %p57 = scmp.ne.s32.totalorder %s43, %s44
    %p58 = scmp.eq.s32.totalorder %s15, 2
    %p59 = por %p57, %p58
    %p61 = scmp.ne.s32.totalorder %s44, %s60
    %p62 = scmp.eq.s32.totalorder %s15, 0
    %p63 = por %p61, %p62
    %s64 = ssub.s32 %s18, %s27
    %s65 = ssub.s32 %s17, %s31
    %s66 = sor.u32 %s64, %s65
    %p67 = scmp.eq.s32.totalorder %s66, 0
    %s69 = sadd.s32 %s68, 1
    %s70 = scalar_select %p67, %s68, %s69
    %p73 = pneg %p67
    %p74 = scmp.eq.s32.totalorder %s9, 2
    %p75 = por %p73, %p74
    %p76 = scmp.ne.s32.totalorder %s68, %s71
    %p77 = scmp.eq.s32.totalorder %s9, 0
    %p78 = por %p76, %p77
    %p79 = scmp.ne.s32.totalorder %s68, %s71
    %p80 = scmp.eq.s32.totalorder %s14, 2
    %p81 = por %p79, %p80
    %p82 = scmp.ne.s32.totalorder %s71, %s72
    %p83 = scmp.eq.s32.totalorder %s14, 0
    %p84 = por %p82, %p83
    %p85 = scmp.ne.s32.totalorder %s71, %s72
    %p86 = scmp.eq.s32.totalorder %s15, 2
    %p87 = por %p85, %p86
    %p89 = scmp.ne.s32.totalorder %s72, %s88
    %p90 = scmp.eq.s32.totalorder %s15, 0
    %p91 = por %p89, %p90
    %s92 = ssub.s32 %s17, %s31
    %p93 = scmp.eq.s32.totalorder %s92, 0
    %s95 = sadd.s32 %s94, 1
    %s96 = scalar_select %p93, %s94, %s95
    %p99 = pneg %p93
    %p100 = scmp.eq.s32.totalorder %s9, 2
    %p101 = por %p99, %p100
    %p102 = scmp.ne.s32.totalorder %s94, %s97
    %p103 = scmp.eq.s32.totalorder %s9, 0
    %p104 = por %p102, %p103
    %p105 = scmp.ne.s32.totalorder %s94, %s97
    %p106 = scmp.eq.s32.totalorder %s14, 2
    %p107 = por %p105, %p106
    %p108 = scmp.ne.s32.totalorder %s97, %s98
    %p109 = scmp.eq.s32.totalorder %s14, 0
    %p110 = por %p108, %p109
    %p111 = scmp.ne.s32.totalorder %s97, %s98
    %p112 = scmp.eq.s32.totalorder %s15, 2
    %p113 = por %p111, %p112
    %p115 = scmp.ne.s32.totalorder %s98, %s114
    %p116 = scmp.eq.s32.totalorder %s15, 0
    %p117 = por %p115, %p116
    %s118 = ssub.s32 %s16, %s35
    %s119 = ssub.s32 %s17, %s31
    %s120 = sor.u32 %s118, %s119
    %p121 = scmp.eq.s32.totalorder %s120, 0
    %s123 = sadd.s32 %s122, 1
    %s124 = scalar_select %p121, %s122, %s123
    %p127 = pneg %p121
    %p128 = scmp.eq.s32.totalorder %s9, 2
    %p129 = por %p127, %p128
    %p130 = scmp.ne.s32.totalorder %s122, %s125
    %p131 = scmp.eq.s32.totalorder %s9, 0
    %p132 = por %p130, %p131
    %p133 = scmp.ne.s32.totalorder %s122, %s125
    %p134 = scmp.eq.s32.totalorder %s14, 2
    %p135 = por %p133, %p134
    %p136 = scmp.ne.s32.totalorder %s125, %s126
    %p137 = scmp.eq.s32.totalorder %s14, 0
    %p138 = por %p136, %p137
    %p139 = scmp.ne.s32.totalorder %s125, %s126
    %p140 = scmp.eq.s32.totalorder %s15, 2
    %p141 = por %p139, %p140
    %p143 = scmp.ne.s32.totalorder %s126, %s142
    %p144 = scmp.eq.s32.totalorder %s15, 0
    %p145 = por %p143, %p144
    %p146 = scmp.le.s32.totalorder 1, %s9
    %p147 = scmp.lt.s32.totalorder %s9, 4
    %p148 = pnand %p146, %p147
    %p149 = pneg %p148
    // Predicated region
    $region9: #{base_encoder_forward.13} parent=5 // pred_check
      _
    $region10: #{base_encoder_forward.13} parent=5 // pred_check_branch
      %151 = sbr.rel (%p148) target = $region12
    $region11: #{base_encoder_forward.13} parent=5 // pred_region
      %s152 = ssub.s32 %s9, 1
      // Predicated region
      $region13: #{base_encoder_forward.13} parent=11 // pred_check
        %p153 = pneg %p84
      $region14: #{base_encoder_forward.13} parent=11 // pred_check_branch
        %155 = sbr.rel (%p153) target = $region16
      $region15: #{base_encoder_forward.13} parent=11 // pred_region
        %s156 = smul.u32 36, %s21
        %p157 = scmp.lt.s32.totalorder %s156, 35
        %s158 = scalar_select %p157, %s156, 35
        %p159 = scmp.lt.s32.totalorder %s20, 0
        %s160 = scalar_select %p159, %s20, 0
        %s161 = sadd.s32 %s160, %s158
        %s162 = smul.addr %s161, 4
        %s163 = scalar_lea.vmem %s1, %s162
        %s164 = smul.u32 36, %s21
      $region16: #{base_encoder_forward.13} parent=11 // pred_fallthru
        _
      // Predicated region
      $region17: #{base_encoder_forward.13} parent=11 // pred_check
        %p165 = pneg %p110
      $region18: #{base_encoder_forward.13} parent=11 // pred_check_branch
        %167 = sbr.rel (%p165) target = $region20
      $region19: #{base_encoder_forward.13} parent=11 // pred_region
        %p168 = scmp.lt.s32.totalorder %s20, 0
        %s169 = scalar_select %p168, %s20, 0
        %s170 = scalar_lea.vmem %s2, %s169
      $region20: #{base_encoder_forward.13} parent=11 // pred_fallthru
        _
    $region12: #{base_encoder_forward.13} parent=5 // pred_fallthru
      _
    %p171 = scmp.lt.s32.totalorder %s9, 3
    // Predicated region
    $region21: #{base_encoder_forward.13} parent=5 // pred_check
      %p172 = pneg %p171
    $region22: #{base_encoder_forward.13} parent=5 // pred_check_branch
      %174 = sbr.rel (%p172) target = $region24
    $region23: #{base_encoder_forward.13} parent=5 // pred_region
      // Predicated region
      $region25: #{base_encoder_forward.13} parent=23 // pred_check
        %p175 = pneg %p50
      $region26: #{base_encoder_forward.13} parent=23 // pred_check_branch
        %177 = sbr.rel (%p175) target = $region28
      $region27: #{base_encoder_forward.13} parent=23 // pred_region
        %s178 = smul.u32 2, %s16
        %s179 = smul.u32 3, %s18
        %p180 = scmp.lt.s32.totalorder %s178, 5
        %s181 = scalar_select %p180, %s178, 5
        %p182 = scmp.lt.s32.totalorder %s179, 2
        %s183 = scalar_select %p182, %s179, 2
        %s184 = smul.addr %s181, 3
        %s185 = sadd.s32 %s183, %s184
        %s186 = smul.addr %s185, 4
        %s187 = scalar_lea.vmem %s0, %s186
        %s188 = smul.u32 2, %s16
        %s189 = smul.u32 3, %s18
      $region28: #{base_encoder_forward.13} parent=23 // pred_fallthru
        _
    $region24: #{base_encoder_forward.13} parent=5 // pred_fallthru
      _
    %p190 = scmp.le.s32.totalorder 1, %s9
    %p191 = scmp.lt.s32.totalorder %s9, 4
    %p192 = pnand %p190, %p191
    %p193 = pneg %p192
    // Predicated region
    $region29: #{base_encoder_forward.13} parent=5 // pred_check
      _
    $region30: #{base_encoder_forward.13} parent=5 // pred_check_branch
      %195 = sbr.rel (%p192) target = $region32
    $region31: #{base_encoder_forward.13} parent=5 // pred_region
      %s196 = ssub.s32 %s9, 1
      %s197 = smul.u32 2, %s19
      %s198 = smul.u32 3, %s21
      %p199 = scmp.lt.s32.totalorder %s197, 5
      %s200 = scalar_select %p199, %s197, 5
      %p201 = scmp.lt.s32.totalorder %s198, 2
      %s202 = scalar_select %p201, %s198, 2
      %s203 = smul.addr %s200, 3
      %s204 = sadd.s32 %s202, %s203
      %s205 = smul.addr %s204, 4
      %s206 = scalar_lea.vmem %s0, %s205
      %p207 = pneg %p56
      %p208 = pneg %p53
      %s209 = smul.u32 36, %s21
      %p210 = scmp.lt.s32.totalorder %s209, 35
      %s211 = scalar_select %p210, %s209, 35
      %p212 = scmp.lt.s32.totalorder %s20, 0
      %s213 = scalar_select %p212, %s20, 0
      %s214 = sadd.s32 %s213, %s211
      %s215 = smul.addr %s214, 4
      %s216 = scalar_lea.vmem %s1, %s215
      %p217 = pneg %p84
      %p218 = pneg %p81
      %p219 = scmp.lt.s32.totalorder %s20, 0
      %s220 = scalar_select %p219, %s20, 0
      %s221 = scalar_lea.vmem %s2, %s220
      %p222 = pneg %p110
      %p223 = pneg %p107
      %p224 = pneg %p138
      %p225 = pneg %p135
      %s226 = smul.u32 2, %s19
      %p227 = scmp.lt.s32.totalorder %s226, 5
      %s228 = scalar_select %p227, %s226, 5
      %p229 = scmp.lt.s32.totalorder %s20, 0
      %s230 = scalar_select %p229, %s20, 0
      %s231 = sadd.s32 %s230, %s228
      %s232 = smul.addr %s231, 4
      %s233 = scalar_lea.vmem %s3, %s232
      %s234 = smul.u32 2, %s19
      %s235 = smul.u32 3, %s21
      %p236 = scmp.lt.s32.totalorder %s234, 5
      %s237 = scalar_select %p236, %s234, 5
      %p238 = scmp.lt.s32.totalorder %s235, 2
      %s239 = scalar_select %p238, %s235, 2
      %s240 = smul.addr %s237, 3
      %s241 = sadd.s32 %s239, %s240
      %s242 = smul.addr %s241, 4
      %s243 = scalar_lea.vmem %s0, %s242
      %s244 = smul.u32 2, %s19
      %s245 = smul.u32 3, %s21
      %s246 = smul.u32 36, %s21
      %p247 = scmp.lt.s32.totalorder %s246, 35
      %s248 = scalar_select %p247, %s246, 35
      %p249 = scmp.lt.s32.totalorder %s20, 0
      %s250 = scalar_select %p249, %s20, 0
      %s251 = sadd.s32 %s250, %s248
      %s252 = smul.addr %s251, 4
      %s253 = scalar_lea.vmem %s1, %s252
      %s254 = smul.u32 36, %s21
      %p255 = scmp.lt.s32.totalorder %s20, 0
      %s256 = scalar_select %p255, %s20, 0
      %s257 = scalar_lea.vmem %s2, %s256
      %s258 = smul.u32 2, %s19
      %p259 = scmp.lt.s32.totalorder %s258, 5
      %s260 = scalar_select %p259, %s258, 5
      %p261 = scmp.lt.s32.totalorder %s20, 0
      %s262 = scalar_select %p261, %s20, 0
      %s263 = sadd.s32 %s262, %s260
      %s264 = smul.addr %s263, 4
      %s265 = scalar_lea.vmem %s3, %s264
      %s266 = smul.u32 2, %s19
      %p268 = scmp.eq.s32.totalorder %s21, 0
      // Predicated region
      $region33: #{base_encoder_forward.13} parent=31 // pred_check
        %p269 = pneg %p268
      $region34: #{base_encoder_forward.13} parent=31 // pred_check_branch
        %271 = sbr.rel (%p269) target = $region36
      $region35: #{base_encoder_forward.13} parent=31 // pred_region
        %vm272 = vcmask 261120
        %273 = vst.msk [vmem:[#allocation2] sm:$0xff] %vm272, 0.0
        %274 = vst.msk [vmem:[#allocation2 + $0x8] sm:$0xff] %vm272, 0.0
      $region36: #{base_encoder_forward.13} parent=31 // pred_fallthru
        _
      %v275 = vld [vmem:[#allocation2] sm:$0xff]
      %v276 = vld [vmem:[#allocation2 + $0x8] sm:$0xff]
      %v277 = vld [vmem:[%s243] sm:$0xff]
      %v278 = vld [vmem:[%s243 + $0x8] sm:$0xf]
      %v279 = vld [vmem:[%s243 + $0xc] sm:$0xff]
      %v280 = vld [vmem:[%s243 + $0x14] sm:$0xf]
      %v281 = vld [vmem:[%s253] sm:$0xf]
      %v282 = vld [vmem:[%s253 + $0x4] sm:$0xf]
      %v283 = vld [vmem:[%s253 + $0x8] sm:$0xf]
      %v284 = vld [vmem:[%s253 + $0xc] sm:$0xf]
      %v285 = vld [vmem:[%s253 + $0x10] sm:$0xf]
      %v286 = vld [vmem:[%s253 + $0x14] sm:$0xf]
      %v287 = vld [vmem:[%s253 + $0x18] sm:$0xf]
      %v288 = vld [vmem:[%s253 + $0x1c] sm:$0xf]
      %v289 = vld [vmem:[%s253 + $0x20] sm:$0xf]
      %v290 = vld [vmem:[%s253 + $0x24] sm:$0xf]
      %v291 = vld [vmem:[%s253 + $0x28] sm:$0xf]
      %v292 = vld [vmem:[%s253 + $0x2c] sm:$0xf]
      %v293 = vld [vmem:[%s253 + $0x30] sm:$0xf]
      %v294 = vld [vmem:[%s253 + $0x34] sm:$0xf]
      %v295 = vld [vmem:[%s253 + $0x38] sm:$0xf]
      %v296 = vld [vmem:[%s253 + $0x3c] sm:$0xf]
      %v297 = vld [vmem:[%s253 + $0x40] sm:$0xf]
      %v298 = vld [vmem:[%s253 + $0x44] sm:$0xf]
      %v299 = vld [vmem:[%s253 + $0x48] sm:$0xf]
      %v300 = vld [vmem:[%s253 + $0x4c] sm:$0xf]
      %v301 = vld [vmem:[%s253 + $0x50] sm:$0xf]
      %v302 = vld [vmem:[%s253 + $0x54] sm:$0xf]
      %v303 = vld [vmem:[%s253 + $0x58] sm:$0xf]
      %v304 = vld [vmem:[%s253 + $0x5c] sm:$0xf]
      %v305 = vld [vmem:[%s253 + $0x60] sm:$0xf]
      %v306 = vld [vmem:[%s253 + $0x64] sm:$0xf]
      %v307 = vld [vmem:[%s253 + $0x68] sm:$0xf]
      %v308 = vld [vmem:[%s253 + $0x6c] sm:$0xf]
      %v309 = vld [vmem:[%s253 + $0x70] sm:$0xf]
      %v310 = vld [vmem:[%s253 + $0x74] sm:$0xf]
      %v311 = vld [vmem:[%s253 + $0x78] sm:$0xf]
      %v312 = vld [vmem:[%s253 + $0x7c] sm:$0xf]
      %v313 = vld [vmem:[%s253 + $0x80] sm:$0xf]
      %v314 = vld [vmem:[%s253 + $0x84] sm:$0xf]
      %v315 = vld [vmem:[%s253 + $0x88] sm:$0xf]
      %v316 = vld [vmem:[%s253 + $0x8c] sm:$0xf]
      %v321 = vunpack.c.l.b16 %v277
      %v322 = vunpack.c.h.b16 %v277
      %v323 = vunpack.c.l.b16 %v278
      %v324 = vunpack.c.l.b16 %v279
      %v325 = vunpack.c.h.b16 %v279
      %v326 = vunpack.c.l.b16 %v280
      %v327 = vpack.c.b16 %v324, %v321
      %v328 = vpack.c.b16 %v325, %v322
      %v329 = vpack.c.b16 %v326, %v323
      %v368 = vunpack.c.l.b16 %v281
      %v369 = vunpack.c.l.b16 %v282
      %v370 = vunpack.c.l.b16 %v283
      %v371 = vunpack.c.l.b16 %v284
      %v372 = vunpack.c.l.b16 %v285
      %v373 = vunpack.c.l.b16 %v286
      %v374 = vunpack.c.l.b16 %v287
      %v375 = vunpack.c.l.b16 %v288
      %v376 = vunpack.c.l.b16 %v289
      %v377 = vunpack.c.l.b16 %v290
      %v378 = vunpack.c.l.b16 %v291
      %v379 = vunpack.c.l.b16 %v292
      %v380 = vunpack.c.l.b16 %v293
      %v381 = vunpack.c.l.b16 %v294
      %v382 = vunpack.c.l.b16 %v295
      %v383 = vunpack.c.l.b16 %v296
      %v384 = vunpack.c.l.b16 %v297
      %v385 = vunpack.c.l.b16 %v298
      %v386 = vunpack.c.l.b16 %v299
      %v387 = vunpack.c.l.b16 %v300
      %v388 = vunpack.c.l.b16 %v301
      %v389 = vunpack.c.l.b16 %v302
      %v390 = vunpack.c.l.b16 %v303
      %v391 = vunpack.c.l.b16 %v304
      %v392 = vunpack.c.l.b16 %v305
      %v393 = vunpack.c.l.b16 %v306
      %v394 = vunpack.c.l.b16 %v307
      %v395 = vunpack.c.l.b16 %v308
      %v396 = vunpack.c.l.b16 %v309
      %v397 = vunpack.c.l.b16 %v310
      %v398 = vunpack.c.l.b16 %v311
      %v399 = vunpack.c.l.b16 %v312
      %v400 = vunpack.c.l.b16 %v313
      %v401 = vunpack.c.l.b16 %v314
      %v402 = vunpack.c.l.b16 %v315
      %v403 = vunpack.c.l.b16 %v316
      %v404 = vpack.c.b16 %v369, %v368
      %v405 = vpack.c.b16 %v371, %v370
      %v406 = vpack.c.b16 %v373, %v372
      %v407 = vpack.c.b16 %v375, %v374
      %v408 = vpack.c.b16 %v377, %v376
      %v409 = vpack.c.b16 %v379, %v378
      %v410 = vpack.c.b16 %v381, %v380
      %v411 = vpack.c.b16 %v383, %v382
      %v412 = vpack.c.b16 %v385, %v384
      %v413 = vpack.c.b16 %v387, %v386
      %v414 = vpack.c.b16 %v389, %v388
      %v415 = vpack.c.b16 %v391, %v390
      %v416 = vpack.c.b16 %v393, %v392
      %v417 = vpack.c.b16 %v395, %v394
      %v418 = vpack.c.b16 %v397, %v396
      %v419 = vpack.c.b16 %v399, %v398
      %v420 = vpack.c.b16 %v401, %v400
      %v421 = vpack.c.b16 %v403, %v402
      %vm440 = vcmask 261120
      %v442 = vsel %vm440, %v329, 0
      %444 = vmatprep.subr.bf16.mxu0 0
      %445 = vmatpush1.bf16.msra.mxu0 %v404
      %446 = vmatprep.subr.bf16.mxu0 0
      %447 = vmatpush1.bf16.msra.mxu0 %v405
      %448 = vmatprep.subr.bf16.mxu0 0
      %449 = vmatpush1.bf16.msra.mxu0 %v406
      %450 = vmatprep.subr.bf16.mxu0 0
      %451 = vmatpush1.bf16.msra.mxu0 %v407
      %452 = vmatprep.subr.bf16.mxu0 0
      %453 = vmatpush1.bf16.msra.mxu0 %v408
      %454 = vmatprep.subr.bf16.mxu0 0
      %455 = vmatpush1.bf16.msra.mxu0 %v409
      %456 = vmatprep.subr.bf16.mxu0 0
      %457 = vmatpush1.bf16.msra.mxu0 %v410
      %458 = vmatprep.subr.bf16.mxu0 0
      %459 = vmatpush1.bf16.msra.mxu0 %v411
      %460 = vmatprep.subr.bf16.mxu0 0
      %461 = vmatpush1.bf16.msra.mxu0 %v412
      %462 = vmatprep.subr.bf16.mxu0 0
      %463 = vmatpush1.bf16.msra.mxu0 %v413
      %464 = vmatprep.subr.bf16.mxu0 0
      %465 = vmatpush1.bf16.msra.mxu0 %v414
      %466 = vmatprep.subr.bf16.mxu0 0
      %467 = vmatpush1.bf16.msra.mxu0 %v415
      %468 = vmatprep.subr.bf16.mxu0 0
      %469 = vmatpush1.bf16.msra.mxu0 %v416
      %470 = vmatprep.subr.bf16.mxu0 0
      %471 = vmatpush1.bf16.msra.mxu0 %v417
      %472 = vmatprep.subr.bf16.mxu0 0
      %473 = vmatpush1.bf16.msra.mxu0 %v418
      %474 = vmatprep.subr.bf16.mxu0 0
      %475 = vmatpush1.bf16.msra.mxu0 %v419
      %476 = vmatprep.mubr.bf16.mxu0 %v328
      %477 = vmatmul.mubr.bf16.gmra.mrb[0].mxu0 %v327
      %v478 = vpop.f32.mrb[0].mxu0
      %v479 = vadd.f32 0.0, %v478
      %v480 = vpop.f32.mrb[0].mxu0
      %v481 = vpop.f32.mrb[0].mxu0
      %v482 = vadd.f32 0.0, %v481
      %v483 = vpop.f32.mrb[0].mxu0
      %484 = vdwg.mxu0
      %485 = vmatprep.subr.bf16.mxu0 0
      %486 = vmatpush1.bf16.msra.mxu0 %v420
      %487 = vmatprep.subr.bf16.mxu0 0
      %488 = vmatpush1.bf16.msra.mxu0 %v421
      %489 = vmatprep.subr.bf16.mxu0 0
      %490 = vmatpush1.bf16.msra.mxu0 0
      %491 = vmatprep.subr.bf16.mxu0 0
      %492 = vmatpush1.bf16.msra.mxu0 0
      %493 = vmatprep.subr.bf16.mxu0 0
      %494 = vmatpush1.bf16.msra.mxu0 0
      %495 = vmatprep.subr.bf16.mxu0 0
      %496 = vmatpush1.bf16.msra.mxu0 0
      %497 = vmatprep.subr.bf16.mxu0 0
      %498 = vmatpush1.bf16.msra.mxu0 0
      %499 = vmatprep.subr.bf16.mxu0 0
      %500 = vmatpush1.bf16.msra.mxu0 0
      %501 = vmatprep.subr.bf16.mxu0 0
      %502 = vmatpush1.bf16.msra.mxu0 0
      %503 = vmatprep.subr.bf16.mxu0 0
      %504 = vmatpush1.bf16.msra.mxu0 0
      %505 = vmatprep.subr.bf16.mxu0 0
      %506 = vmatpush1.bf16.msra.mxu0 0
      %507 = vmatprep.subr.bf16.mxu0 0
      %508 = vmatpush1.bf16.msra.mxu0 0
      %509 = vmatprep.subr.bf16.mxu0 0
      %510 = vmatpush1.bf16.msra.mxu0 0
      %511 = vmatprep.subr.bf16.mxu0 0
      %512 = vmatpush1.bf16.msra.mxu0 0
      %513 = vmatprep.subr.bf16.mxu0 0
      %514 = vmatpush1.bf16.msra.mxu0 0
      %515 = vmatprep.subr.bf16.mxu0 0
      %516 = vmatpush1.bf16.msra.mxu0 0
      %517 = vmatprep.mubr.bf16.mxu0 0
      %518 = vmatmul.mubr.bf16.gmra.mrb[0].mxu0 %v442
      %v519 = vpop.f32.mrb[0].mxu0
      %v520 = vadd.f32 %v479, %v519
      %v521 = vpop.f32.mrb[0].mxu0
      %v522 = vpop.f32.mrb[0].mxu0
      %v523 = vadd.f32 %v482, %v522
      %v524 = vpop.f32.mrb[0].mxu0
      %525 = vdwg.mxu0
      %v526 = vadd.f32 %v275, %v520
      %v527 = vadd.f32 %v276, %v523
      %528 = vst.msk [vmem:[#allocation2] sm:$0xff] %vm440, %v526
      %529 = vst.msk [vmem:[#allocation2 + $0x8] sm:$0xff] %vm440, %v527
      // Predicated region
      $region37: #{base_encoder_forward.13} parent=31 // pred_check
        %p530 = pneg %p268
      $region38: #{base_encoder_forward.13} parent=31 // pred_check_branch
        %532 = sbr.rel (%p530) target = $region40
      $region39: #{base_encoder_forward.13} parent=31 // pred_region
        %v533 = vld [vmem:[#allocation2] sm:$0xff]
        %v534 = vld [vmem:[#allocation2 + $0x8] sm:$0xff]
        %v535 = vld [vmem:[%s257] sm:$0x1]
        %v537 = vlaneseq
        %v538 = vshrl.u32 %v537, 7
        %v539 = vsub.s32 0, %v538
        %v540 = vrot.slane %v535, %v539
        %v542 = vadd.f32 %v533, %v540
        %v543 = vadd.f32 %v534, %v540
        %v544 = vmax.f32 %v542, 0.0
        %v545 = vmax.f32 %v543, 0.0
        %v546 = vpack.c.bf16 %v545, %v544
        %v548 = vunpack.c.l.b16 %v546
        %v549 = vunpack.c.h.b16 %v546
        %v550 = vpack.c.b16 %v548, %v548
        %v551 = vpack.c.b16 %v549, %v549
        %vm554 = vcmask 257024
        %555 = vst.msk [vmem:[%s265] sm:$0xf] %vm554, %v550
        %556 = vst.msk [vmem:[%s265 + $0x4] sm:$0xf] %vm554, %v551
      $region40: #{base_encoder_forward.13} parent=31 // pred_fallthru
        _
      %s557 = smul.u32 2, %s19
      %p558 = scmp.lt.s32.totalorder %s557, 5
      %s559 = scalar_select %p558, %s557, 5
      %p560 = scmp.lt.s32.totalorder %s20, 0
      %s561 = scalar_select %p560, %s20, 0
      %s562 = sadd.s32 %s561, %s559
      %s563 = smul.addr %s562, 4
      %s564 = scalar_lea.vmem %s3, %s563
      // Predicated region
      $region41: #{base_encoder_forward.13} parent=31 // pred_check
        %p565 = pneg %p135
      $region42: #{base_encoder_forward.13} parent=31 // pred_check_branch
        %567 = sbr.rel (%p565) target = $region44
      $region43: #{base_encoder_forward.13} parent=31 // pred_region
        %s568 = smul.u32 2, %s19
      $region44: #{base_encoder_forward.13} parent=31 // pred_fallthru
        _
    $region32: #{base_encoder_forward.13} parent=5 // pred_fallthru
      _
    %p569 = scmp.le.s32.totalorder 2, %s9
    // Predicated region
    $region45: #{base_encoder_forward.13} parent=5 // pred_check
      %p570 = pneg %p569
    $region46: #{base_encoder_forward.13} parent=5 // pred_check_branch
      %572 = sbr.rel (%p570) target = $region48
    $region47: #{base_encoder_forward.13} parent=5 // pred_region
      %s573 = ssub.s32 %s9, 2
      // Predicated region
      $region49: #{base_encoder_forward.13} parent=47 // pred_check
        %p574 = pneg %p141
      $region50: #{base_encoder_forward.13} parent=47 // pred_check_branch
        %576 = sbr.rel (%p574) target = $region52
      $region51: #{base_encoder_forward.13} parent=47 // pred_region
        %s577 = smul.u32 2, %s22
        %p578 = scmp.lt.s32.totalorder %s577, 5
        %s579 = scalar_select %p578, %s577, 5
        %p580 = scmp.lt.s32.totalorder %s23, 0
        %s581 = scalar_select %p580, %s23, 0
        %s582 = sadd.s32 %s581, %s579
        %s583 = smul.addr %s582, 4
        %s584 = scalar_lea.vmem %s3, %s583
      $region52: #{base_encoder_forward.13} parent=47 // pred_fallthru
        _
    $region48: #{base_encoder_forward.13} parent=5 // pred_fallthru
      _
  $region6: #{base_encoder_forward.13} parent=0 // loop_footer
    %s13 = sadd.s32 1, %s9
  $region7: #{base_encoder_forward.13} parent=0 // loop_footer_branch
    %8 = sbr.rel target = $region3
  $region8: #{base_encoder_forward.13} parent=0 // loop_exit
    _

// kernel: base_encoder_forward.14
$region0: #{base_encoder_forward.14}
  #allocation0 [shape = 'u32[]', space=smem, size = 0x4, offset = 0x4, fixed_abs, tag = 'smem constant byte address 0x4 - core index']
  #allocation1 [shape = 'u32[144,128]{1,0:T(1,128)}', space=vmem, size = 0x12000, scoped, tag = 'internal scratch']
  #allocation2 [shape = 'f32[16,32]{1,0:T(8,128)}', space=vmem, size = 0x2000, scoped, tag = 'scratch operand']
  %s0 = inlined_call_operand.vmem [shape: bf16[16,96], index: 0, kind: input, shape index: {}]
  %s1 = inlined_call_operand.vmem [shape: bf16[96,32], index: 1, kind: input, shape index: {}]
  %s2 = inlined_call_operand.vmem [shape: f32[1,32], index: 2, kind: input, shape index: {}]
  %s3 = inlined_call_operand.vmem [shape: bf16[16,32], index: 3, kind: output, shape index: {}]
  %s4 = sld [smem:[#allocation0]]
  $region30: #{base_encoder_forward.14} parent=0
    _
  %s6 = ssub.s32 1, %s4
  %s7 = scalar_select 0, %s6, %s4
  // Predicated region
  $region2: #{base_encoder_forward.14} parent=0 // pred_check
    _
  $region3: #{base_encoder_forward.14} parent=0 // pred_check_branch
    %9 = sbr.rel (0) target = $region5
  $region4: #{base_encoder_forward.14} parent=0 // pred_region
    _
  $region5: #{base_encoder_forward.14} parent=0 // pred_fallthru
    _
  // Predicated region
  $region6: #{base_encoder_forward.14} parent=0 // pred_check
    _
  $region7: #{base_encoder_forward.14} parent=0 // pred_check_branch
    %11 = sbr.rel (0) target = $region9
  $region8: #{base_encoder_forward.14} parent=0 // pred_region
    _
  $region9: #{base_encoder_forward.14} parent=0 // pred_fallthru
    _
  // Predicated region
  $region10: #{base_encoder_forward.14} parent=0 // pred_check
    _
  $region11: #{base_encoder_forward.14} parent=0 // pred_check_branch
    %13 = sbr.rel (0) target = $region13
  $region12: #{base_encoder_forward.14} parent=0 // pred_region
    _
  $region13: #{base_encoder_forward.14} parent=0 // pred_fallthru
    _
  %p15 = scmp.eq.s32.totalorder 0, 0
  // Predicated region
  $region14: #{base_encoder_forward.14} parent=0 // pred_check
    %p16 = pneg %p15
  $region15: #{base_encoder_forward.14} parent=0 // pred_check_branch
    %18 = sbr.rel (%p16) target = $region17
  $region16: #{base_encoder_forward.14} parent=0 // pred_region
    %vm19 = vcmask 261120
    %20 = vst.msk [vmem:[#allocation2] sm:$0xff] %vm19, 0.0
    %21 = vst.msk [vmem:[#allocation2 + $0x8] sm:$0xff] %vm19, 0.0
  $region17: #{base_encoder_forward.14} parent=0 // pred_fallthru
    _
  %v22 = vld [vmem:[#allocation2] sm:$0xff]
  %v23 = vld [vmem:[#allocation2 + $0x8] sm:$0xff]
  %v24 = vld [vmem:[%s0] sm:$0xf]
  %v25 = vld [vmem:[%s0 + $0x4] sm:$0xf]
  %v26 = vld [vmem:[%s1] sm:$0xf]
  %v27 = vld [vmem:[%s1 + $0x4] sm:$0xf]
  %v28 = vld [vmem:[%s1 + $0x8] sm:$0xf]
  %v29 = vld [vmem:[%s1 + $0xc] sm:$0xf]
  %v30 = vld [vmem:[%s1 + $0x10] sm:$0xf]
  %v31 = vld [vmem:[%s1 + $0x14] sm:$0xf]
  %v32 = vld [vmem:[%s1 + $0x18] sm:$0xf]
  %v33 = vld [vmem:[%s1 + $0x1c] sm:$0xf]
  %v34 = vld [vmem:[%s1 + $0x20] sm:$0xf]
  %v35 = vld [vmem:[%s1 + $0x24] sm:$0xf]
  %v36 = vld [vmem:[%s1 + $0x28] sm:$0xf]
  %v37 = vld [vmem:[%s1 + $0x2c] sm:$0xf]
  %v40 = vunpack.c.l.b16 %v24
  %v41 = vunpack.c.l.b16 %v25
  %v42 = vpack.c.b16 %v41, %v40
  %v55 = vunpack.c.l.b16 %v26
  %v56 = vunpack.c.l.b16 %v27
  %v57 = vunpack.c.l.b16 %v28
  %v58 = vunpack.c.l.b16 %v29
  %v59 = vunpack.c.l.b16 %v30
  %v60 = vunpack.c.l.b16 %v31
  %v61 = vunpack.c.l.b16 %v32
  %v62 = vunpack.c.l.b16 %v33
  %v63 = vunpack.c.l.b16 %v34
  %v64 = vunpack.c.l.b16 %v35
  %v65 = vunpack.c.l.b16 %v36
  %v66 = vunpack.c.l.b16 %v37
  %v67 = vpack.c.b16 %v56, %v55
  %v68 = vpack.c.b16 %v58, %v57
  %v69 = vpack.c.b16 %v60, %v59
  %v70 = vpack.c.b16 %v62, %v61
  %v71 = vpack.c.b16 %v64, %v63
  %v72 = vpack.c.b16 %v66, %v65
  %vm79 = vcmask 785408
  %v81 = vsel %vm79, %v42, 0
  %83 = vmatprep.subr.bf16.mxu0 0
  %84 = vmatpush1.bf16.msra.mxu0 %v67
  %85 = vmatprep.subr.bf16.mxu0 0
  %86 = vmatpush1.bf16.msra.mxu0 %v68
  %87 = vmatprep.subr.bf16.mxu0 0
  %88 = vmatpush1.bf16.msra.mxu0 %v69
  %89 = vmatprep.subr.bf16.mxu0 0
  %90 = vmatpush1.bf16.msra.mxu0 %v70
  %91 = vmatprep.subr.bf16.mxu0 0
  %92 = vmatpush1.bf16.msra.mxu0 %v71
  %93 = vmatprep.subr.bf16.mxu0 0
  %94 = vmatpush1.bf16.msra.mxu0 %v72
  %95 = vmatprep.subr.bf16.mxu0 0
  %96 = vmatpush1.bf16.msra.mxu0 0
  %97 = vmatprep.subr.bf16.mxu0 0
  %98 = vmatpush1.bf16.msra.mxu0 0
  %99 = vmatprep.subr.bf16.mxu0 0
  %100 = vmatpush1.bf16.msra.mxu0 0
  %101 = vmatprep.subr.bf16.mxu0 0
  %102 = vmatpush1.bf16.msra.mxu0 0
  %103 = vmatprep.subr.bf16.mxu0 0
  %104 = vmatpush1.bf16.msra.mxu0 0
  %105 = vmatprep.subr.bf16.mxu0 0
  %106 = vmatpush1.bf16.msra.mxu0 0
  %107 = vmatprep.subr.bf16.mxu0 0
  %108 = vmatpush1.bf16.msra.mxu0 0
  %109 = vmatprep.subr.bf16.mxu0 0
  %110 = vmatpush1.bf16.msra.mxu0 0
  %111 = vmatprep.subr.bf16.mxu0 0
  %112 = vmatpush1.bf16.msra.mxu0 0
  %113 = vmatprep.subr.bf16.mxu0 0
  %114 = vmatpush1.bf16.msra.mxu0 0
  %115 = vmatprep.mubr.bf16.mxu0 0
  %116 = vmatmul.mubr.bf16.gmra.mrb[0].mxu0 %v81
  %v117 = vpop.f32.mrb[0].mxu0
  %v118 = vadd.f32 0.0, %v117
  %v119 = vpop.f32.mrb[0].mxu0
  %v120 = vpop.f32.mrb[0].mxu0
  %v121 = vadd.f32 0.0, %v120
  %v122 = vpop.f32.mrb[0].mxu0
  %123 = vdwg.mxu0
  %v124 = vadd.f32 %v22, %v118
  %v125 = vadd.f32 %v23, %v121
  %vm126 = vcmask 261120
  %127 = vst.msk [vmem:[#allocation2] sm:$0xff] %vm126, %v124
  %128 = vst.msk [vmem:[#allocation2 + $0x8] sm:$0xff] %vm126, %v125
  // Predicated region
  $region18: #{base_encoder_forward.14} parent=0 // pred_check
    %p129 = pneg %p15
  $region19: #{base_encoder_forward.14} parent=0 // pred_check_branch
    %131 = sbr.rel (%p129) target = $region21
  $region20: #{base_encoder_forward.14} parent=0 // pred_region
    %v132 = vld [vmem:[#allocation2] sm:$0xff]
    %v133 = vld [vmem:[#allocation2 + $0x8] sm:$0xff]
    %v134 = vld [vmem:[%s2] sm:$0x1]
    %v136 = vlaneseq
    %v137 = vshrl.u32 %v136, 7
    %v138 = vsub.s32 0, %v137
    %v139 = vrot.slane %v134, %v138
    %v141 = vadd.f32 %v132, %v139
    %v142 = vadd.f32 %v133, %v139
    %v143 = vpack.c.bf16 %v142, %v141
    %v145 = vunpack.c.l.b16 %v143
    %v146 = vunpack.c.h.b16 %v143
    %v147 = vpack.c.b16 %v145, %v145
    %v148 = vpack.c.b16 %v146, %v146
    %vm151 = vcmask 257024
    %152 = vst.msk [vmem:[%s3] sm:$0xf] %vm151, %v147
    %153 = vst.msk [vmem:[%s3 + $0x4] sm:$0xf] %vm151, %v148
  $region21: #{base_encoder_forward.14} parent=0 // pred_fallthru
    _
  // Predicated region
  $region22: #{base_encoder_forward.14} parent=0 // pred_check
    _
  $region23: #{base_encoder_forward.14} parent=0 // pred_check_branch
    %155 = sbr.rel (0) target = $region25
  $region24: #{base_encoder_forward.14} parent=0 // pred_region
    _
  $region25: #{base_encoder_forward.14} parent=0 // pred_fallthru
    _
  // Predicated region
  $region26: #{base_encoder_forward.14} parent=0 // pred_check
    _
  $region27: #{base_encoder_forward.14} parent=0 // pred_check_branch
    %157 = sbr.rel (0) target = $region29
  $region28: #{base_encoder_forward.14} parent=0 // pred_region
    _
  $region29: #{base_encoder_forward.14} parent=0 // pred_fallthru
    _

// kernel: base_encoder_forward.17
$region0: #{base_encoder_forward.17}
  #allocation0 [shape = 'u32[]', space=smem, size = 0x4, offset = 0x4, fixed_abs, tag = 'smem constant byte address 0x4 - core index']
  #allocation1 [shape = 'u32[144,128]{1,0:T(1,128)}', space=vmem, size = 0x12000, scoped, tag = 'internal scratch']
  #allocation2 [shape = 'f32[16,32]{1,0:T(8,128)}', space=vmem, size = 0x2000, scoped, tag = 'scratch operand']
  %s0 = inlined_call_operand.vmem [shape: bf16[16,32], index: 0, kind: input, shape index: {}]
  %s1 = inlined_call_operand.vmem [shape: bf16[32,32], index: 1, kind: input, shape index: {}]
  %s2 = inlined_call_operand.vmem [shape: f32[1,32], index: 2, kind: input, shape index: {}]
  %s3 = inlined_call_operand.vmem [shape: bf16[16,32], index: 3, kind: input, shape index: {}]
  %s4 = inlined_call_operand.vmem [shape: bf16[16,32], index: 4, kind: output, shape index: {}]
  %s5 = sld [smem:[#allocation0]]
  $region34: #{base_encoder_forward.17} parent=0
    _
  %s7 = ssub.s32 1, %s5
  %s8 = scalar_select 0, %s7, %s5
  // Predicated region
  $region2: #{base_encoder_forward.17} parent=0 // pred_check
    _
  $region3: #{base_encoder_forward.17} parent=0 // pred_check_branch
    %10 = sbr.rel (0) target = $region5
  $region4: #{base_encoder_forward.17} parent=0 // pred_region
    _
  $region5: #{base_encoder_forward.17} parent=0 // pred_fallthru
    _
  // Predicated region
  $region6: #{base_encoder_forward.17} parent=0 // pred_check
    _
  $region7: #{base_encoder_forward.17} parent=0 // pred_check_branch
    %12 = sbr.rel (0) target = $region9
  $region8: #{base_encoder_forward.17} parent=0 // pred_region
    _
  $region9: #{base_encoder_forward.17} parent=0 // pred_fallthru
    _
  // Predicated region
  $region10: #{base_encoder_forward.17} parent=0 // pred_check
    _
  $region11: #{base_encoder_forward.17} parent=0 // pred_check_branch
    %14 = sbr.rel (0) target = $region13
  $region12: #{base_encoder_forward.17} parent=0 // pred_region
    _
  $region13: #{base_encoder_forward.17} parent=0 // pred_fallthru
    _
  // Predicated region
  $region14: #{base_encoder_forward.17} parent=0 // pred_check
    _
  $region15: #{base_encoder_forward.17} parent=0 // pred_check_branch
    %16 = sbr.rel (0) target = $region17
  $region16: #{base_encoder_forward.17} parent=0 // pred_region
    _
  $region17: #{base_encoder_forward.17} parent=0 // pred_fallthru
    _
  %p18 = scmp.eq.s32.totalorder 0, 0
  // Predicated region
  $region18: #{base_encoder_forward.17} parent=0 // pred_check
    %p19 = pneg %p18
  $region19: #{base_encoder_forward.17} parent=0 // pred_check_branch
    %21 = sbr.rel (%p19) target = $region21
  $region20: #{base_encoder_forward.17} parent=0 // pred_region
    %vm22 = vcmask 261120
    %23 = vst.msk [vmem:[#allocation2] sm:$0xff] %vm22, 0.0
    %24 = vst.msk [vmem:[#allocation2 + $0x8] sm:$0xff] %vm22, 0.0
  $region21: #{base_encoder_forward.17} parent=0 // pred_fallthru
    _
  %v25 = vld [vmem:[#allocation2] sm:$0xff]
  %v26 = vld [vmem:[#allocation2 + $0x8] sm:$0xff]
  %v27 = vld [vmem:[%s0] sm:$0xf]
  %v28 = vld [vmem:[%s0 + $0x4] sm:$0xf]
  %v29 = vld [vmem:[%s1] sm:$0xf]
  %v30 = vld [vmem:[%s1 + $0x4] sm:$0xf]
  %v31 = vld [vmem:[%s1 + $0x8] sm:$0xf]
  %v32 = vld [vmem:[%s1 + $0xc] sm:$0xf]
  %v35 = vunpack.c.l.b16 %v27
  %v36 = vunpack.c.l.b16 %v28
  %v37 = vpack.c.b16 %v36, %v35
  %v42 = vunpack.c.l.b16 %v29
  %v43 = vunpack.c.l.b16 %v30
  %v44 = vunpack.c.l.b16 %v31
  %v45 = vunpack.c.l.b16 %v32
  %v46 = vpack.c.b16 %v43, %v42
  %v47 = vpack.c.b16 %v45, %v44
  %vm50 = vcmask 261120
  %v52 = vsel %vm50, %v37, 0
  %54 = vmatprep.subr.bf16.mxu0 0
  %55 = vmatpush1.bf16.msra.mxu0 %v46
  %56 = vmatprep.subr.bf16.mxu0 0
  %57 = vmatpush1.bf16.msra.mxu0 %v47
  %58 = vmatprep.subr.bf16.mxu0 0
  %59 = vmatpush1.bf16.msra.mxu0 0
  %60 = vmatprep.subr.bf16.mxu0 0
  %61 = vmatpush1.bf16.msra.mxu0 0
  %62 = vmatprep.subr.bf16.mxu0 0
  %63 = vmatpush1.bf16.msra.mxu0 0
  %64 = vmatprep.subr.bf16.mxu0 0
  %65 = vmatpush1.bf16.msra.mxu0 0
  %66 = vmatprep.subr.bf16.mxu0 0
  %67 = vmatpush1.bf16.msra.mxu0 0
  %68 = vmatprep.subr.bf16.mxu0 0
  %69 = vmatpush1.bf16.msra.mxu0 0
  %70 = vmatprep.subr.bf16.mxu0 0
  %71 = vmatpush1.bf16.msra.mxu0 0
  %72 = vmatprep.subr.bf16.mxu0 0
  %73 = vmatpush1.bf16.msra.mxu0 0
  %74 = vmatprep.subr.bf16.mxu0 0
  %75 = vmatpush1.bf16.msra.mxu0 0
  %76 = vmatprep.subr.bf16.mxu0 0
  %77 = vmatpush1.bf16.msra.mxu0 0
  %78 = vmatprep.subr.bf16.mxu0 0
  %79 = vmatpush1.bf16.msra.mxu0 0
  %80 = vmatprep.subr.bf16.mxu0 0
  %81 = vmatpush1.bf16.msra.mxu0 0
  %82 = vmatprep.subr.bf16.mxu0 0
  %83 = vmatpush1.bf16.msra.mxu0 0
  %84 = vmatprep.subr.bf16.mxu0 0
  %85 = vmatpush1.bf16.msra.mxu0 0
  %86 = vmatprep.mubr.bf16.mxu0 0
  %87 = vmatmul.mubr.bf16.gmra.mrb[0].mxu0 %v52
  %v88 = vpop.f32.mrb[0].mxu0
  %v89 = vadd.f32 0.0, %v88
  %v90 = vpop.f32.mrb[0].mxu0
  %v91 = vpop.f32.mrb[0].mxu0
  %v92 = vadd.f32 0.0, %v91
  %v93 = vpop.f32.mrb[0].mxu0
  %94 = vdwg.mxu0
  %v95 = vadd.f32 %v25, %v89
  %v96 = vadd.f32 %v26, %v92
  %97 = vst.msk [vmem:[#allocation2] sm:$0xff] %vm50, %v95
  %98 = vst.msk [vmem:[#allocation2 + $0x8] sm:$0xff] %vm50, %v96
  // Predicated region
  $region22: #{base_encoder_forward.17} parent=0 // pred_check
    %p99 = pneg %p18
  $region23: #{base_encoder_forward.17} parent=0 // pred_check_branch
    %101 = sbr.rel (%p99) target = $region25
  $region24: #{base_encoder_forward.17} parent=0 // pred_region
    %v102 = vld [vmem:[#allocation2] sm:$0xff]
    %v103 = vld [vmem:[#allocation2 + $0x8] sm:$0xff]
    %v104 = vld [vmem:[%s2] sm:$0x1]
    %v106 = vlaneseq
    %v107 = vshrl.u32 %v106, 7
    %v108 = vsub.s32 0, %v107
    %v109 = vrot.slane %v104, %v108
    %v111 = vadd.f32 %v102, %v109
    %v112 = vadd.f32 %v103, %v109
    %v113 = vld [vmem:[%s3] sm:$0xf]
    %v114 = vld [vmem:[%s3 + $0x4] sm:$0xf]
    %v115 = vunpack.c.l.bf16 %v113
    %v116 = vunpack.c.l.bf16 %v114
    %v117 = vadd.f32 %v111, %v115
    %v118 = vadd.f32 %v112, %v116
    %v119 = vpack.c.bf16 %v118, %v117
    %v121 = vunpack.c.l.b16 %v119
    %v122 = vunpack.c.h.b16 %v119
    %v123 = vpack.c.b16 %v121, %v121
    %v124 = vpack.c.b16 %v122, %v122
    %vm127 = vcmask 257024
    %128 = vst.msk [vmem:[%s4] sm:$0xf] %vm127, %v123
    %129 = vst.msk [vmem:[%s4 + $0x4] sm:$0xf] %vm127, %v124
  $region25: #{base_encoder_forward.17} parent=0 // pred_fallthru
    _
  // Predicated region
  $region26: #{base_encoder_forward.17} parent=0 // pred_check
    _
  $region27: #{base_encoder_forward.17} parent=0 // pred_check_branch
    %131 = sbr.rel (0) target = $region29
  $region28: #{base_encoder_forward.17} parent=0 // pred_region
    _
  $region29: #{base_encoder_forward.17} parent=0 // pred_fallthru
    _
  // Predicated region
  $region30: #{base_encoder_forward.17} parent=0 // pred_check
    _
  $region31: #{base_encoder_forward.17} parent=0 // pred_check_branch
    %133 = sbr.rel (0) target = $region33
  $region32: #{base_encoder_forward.17} parent=0 // pred_region
    _
  $region33: #{base_encoder_forward.17} parent=0 // pred_fallthru
    _

// kernel: base_encoder_forward.15
$region0: #{base_encoder_forward.15}
  #allocation0 [shape = 'u32[]', space=smem, size = 0x4, offset = 0x4, fixed_abs, tag = 'smem constant byte address 0x4 - core index']
  #allocation1 [shape = 'u32[144,128]{1,0:T(1,128)}', space=vmem, size = 0x12000, scoped, tag = 'internal scratch']
  %s0 = inlined_call_operand.vmem [shape: bf16[16,32], index: 0, kind: input, shape index: {}]
  %s1 = inlined_call_operand.vmem [shape: f32[1,32], index: 1, kind: input, shape index: {}]
  %s2 = inlined_call_operand.vmem [shape: f32[1,32], index: 2, kind: input, shape index: {}]
  %s3 = inlined_call_operand.vmem [shape: bf16[32,96], index: 3, kind: input, shape index: {}]
  %s4 = inlined_call_operand.vmem [shape: f32[1,96], index: 4, kind: input, shape index: {}]
  %s5 = inlined_call_operand.vmem [shape: bf16[16,96], index: 5, kind: output, shape index: {}]
  %s6 = sld [smem:[#allocation0]]
  $region30: #{base_encoder_forward.15} parent=0
    _
  %s8 = ssub.s32 1, %s6
  %s9 = scalar_select 0, %s8, %s6
  // Predicated region
  $region2: #{base_encoder_forward.15} parent=0 // pred_check
    _
  $region3: #{base_encoder_forward.15} parent=0 // pred_check_branch
    %11 = sbr.rel (0) target = $region5
  $region4: #{base_encoder_forward.15} parent=0 // pred_region
    _
  $region5: #{base_encoder_forward.15} parent=0 // pred_fallthru
    _
  // Predicated region
  $region6: #{base_encoder_forward.15} parent=0 // pred_check
    _
  $region7: #{base_encoder_forward.15} parent=0 // pred_check_branch
    %13 = sbr.rel (0) target = $region9
  $region8: #{base_encoder_forward.15} parent=0 // pred_region
    _
  $region9: #{base_encoder_forward.15} parent=0 // pred_fallthru
    _
  // Predicated region
  $region10: #{base_encoder_forward.15} parent=0 // pred_check
    _
  $region11: #{base_encoder_forward.15} parent=0 // pred_check_branch
    %15 = sbr.rel (0) target = $region13
  $region12: #{base_encoder_forward.15} parent=0 // pred_region
    _
  $region13: #{base_encoder_forward.15} parent=0 // pred_fallthru
    _
  // Predicated region
  $region14: #{base_encoder_forward.15} parent=0 // pred_check
    _
  $region15: #{base_encoder_forward.15} parent=0 // pred_check_branch
    %17 = sbr.rel (0) target = $region17
  $region16: #{base_encoder_forward.15} parent=0 // pred_region
    _
  $region17: #{base_encoder_forward.15} parent=0 // pred_fallthru
    _
  // Predicated region
  $region18: #{base_encoder_forward.15} parent=0 // pred_check
    _
  $region19: #{base_encoder_forward.15} parent=0 // pred_check_branch
    %19 = sbr.rel (0) target = $region21
  $region20: #{base_encoder_forward.15} parent=0 // pred_region
    _
  $region21: #{base_encoder_forward.15} parent=0 // pred_fallthru
    _
  %v21 = vld [vmem:[%s0] sm:$0xf]
  %v22 = vld [vmem:[%s0 + $0x4] sm:$0xf]
  %v23 = vunpack.c.l.bf16 %v21
  %v24 = vunpack.c.l.bf16 %v22
  %vm25 = vcmask 261120
  %v26 = vsel %vm25, %v23, 0.0
  %27 = vadd.xlane.f32.xlu0 %v26
  %v28 = vpop.xlane.xlu0 %27
  %v29 = vsel %vm25, %v24, 0.0
  %30 = vadd.xlane.f32.xlu0 %v29
  %v31 = vpop.xlane.xlu0 %30
  %v32 = vrcp.pop 32.0
  %v33 = vmul.f32 %v28, %v32
  %v34 = vmul.f32 %v31, %v32
  %v35 = vsub.f32 %v23, %v33
  %v36 = vsub.f32 %v24, %v34
  %v37 = vmul.f32 %v35, %v35
  %v38 = vmul.f32 %v36, %v36
  %v39 = vsel %vm25, %v37, 0.0
  %40 = vadd.xlane.f32.xlu0 %v39
  %v41 = vpop.xlane.xlu0 %40
  %v42 = vsel %vm25, %v38, 0.0
  %43 = vadd.xlane.f32.xlu0 %v42
  %v44 = vpop.xlane.xlu0 %43
  %v45 = vmul.f32 %v41, %v32
  %v46 = vmul.f32 %v44, %v32
  %v47 = vadd.f32 %v45, 1e-05
  %v48 = vadd.f32 %v46, 1e-05
  %v49 = vrsqrt.pop %v47
  %v50 = vrsqrt.pop %v48
  %v51 = vmul.f32 %v35, %v49
  %v52 = vmul.f32 %v36, %v50
  %v53 = vld [vmem:[%s1] sm:$0x1]
  %v55 = vlaneseq
  %v56 = vshrl.u32 %v55, 7
  %v57 = vsub.s32 0, %v56
  %v58 = vrot.slane %v53, %v57
  %v60 = vmul.f32 %v51, %v58
  %v61 = vmul.f32 %v52, %v58
  %v62 = vld [vmem:[%s2] sm:$0x1]
  %v64 = vlaneseq
  %v65 = vshrl.u32 %v64, 7
  %v66 = vsub.s32 0, %v65
  %v67 = vrot.slane %v62, %v66
  %v69 = vadd.f32 %v60, %v67
  %v70 = vadd.f32 %v61, %v67
  %v71 = vpack.c.bf16 %v70, %v69
  %v72 = vld [vmem:[%s3] sm:$0xf]
  %v73 = vld [vmem:[%s3 + $0x4] sm:$0xf]
  %v74 = vld [vmem:[%s3 + $0x8] sm:$0xf]
  %v75 = vld [vmem:[%s3 + $0xc] sm:$0xf]
  %v76 = vld [vmem:[%s4] sm:$0x1]
  %v78 = vlaneseq
  %v79 = vshrl.u32 %v78, 7
  %v80 = vsub.s32 0, %v79
  %v81 = vrot.slane %v76, %v80
  %v87 = vunpack.c.l.b16 %v72
  %v88 = vunpack.c.l.b16 %v73
  %v89 = vunpack.c.l.b16 %v74
  %v90 = vunpack.c.l.b16 %v75
  %v91 = vpack.c.b16 %v88, %v87
  %v92 = vpack.c.b16 %v90, %v89
  %v96 = vsel %vm25, %v71, 0
  %98 = vmatprep.subr.bf16.mxu0 0
  %99 = vmatpush1.bf16.msra.mxu0 %v91
  %100 = vmatprep.subr.bf16.mxu0 0
  %101 = vmatpush1.bf16.msra.mxu0 %v92
  %102 = vmatprep.subr.bf16.mxu0 0
  %103 = vmatpush1.bf16.msra.mxu0 0
  %104 = vmatprep.subr.bf16.mxu0 0
  %105 = vmatpush1.bf16.msra.mxu0 0
  %106 = vmatprep.subr.bf16.mxu0 0
  %107 = vmatpush1.bf16.msra.mxu0 0
  %108 = vmatprep.subr.bf16.mxu0 0
  %109 = vmatpush1.bf16.msra.mxu0 0
  %110 = vmatprep.subr.bf16.mxu0 0
  %111 = vmatpush1.bf16.msra.mxu0 0
  %112 = vmatprep.subr.bf16.mxu0 0
  %113 = vmatpush1.bf16.msra.mxu0 0
  %114 = vmatprep.subr.bf16.mxu0 0
  %115 = vmatpush1.bf16.msra.mxu0 0
  %116 = vmatprep.subr.bf16.mxu0 0
  %117 = vmatpush1.bf16.msra.mxu0 0
  %118 = vmatprep.subr.bf16.mxu0 0
  %119 = vmatpush1.bf16.msra.mxu0 0
  %120 = vmatprep.subr.bf16.mxu0 0
  %121 = vmatpush1.bf16.msra.mxu0 0
  %122 = vmatprep.subr.bf16.mxu0 0
  %123 = vmatpush1.bf16.msra.mxu0 0
  %124 = vmatprep.subr.bf16.mxu0 0
  %125 = vmatpush1.bf16.msra.mxu0 0
  %126 = vmatprep.subr.bf16.mxu0 0
  %127 = vmatpush1.bf16.msra.mxu0 0
  %128 = vmatprep.subr.bf16.mxu0 0
  %129 = vmatpush1.bf16.msra.mxu0 0
  %130 = vmatprep.mubr.bf16.mxu0 0
  %131 = vmatmul.mubr.bf16.gmra.mrb[0].mxu0 %v96
  %v132 = vpop.f32.mrb[0].mxu0
  %v133 = vadd.f32 %v81, %v132
  %v134 = vpop.f32.mrb[0].mxu0
  %v135 = vpop.f32.mrb[0].mxu0
  %v136 = vadd.f32 %v81, %v135
  %v137 = vpop.f32.mrb[0].mxu0
  %138 = vdwg.mxu0
  %v139 = vpack.c.bf16 %v136, %v133
  %v141 = vunpack.c.l.b16 %v139
  %v142 = vunpack.c.h.b16 %v139
  %v143 = vpack.c.b16 %v141, %v141
  %v144 = vpack.c.b16 %v142, %v142
  %vm147 = vcmask 781312
  %148 = vst.msk [vmem:[%s5] sm:$0xf] %vm147, %v143
  %149 = vst.msk [vmem:[%s5 + $0x4] sm:$0xf] %vm147, %v144
  // Predicated region
  $region22: #{base_encoder_forward.15} parent=0 // pred_check
    _
  $region23: #{base_encoder_forward.15} parent=0 // pred_check_branch
    %151 = sbr.rel (0) target = $region25
  $region24: #{base_encoder_forward.15} parent=0 // pred_region
    _
  $region25: #{base_encoder_forward.15} parent=0 // pred_fallthru
    _
  // Predicated region
  $region26: #{base_encoder_forward.15} parent=0 // pred_check
    _
  $region27: #{base_encoder_forward.15} parent=0 // pred_check_branch
    %153 = sbr.rel (0) target = $region29
  $region28: #{base_encoder_forward.15} parent=0 // pred_region
    _
  $region29: #{base_encoder_forward.15} parent=0 // pred_fallthru
    _

// kernel: base_encoder_forward.16
$region0: #{base_encoder_forward.16}
  #allocation0 [shape = 'u32[]', space=smem, size = 0x4, offset = 0x4, fixed_abs, tag = 'smem constant byte address 0x4 - core index']
  #allocation1 [shape = 'u32[144,128]{1,0:T(1,128)}', space=vmem, size = 0x12000, scoped, tag = 'internal scratch']
  %s0 = inlined_call_operand.vmem [shape: bf16[2,8,96], index: 0, kind: input, shape index: {}]
  %s1 = inlined_call_operand.vmem [shape: f32[2,1,8], index: 1, kind: input, shape index: {}]
  %s2 = inlined_call_operand.vmem [shape: bf16[2,8,32], index: 2, kind: output, shape index: {}]
  %s3 = sld [smem:[#allocation0]]
  $region41: #{base_encoder_forward.16} parent=0
    _
  %s5 = ssub.s32 1, %s3
  %s6 = scalar_select 0, %s5, %s3
  loop: start=0, step=1, limit=4
  $region2: #{base_encoder_forward.16} parent=0 // loop_pre_header
    _
  $region3: #{base_encoder_forward.16} parent=0 // loop_header
    %s8 = sphi 0, %s12
    %p9 = scmp.ge.s32.totalorder %s8, 4
    %s18 = sphi 0, %s20
    %s21 = sphi 0, %s18
    %s22 = sphi 0, %s21
    %s38 = sphi 0, %s22
    %s44 = sphi 0, %s46
    %s47 = sphi 0, %s44
    %s48 = sphi 0, %s47
    %s64 = sphi 0, %s48
    %s70 = sphi 0, %s72
    %s73 = sphi 0, %s70
    %s74 = sphi 0, %s73
    %s90 = sphi 0, %s74
  $region4: #{base_encoder_forward.16} parent=0 // loop_header_branch
    %11 = sbr.rel (%p9) target = $region8
  $region5: #{base_encoder_forward.16} parent=0 // loop_body
    %s13 = ssub.s32 %s8, 1
    %s14 = ssub.s32 %s8, 2
    %s15 = sadd.s32 %s8, 1
    %s16 = ssub.s32 %s8, %s15
    %p17 = scmp.eq.s32.totalorder %s16, 0
    %s19 = sadd.s32 %s18, 1
    %s20 = scalar_select %p17, %s18, %s19
    %p23 = pneg %p17
    %p24 = scmp.eq.s32.totalorder %s8, 1
    %p25 = por %p23, %p24
    %p26 = scmp.ne.s32.totalorder %s18, %s21
    %p27 = scmp.eq.s32.totalorder %s8, 0
    %p28 = por %p26, %p27
    %p29 = scmp.ne.s32.totalorder %s18, %s21
    %p30 = scmp.eq.s32.totalorder %s13, 1
    %p31 = por %p29, %p30
    %p32 = scmp.ne.s32.totalorder %s21, %s22
    %p33 = scmp.eq.s32.totalorder %s13, 0
    %p34 = por %p32, %p33
    %p35 = scmp.ne.s32.totalorder %s21, %s22
    %p36 = scmp.eq.s32.totalorder %s14, 1
    %p37 = por %p35, %p36
    %p39 = scmp.ne.s32.totalorder %s22, %s38
    %p40 = scmp.eq.s32.totalorder %s14, 0
    %p41 = por %p39, %p40
    %s42 = ssub.s32 %s8, %s15
    %p43 = scmp.eq.s32.totalorder %s42, 0
    %s45 = sadd.s32 %s44, 1
    %s46 = scalar_select %p43, %s44, %s45
    %p49 = pneg %p43
    %p50 = scmp.eq.s32.totalorder %s8, 1
    %p51 = por %p49, %p50
    %p52 = scmp.ne.s32.totalorder %s44, %s47
    %p53 = scmp.eq.s32.totalorder %s8, 0
    %p54 = por %p52, %p53
    %p55 = scmp.ne.s32.totalorder %s44, %s47
    %p56 = scmp.eq.s32.totalorder %s13, 1
    %p57 = por %p55, %p56
    %p58 = scmp.ne.s32.totalorder %s47, %s48
    %p59 = scmp.eq.s32.totalorder %s13, 0
    %p60 = por %p58, %p59
    %p61 = scmp.ne.s32.totalorder %s47, %s48
    %p62 = scmp.eq.s32.totalorder %s14, 1
    %p63 = por %p61, %p62
    %p65 = scmp.ne.s32.totalorder %s48, %s64
    %p66 = scmp.eq.s32.totalorder %s14, 0
    %p67 = por %p65, %p66
    %s68 = ssub.s32 %s8, %s15
    %p69 = scmp.eq.s32.totalorder %s68, 0
    %s71 = sadd.s32 %s70, 1
    %s72 = scalar_select %p69, %s70, %s71
    %p75 = pneg %p69
    %p76 = scmp.eq.s32.totalorder %s8, 1
    %p77 = por %p75, %p76
    %p78 = scmp.ne.s32.totalorder %s70, %s73
    %p79 = scmp.eq.s32.totalorder %s8, 0
    %p80 = por %p78, %p79
    %p81 = scmp.ne.s32.totalorder %s70, %s73
    %p82 = scmp.eq.s32.totalorder %s13, 1
    %p83 = por %p81, %p82
    %p84 = scmp.ne.s32.totalorder %s73, %s74
    %p85 = scmp.eq.s32.totalorder %s13, 0
    %p86 = por %p84, %p85
    %p87 = scmp.ne.s32.totalorder %s73, %s74
    %p88 = scmp.eq.s32.totalorder %s14, 1
    %p89 = por %p87, %p88
    %p91 = scmp.ne.s32.totalorder %s74, %s90
    %p92 = scmp.eq.s32.totalorder %s14, 0
    %p93 = por %p91, %p92
    %p94 = scmp.le.s32.totalorder 1, %s8
    %p95 = scmp.lt.s32.totalorder %s8, 3
    %p96 = pnand %p94, %p95
    %p97 = pneg %p96
    // Predicated region
    $region9: #{base_encoder_forward.16} parent=5 // pred_check
      _
    $region10: #{base_encoder_forward.16} parent=5 // pred_check_branch
      %99 = sbr.rel (%p96) target = $region12
    $region11: #{base_encoder_forward.16} parent=5 // pred_region
      %s100 = ssub.s32 %s8, 1
    $region12: #{base_encoder_forward.16} parent=5 // pred_fallthru
      _
    %p101 = scmp.lt.s32.totalorder %s8, 2
    // Predicated region
    $region13: #{base_encoder_forward.16} parent=5 // pred_check
      %p102 = pneg %p101
    $region14: #{base_encoder_forward.16} parent=5 // pred_check_branch
      %104 = sbr.rel (%p102) target = $region16
    $region15: #{base_encoder_forward.16} parent=5 // pred_region
      // Predicated region
      $region17: #{base_encoder_forward.16} parent=15 // pred_check
        %p105 = pneg %p28
      $region18: #{base_encoder_forward.16} parent=15 // pred_check_branch
        %107 = sbr.rel (%p105) target = $region20
      $region19: #{base_encoder_forward.16} parent=15 // pred_region
        %p108 = scmp.lt.s32.totalorder %s8, 1
        %s109 = scalar_select %p108, %s8, 1
        %s110 = smul.addr %s109, 4
        %s111 = scalar_lea.vmem %s0, %s110
      $region20: #{base_encoder_forward.16} parent=15 // pred_fallthru
        _
      // Predicated region
      $region21: #{base_encoder_forward.16} parent=15 // pred_check
        %p112 = pneg %p54
      $region22: #{base_encoder_forward.16} parent=15 // pred_check_branch
        %114 = sbr.rel (%p112) target = $region24
      $region23: #{base_encoder_forward.16} parent=15 // pred_region
        %p115 = scmp.lt.s32.totalorder %s8, 1
        %s116 = scalar_select %p115, %s8, 1
        %s117 = scalar_lea.vmem %s1, %s116
      $region24: #{base_encoder_forward.16} parent=15 // pred_fallthru
        _
    $region16: #{base_encoder_forward.16} parent=5 // pred_fallthru
      _
    %p118 = scmp.le.s32.totalorder 1, %s8
    %p119 = scmp.lt.s32.totalorder %s8, 3
    %p120 = pnand %p118, %p119
    %p121 = pneg %p120
    // Predicated region
    $region25: #{base_encoder_forward.16} parent=5 // pred_check
      _
    $region26: #{base_encoder_forward.16} parent=5 // pred_check_branch
      %123 = sbr.rel (%p120) target = $region28
    $region27: #{base_encoder_forward.16} parent=5 // pred_region
      %s124 = ssub.s32 %s8, 1
      %p125 = scmp.lt.s32.totalorder %s13, 1
      %s126 = scalar_select %p125, %s13, 1
      %s127 = smul.addr %s126, 4
      %s128 = scalar_lea.vmem %s0, %s127
      %p129 = pneg %p34
      %p130 = pneg %p31
      %p131 = scmp.lt.s32.totalorder %s13, 1
      %s132 = scalar_select %p131, %s13, 1
      %s133 = scalar_lea.vmem %s1, %s132
      %p134 = pneg %p60
      %p135 = pneg %p57
      %p136 = pneg %p86
      %p137 = pneg %p83
      %p138 = scmp.lt.s32.totalorder %s13, 1
      %s139 = scalar_select %p138, %s13, 1
      %s140 = smul.addr %s139, 4
      %s141 = scalar_lea.vmem %s2, %s140
      %p142 = scmp.lt.s32.totalorder %s13, 1
      %s143 = scalar_select %p142, %s13, 1
      %s144 = smul.addr %s143, 4
      %s145 = scalar_lea.vmem %s0, %s144
      %p146 = scmp.lt.s32.totalorder %s13, 1
      %s147 = scalar_select %p146, %s13, 1
      %s148 = scalar_lea.vmem %s1, %s147
      %p149 = scmp.lt.s32.totalorder %s13, 1
      %s150 = scalar_select %p149, %s13, 1
      %s151 = smul.addr %s150, 4
      %s152 = scalar_lea.vmem %s2, %s151
      %v154 = vld [vmem:[%s148] sm:$0x1]
      %v155 = vld [vmem:[%s145] sm:$0xf]
      %v157 = vunpack.c.l.b16 %v155
      %v158 = vpack.c.b16 %v157, %v157
      %159 = vrot.lane.b32.xlu0 %v158, 96
      %v160 = vpop.permute.xlu0 %159
      %vm161 = vcmask 64512
      %v163 = vsel %vm161, %v155, 0
      %v166 = vsel %vm161, %v160, 0
      %168 = vmatprep.subr.bf16.mxu0 0
      %169 = vmatpush1.bf16.xpose.msra.mxu0 %v166
      %170 = vmatprep.subr.bf16.mxu0 0
      %171 = vmatpush1.bf16.xpose.msra.mxu0 0
      %172 = vmatprep.subr.bf16.mxu0 0
      %173 = vmatpush1.bf16.xpose.msra.mxu0 0
      %174 = vmatprep.subr.bf16.mxu0 0
      %175 = vmatpush1.bf16.xpose.msra.mxu0 0
      %176 = vmatprep.subr.bf16.mxu0 0
      %177 = vmatpush1.bf16.xpose.msra.mxu0 0
      %178 = vmatprep.subr.bf16.mxu0 0
      %179 = vmatpush1.bf16.xpose.msra.mxu0 0
      %180 = vmatprep.subr.bf16.mxu0 0
      %181 = vmatpush1.bf16.xpose.msra.mxu0 0
      %182 = vmatprep.subr.bf16.mxu0 0
      %183 = vmatpush1.bf16.xpose.msra.mxu0 0
      %184 = vmatprep.subr.bf16.mxu0 0
      %185 = vmatpush1.bf16.xpose.msra.mxu0 0
      %186 = vmatprep.subr.bf16.mxu0 0
      %187 = vmatpush1.bf16.xpose.msra.mxu0 0
      %188 = vmatprep.subr.bf16.mxu0 0
      %189 = vmatpush1.bf16.xpose.msra.mxu0 0
      %190 = vmatprep.subr.bf16.mxu0 0
      %191 = vmatpush1.bf16.xpose.msra.mxu0 0
      %192 = vmatprep.subr.bf16.mxu0 0
      %193 = vmatpush1.bf16.xpose.msra.mxu0 0
      %194 = vmatprep.subr.bf16.mxu0 0
      %195 = vmatpush1.bf16.xpose.msra.mxu0 0
      %196 = vmatprep.subr.bf16.mxu0 0
      %197 = vmatpush1.bf16.xpose.msra.mxu0 0
      %198 = vmatprep.subr.bf16.mxu0 0
      %199 = vmatpush1.bf16.xpose.msra.mxu0 0
      %200 = vmatprep.mubr.bf16.mxu0 0
      %201 = vmatmul.mubr.bf16.gmra.mrb[0].mxu0 %v163
      %v202 = vpop.f32.mrb[0].mxu0
      %v203 = vadd.f32 0.0, %v202
      %v204 = vpop.f32.mrb[0].mxu0
      %v205 = vpop.f32.mrb[0].mxu0
      %v206 = vpop.f32.mrb[0].mxu0
      %207 = vdwg.mxu0
      %v208 = vmul.f32 %v203, 0.35355338
      %v210 = vlaneseq
      %v211 = vshrl.u32 %v210, 7
      %v212 = vsub.s32 0, %v211
      %v213 = vrot.slane %v154, %v212
      %v215 = vadd.f32 %v208, %v213
      %v216 = vsel %vm161, %v215, -inf
      %217 = vmax.xlane.f32.xlu0 %v216
      %v218 = vpop.xlane.xlu0 %217
      %v219 = vsub.f32 %v215, %v218
      %v220 = vmul.f32 %v219, 1.442695
      %v221 = vpow.pop %v220
      %v222 = vsel %vm161, %v221, 0.0
      %223 = vadd.xlane.f32.xlu0 %v222
      %v224 = vpop.xlane.xlu0 %223
      %v225 = vrcp.pop %v224
      %v226 = vmul.f32 1.0, %v225
      %v227 = vmul.f32 %v221, %v226
      %v228 = vpack.c.bf16 %v227, %v227
      %229 = vrot.lane.b32.xlu0 %v158, 64
      %v230 = vpop.permute.xlu0 %229
      %v232 = vsel %vm161, %v228, 0
      %vm234 = vcmask 1043456
      %v236 = vsel %vm234, %v230, 0
      %238 = vmatprep.subr.bf16.mxu0 0
      %239 = vmatpush1.bf16.msra.mxu0 %v236
      %240 = vmatprep.subr.bf16.mxu0 0
      %241 = vmatpush1.bf16.msra.mxu0 0
      %242 = vmatprep.subr.bf16.mxu0 0
      %243 = vmatpush1.bf16.msra.mxu0 0
      %244 = vmatprep.subr.bf16.mxu0 0
      %245 = vmatpush1.bf16.msra.mxu0 0
      %246 = vmatprep.subr.bf16.mxu0 0
      %247 = vmatpush1.bf16.msra.mxu0 0
      %248 = vmatprep.subr.bf16.mxu0 0
      %249 = vmatpush1.bf16.msra.mxu0 0
      %250 = vmatprep.subr.bf16.mxu0 0
      %251 = vmatpush1.bf16.msra.mxu0 0
      %252 = vmatprep.subr.bf16.mxu0 0
      %253 = vmatpush1.bf16.msra.mxu0 0
      %254 = vmatprep.subr.bf16.mxu0 0
      %255 = vmatpush1.bf16.msra.mxu0 0
      %256 = vmatprep.subr.bf16.mxu0 0
      %257 = vmatpush1.bf16.msra.mxu0 0
      %258 = vmatprep.subr.bf16.mxu0 0
      %259 = vmatpush1.bf16.msra.mxu0 0
      %260 = vmatprep.subr.bf16.mxu0 0
      %261 = vmatpush1.bf16.msra.mxu0 0
      %262 = vmatprep.subr.bf16.mxu0 0
      %263 = vmatpush1.bf16.msra.mxu0 0
      %264 = vmatprep.subr.bf16.mxu0 0
      %265 = vmatpush1.bf16.msra.mxu0 0
      %266 = vmatprep.subr.bf16.mxu0 0
      %267 = vmatpush1.bf16.msra.mxu0 0
      %268 = vmatprep.subr.bf16.mxu0 0
      %269 = vmatpush1.bf16.msra.mxu0 0
      %270 = vmatprep.mubr.bf16.mxu0 0
      %271 = vmatmul.mubr.bf16.gmra.mrb[0].mxu0 %v232
      %v272 = vpop.f32.mrb[0].mxu0
      %v273 = vadd.f32 0.0, %v272
      %v274 = vpop.f32.mrb[0].mxu0
      %v275 = vpop.f32.mrb[0].mxu0
      %v276 = vpop.f32.mrb[0].mxu0
      %277 = vdwg.mxu0
      %v278 = vpack.c.bf16 %v273, %v273
      %vm279 = vcmask 60416
      %280 = vst.msk [vmem:[%s152] sm:$0xf] %vm279, %v278
      %v281 = vld [vmem:[%s145] sm:$0xf]
      %v283 = vunpack.c.l.b16 %v281
      %v284 = vpack.c.b16 %v283, %v283
      %285 = vrot.lane.b32.xlu0 %v284, 120
      %v286 = vpop.permute.xlu0 %285
      %287 = vrot.lane.b32.xlu0 %v284, 88
      %v288 = vpop.permute.xlu0 %287
      %v290 = vsel %vm161, %v286, 0
      %v293 = vsel %vm161, %v288, 0
      %295 = vmatprep.subr.bf16.mxu0 0
      %296 = vmatpush1.bf16.xpose.msra.mxu0 %v293
      %297 = vmatprep.subr.bf16.mxu0 0
      %298 = vmatpush1.bf16.xpose.msra.mxu0 0
      %299 = vmatprep.subr.bf16.mxu0 0
      %300 = vmatpush1.bf16.xpose.msra.mxu0 0
      %301 = vmatprep.subr.bf16.mxu0 0
      %302 = vmatpush1.bf16.xpose.msra.mxu0 0
      %303 = vmatprep.subr.bf16.mxu0 0
      %304 = vmatpush1.bf16.xpose.msra.mxu0 0
      %305 = vmatprep.subr.bf16.mxu0 0
      %306 = vmatpush1.bf16.xpose.msra.mxu0 0
      %307 = vmatprep.subr.bf16.mxu0 0
      %308 = vmatpush1.bf16.xpose.msra.mxu0 0
      %309 = vmatprep.subr.bf16.mxu0 0
      %310 = vmatpush1.bf16.xpose.msra.mxu0 0
      %311 = vmatprep.subr.bf16.mxu0 0
      %312 = vmatpush1.bf16.xpose.msra.mxu0 0
      %313 = vmatprep.subr.bf16.mxu0 0
      %314 = vmatpush1.bf16.xpose.msra.mxu0 0
      %315 = vmatprep.subr.bf16.mxu0 0
      %316 = vmatpush1.bf16.xpose.msra.mxu0 0
      %317 = vmatprep.subr.bf16.mxu0 0
      %318 = vmatpush1.bf16.xpose.msra.mxu0 0
      %319 = vmatprep.subr.bf16.mxu0 0
      %320 = vmatpush1.bf16.xpose.msra.mxu0 0
      %321 = vmatprep.subr.bf16.mxu0 0
      %322 = vmatpush1.bf16.xpose.msra.mxu0 0
      %323 = vmatprep.subr.bf16.mxu0 0
      %324 = vmatpush1.bf16.xpose.msra.mxu0 0
      %325 = vmatprep.subr.bf16.mxu0 0
      %326 = vmatpush1.bf16.xpose.msra.mxu0 0
      %327 = vmatprep.mubr.bf16.mxu0 0
      %328 = vmatmul.mubr.bf16.gmra.mrb[0].mxu0 %v290
      %v329 = vpop.f32.mrb[0].mxu0
      %v330 = vadd.f32 0.0, %v329
      %v331 = vpop.f32.mrb[0].mxu0
      %v332 = vpop.f32.mrb[0].mxu0
      %v333 = vpop.f32.mrb[0].mxu0
      %334 = vdwg.mxu0
      %v335 = vmul.f32 %v330, 0.35355338
      %v336 = vadd.f32 %v335, %v213
      %v337 = vsel %vm161, %v336, -inf
      %338 = vmax.xlane.f32.xlu0 %v337
      %v339 = vpop.xlane.xlu0 %338
      %v340 = vsub.f32 %v336, %v339
      %v341 = vmul.f32 %v340, 1.442695
      %v342 = vpow.pop %v341
      %v343 = vsel %vm161, %v342, 0.0
      %344 = vadd.xlane.f32.xlu0 %v343
      %v345 = vpop.xlane.xlu0 %344
      %v346 = vrcp.pop %v345
      %v347 = vmul.f32 1.0, %v346
      %v348 = vmul.f32 %v342, %v347
      %v349 = vpack.c.bf16 %v348, %v348
      %350 = vrot.lane.b32.xlu0 %v284, 56
      %v351 = vpop.permute.xlu0 %350
      %v353 = vsel %vm161, %v349, 0
      %v356 = vsel %vm234, %v351, 0
      %358 = vmatprep.subr.bf16.mxu0 0
      %359 = vmatpush1.bf16.msra.mxu0 %v356
      %360 = vmatprep.subr.bf16.mxu0 0
      %361 = vmatpush1.bf16.msra.mxu0 0
      %362 = vmatprep.subr.bf16.mxu0 0
      %363 = vmatpush1.bf16.msra.mxu0 0
      %364 = vmatprep.subr.bf16.mxu0 0
      %365 = vmatpush1.bf16.msra.mxu0 0
      %366 = vmatprep.subr.bf16.mxu0 0
      %367 = vmatpush1.bf16.msra.mxu0 0
      %368 = vmatprep.subr.bf16.mxu0 0
      %369 = vmatpush1.bf16.msra.mxu0 0
      %370 = vmatprep.subr.bf16.mxu0 0
      %371 = vmatpush1.bf16.msra.mxu0 0
      %372 = vmatprep.subr.bf16.mxu0 0
      %373 = vmatpush1.bf16.msra.mxu0 0
      %374 = vmatprep.subr.bf16.mxu0 0
      %375 = vmatpush1.bf16.msra.mxu0 0
      %376 = vmatprep.subr.bf16.mxu0 0
      %377 = vmatpush1.bf16.msra.mxu0 0
      %378 = vmatprep.subr.bf16.mxu0 0
      %379 = vmatpush1.bf16.msra.mxu0 0
      %380 = vmatprep.subr.bf16.mxu0 0
      %381 = vmatpush1.bf16.msra.mxu0 0
      %382 = vmatprep.subr.bf16.mxu0 0
      %383 = vmatpush1.bf16.msra.mxu0 0
      %384 = vmatprep.subr.bf16.mxu0 0
      %385 = vmatpush1.bf16.msra.mxu0 0
      %386 = vmatprep.subr.bf16.mxu0 0
      %387 = vmatpush1.bf16.msra.mxu0 0
      %388 = vmatprep.subr.bf16.mxu0 0
      %389 = vmatpush1.bf16.msra.mxu0 0
      %390 = vmatprep.mubr.bf16.mxu0 0
      %391 = vmatmul.mubr.bf16.gmra.mrb[0].mxu0 %v353
      %v392 = vpop.f32.mrb[0].mxu0
      %v393 = vadd.f32 0.0, %v392
      %v394 = vpop.f32.mrb[0].mxu0
      %v395 = vpop.f32.mrb[0].mxu0
      %v396 = vpop.f32.mrb[0].mxu0
      %397 = vdwg.mxu0
      %v398 = vpack.c.bf16 %v393, %v393
      %v400 = vunpack.c.l.b16 %v398
      %v401 = vpack.c.b16 %v400, %v400
      %402 = vrot.lane.b32.xlu0 %v401, 8
      %v403 = vpop.permute.xlu0 %402
      %vm405 = vcmask 126016
      %406 = vst.msk [vmem:[%s152] sm:$0xf] %vm405, %v403
      %v407 = vld [vmem:[%s145] sm:$0xf]
      %v409 = vunpack.c.l.b16 %v407
      %v410 = vpack.c.b16 %v409, %v409
      %411 = vrot.lane.b32.xlu0 %v410, 112
      %v412 = vpop.permute.xlu0 %411
      %413 = vrot.lane.b32.xlu0 %v410, 80
      %v414 = vpop.permute.xlu0 %413
      %v416 = vsel %vm161, %v412, 0
      %v419 = vsel %vm161, %v414, 0
      %421 = vmatprep.subr.bf16.mxu0 0
      %422 = vmatpush1.bf16.xpose.msra.mxu0 %v419
      %423 = vmatprep.subr.bf16.mxu0 0
      %424 = vmatpush1.bf16.xpose.msra.mxu0 0
      %425 = vmatprep.subr.bf16.mxu0 0
      %426 = vmatpush1.bf16.xpose.msra.mxu0 0
      %427 = vmatprep.subr.bf16.mxu0 0
      %428 = vmatpush1.bf16.xpose.msra.mxu0 0
      %429 = vmatprep.subr.bf16.mxu0 0
      %430 = vmatpush1.bf16.xpose.msra.mxu0 0
      %431 = vmatprep.subr.bf16.mxu0 0
      %432 = vmatpush1.bf16.xpose.msra.mxu0 0
      %433 = vmatprep.subr.bf16.mxu0 0
      %434 = vmatpush1.bf16.xpose.msra.mxu0 0
      %435 = vmatprep.subr.bf16.mxu0 0
      %436 = vmatpush1.bf16.xpose.msra.mxu0 0
      %437 = vmatprep.subr.bf16.mxu0 0
      %438 = vmatpush1.bf16.xpose.msra.mxu0 0
      %439 = vmatprep.subr.bf16.mxu0 0
      %440 = vmatpush1.bf16.xpose.msra.mxu0 0
      %441 = vmatprep.subr.bf16.mxu0 0
      %442 = vmatpush1.bf16.xpose.msra.mxu0 0
      %443 = vmatprep.subr.bf16.mxu0 0
      %444 = vmatpush1.bf16.xpose.msra.mxu0 0
      %445 = vmatprep.subr.bf16.mxu0 0
      %446 = vmatpush1.bf16.xpose.msra.mxu0 0
      %447 = vmatprep.subr.bf16.mxu0 0
      %448 = vmatpush1.bf16.xpose.msra.mxu0 0
      %449 = vmatprep.subr.bf16.mxu0 0
      %450 = vmatpush1.bf16.xpose.msra.mxu0 0
      %451 = vmatprep.subr.bf16.mxu0 0
      %452 = vmatpush1.bf16.xpose.msra.mxu0 0
      %453 = vmatprep.mubr.bf16.mxu0 0
      %454 = vmatmul.mubr.bf16.gmra.mrb[0].mxu0 %v416
      %v455 = vpop.f32.mrb[0].mxu0
      %v456 = vadd.f32 0.0, %v455
      %v457 = vpop.f32.mrb[0].mxu0
      %v458 = vpop.f32.mrb[0].mxu0
      %v459 = vpop.f32.mrb[0].mxu0
      %460 = vdwg.mxu0
      %v461 = vmul.f32 %v456, 0.35355338
      %v462 = vadd.f32 %v461, %v213
      %v463 = vsel %vm161, %v462, -inf
      %464 = vmax.xlane.f32.xlu0 %v463
      %v465 = vpop.xlane.xlu0 %464
      %v466 = vsub.f32 %v462, %v465
      %v467 = vmul.f32 %v466, 1.442695
      %v468 = vpow.pop %v467
      %v469 = vsel %vm161, %v468, 0.0
      %470 = vadd.xlane.f32.xlu0 %v469
      %v471 = vpop.xlane.xlu0 %470
      %v472 = vrcp.pop %v471
      %v473 = vmul.f32 1.0, %v472
      %v474 = vmul.f32 %v468, %v473
      %v475 = vpack.c.bf16 %v474, %v474
      %476 = vrot.lane.b32.xlu0 %v410, 48
      %v477 = vpop.permute.xlu0 %476
      %v479 = vsel %vm161, %v475, 0
      %v482 = vsel %vm234, %v477, 0
      %484 = vmatprep.subr.bf16.mxu0 0
      %485 = vmatpush1.bf16.msra.mxu0 %v482
      %486 = vmatprep.subr.bf16.mxu0 0
      %487 = vmatpush1.bf16.msra.mxu0 0
      %488 = vmatprep.subr.bf16.mxu0 0
      %489 = vmatpush1.bf16.msra.mxu0 0
      %490 = vmatprep.subr.bf16.mxu0 0
      %491 = vmatpush1.bf16.msra.mxu0 0
      %492 = vmatprep.subr.bf16.mxu0 0
      %493 = vmatpush1.bf16.msra.mxu0 0
      %494 = vmatprep.subr.bf16.mxu0 0
      %495 = vmatpush1.bf16.msra.mxu0 0
      %496 = vmatprep.subr.bf16.mxu0 0
      %497 = vmatpush1.bf16.msra.mxu0 0
      %498 = vmatprep.subr.bf16.mxu0 0
      %499 = vmatpush1.bf16.msra.mxu0 0
      %500 = vmatprep.subr.bf16.mxu0 0
      %501 = vmatpush1.bf16.msra.mxu0 0
      %502 = vmatprep.subr.bf16.mxu0 0
      %503 = vmatpush1.bf16.msra.mxu0 0
      %504 = vmatprep.subr.bf16.mxu0 0
      %505 = vmatpush1.bf16.msra.mxu0 0
      %506 = vmatprep.subr.bf16.mxu0 0
      %507 = vmatpush1.bf16.msra.mxu0 0
      %508 = vmatprep.subr.bf16.mxu0 0
      %509 = vmatpush1.bf16.msra.mxu0 0
      %510 = vmatprep.subr.bf16.mxu0 0
      %511 = vmatpush1.bf16.msra.mxu0 0
      %512 = vmatprep.subr.bf16.mxu0 0
      %513 = vmatpush1.bf16.msra.mxu0 0
      %514 = vmatprep.subr.bf16.mxu0 0
      %515 = vmatpush1.bf16.msra.mxu0 0
      %516 = vmatprep.mubr.bf16.mxu0 0
      %517 = vmatmul.mubr.bf16.gmra.mrb[0].mxu0 %v479
      %v518 = vpop.f32.mrb[0].mxu0
      %v519 = vadd.f32 0.0, %v518
      %v520 = vpop.f32.mrb[0].mxu0
      %v521 = vpop.f32.mrb[0].mxu0
      %v522 = vpop.f32.mrb[0].mxu0
      %523 = vdwg.mxu0
      %v524 = vpack.c.bf16 %v519, %v519
      %v526 = vunpack.c.l.b16 %v524
      %v527 = vpack.c.b16 %v526, %v526
      %528 = vrot.lane.b32.xlu0 %v527, 16
      %v529 = vpop.permute.xlu0 %528
      %vm531 = vcmask 191616
      %532 = vst.msk [vmem:[%s152] sm:$0xf] %vm531, %v529
      %v533 = vld [vmem:[%s145] sm:$0xf]
      %v535 = vunpack.c.l.b16 %v533
      %v536 = vpack.c.b16 %v535, %v535
      %537 = vrot.lane.b32.xlu0 %v536, 104
      %v538 = vpop.permute.xlu0 %537
      %539 = vrot.lane.b32.xlu0 %v536, 72
      %v540 = vpop.permute.xlu0 %539
      %v542 = vsel %vm161, %v538, 0
      %v545 = vsel %vm161, %v540, 0
      %547 = vmatprep.subr.bf16.mxu0 0
      %548 = vmatpush1.bf16.xpose.msra.mxu0 %v545
      %549 = vmatprep.subr.bf16.mxu0 0
      %550 = vmatpush1.bf16.xpose.msra.mxu0 0
      %551 = vmatprep.subr.bf16.mxu0 0
      %552 = vmatpush1.bf16.xpose.msra.mxu0 0
      %553 = vmatprep.subr.bf16.mxu0 0
      %554 = vmatpush1.bf16.xpose.msra.mxu0 0
      %555 = vmatprep.subr.bf16.mxu0 0
      %556 = vmatpush1.bf16.xpose.msra.mxu0 0
      %557 = vmatprep.subr.bf16.mxu0 0
      %558 = vmatpush1.bf16.xpose.msra.mxu0 0
      %559 = vmatprep.subr.bf16.mxu0 0
      %560 = vmatpush1.bf16.xpose.msra.mxu0 0
      %561 = vmatprep.subr.bf16.mxu0 0
      %562 = vmatpush1.bf16.xpose.msra.mxu0 0
      %563 = vmatprep.subr.bf16.mxu0 0
      %564 = vmatpush1.bf16.xpose.msra.mxu0 0
      %565 = vmatprep.subr.bf16.mxu0 0
      %566 = vmatpush1.bf16.xpose.msra.mxu0 0
      %567 = vmatprep.subr.bf16.mxu0 0
      %568 = vmatpush1.bf16.xpose.msra.mxu0 0
      %569 = vmatprep.subr.bf16.mxu0 0
      %570 = vmatpush1.bf16.xpose.msra.mxu0 0
      %571 = vmatprep.subr.bf16.mxu0 0
      %572 = vmatpush1.bf16.xpose.msra.mxu0 0
      %573 = vmatprep.subr.bf16.mxu0 0
      %574 = vmatpush1.bf16.xpose.msra.mxu0 0
      %575 = vmatprep.subr.bf16.mxu0 0
      %576 = vmatpush1.bf16.xpose.msra.mxu0 0
      %577 = vmatprep.subr.bf16.mxu0 0
      %578 = vmatpush1.bf16.xpose.msra.mxu0 0
      %579 = vmatprep.mubr.bf16.mxu0 0
      %580 = vmatmul.mubr.bf16.gmra.mrb[0].mxu0 %v542
      %v581 = vpop.f32.mrb[0].mxu0
      %v582 = vadd.f32 0.0, %v581
      %v583 = vpop.f32.mrb[0].mxu0
      %v584 = vpop.f32.mrb[0].mxu0
      %v585 = vpop.f32.mrb[0].mxu0
      %586 = vdwg.mxu0
      %v587 = vmul.f32 %v582, 0.35355338
      %v588 = vadd.f32 %v587, %v213
      %v589 = vsel %vm161, %v588, -inf
      %590 = vmax.xlane.f32.xlu0 %v589
      %v591 = vpop.xlane.xlu0 %590
      %v592 = vsub.f32 %v588, %v591
      %v593 = vmul.f32 %v592, 1.442695
      %v594 = vpow.pop %v593
      %v595 = vsel %vm161, %v594, 0.0
      %596 = vadd.xlane.f32.xlu0 %v595
      %v597 = vpop.xlane.xlu0 %596
      %v598 = vrcp.pop %v597
      %v599 = vmul.f32 1.0, %v598
      %v600 = vmul.f32 %v594, %v599
      %v601 = vpack.c.bf16 %v600, %v600
      %602 = vrot.lane.b32.xlu0 %v536, 40
      %v603 = vpop.permute.xlu0 %602
      %v605 = vsel %vm161, %v601, 0
      %v608 = vsel %vm234, %v603, 0
      %610 = vmatprep.subr.bf16.mxu0 0
      %611 = vmatpush1.bf16.msra.mxu0 %v608
      %612 = vmatprep.subr.bf16.mxu0 0
      %613 = vmatpush1.bf16.msra.mxu0 0
      %614 = vmatprep.subr.bf16.mxu0 0
      %615 = vmatpush1.bf16.msra.mxu0 0
      %616 = vmatprep.subr.bf16.mxu0 0
      %617 = vmatpush1.bf16.msra.mxu0 0
      %618 = vmatprep.subr.bf16.mxu0 0
      %619 = vmatpush1.bf16.msra.mxu0 0
      %620 = vmatprep.subr.bf16.mxu0 0
      %621 = vmatpush1.bf16.msra.mxu0 0
      %622 = vmatprep.subr.bf16.mxu0 0
      %623 = vmatpush1.bf16.msra.mxu0 0
      %624 = vmatprep.subr.bf16.mxu0 0
      %625 = vmatpush1.bf16.msra.mxu0 0
      %626 = vmatprep.subr.bf16.mxu0 0
      %627 = vmatpush1.bf16.msra.mxu0 0
      %628 = vmatprep.subr.bf16.mxu0 0
      %629 = vmatpush1.bf16.msra.mxu0 0
      %630 = vmatprep.subr.bf16.mxu0 0
      %631 = vmatpush1.bf16.msra.mxu0 0
      %632 = vmatprep.subr.bf16.mxu0 0
      %633 = vmatpush1.bf16.msra.mxu0 0
      %634 = vmatprep.subr.bf16.mxu0 0
      %635 = vmatpush1.bf16.msra.mxu0 0
      %636 = vmatprep.subr.bf16.mxu0 0
      %637 = vmatpush1.bf16.msra.mxu0 0
      %638 = vmatprep.subr.bf16.mxu0 0
      %639 = vmatpush1.bf16.msra.mxu0 0
      %640 = vmatprep.subr.bf16.mxu0 0
      %641 = vmatpush1.bf16.msra.mxu0 0
      %642 = vmatprep.mubr.bf16.mxu0 0
      %643 = vmatmul.mubr.bf16.gmra.mrb[0].mxu0 %v605
      %v644 = vpop.f32.mrb[0].mxu0
      %v645 = vadd.f32 0.0, %v644
      %v646 = vpop.f32.mrb[0].mxu0
      %v647 = vpop.f32.mrb[0].mxu0
      %v648 = vpop.f32.mrb[0].mxu0
      %649 = vdwg.mxu0
      %v650 = vpack.c.bf16 %v645, %v645
      %v652 = vunpack.c.l.b16 %v650
      %v653 = vpack.c.b16 %v652, %v652
      %654 = vrot.lane.b32.xlu0 %v653, 24
      %v655 = vpop.permute.xlu0 %654
      %vm657 = vcmask 257216
      %658 = vst.msk [vmem:[%s152] sm:$0xf] %vm657, %v655
      %p659 = scmp.lt.s32.totalorder %s13, 1
      %s660 = scalar_select %p659, %s13, 1
      %s661 = smul.addr %s660, 4
      %s662 = scalar_lea.vmem %s2, %s661
      // Predicated region
      $region29: #{base_encoder_forward.16} parent=27 // pred_check
        %p663 = pneg %p83
      $region30: #{base_encoder_forward.16} parent=27 // pred_check_branch
        %665 = sbr.rel (%p663) target = $region32
      $region31: #{base_encoder_forward.16} parent=27 // pred_region
        _
      $region32: #{base_encoder_forward.16} parent=27 // pred_fallthru
        _
    $region28: #{base_encoder_forward.16} parent=5 // pred_fallthru
      _
    %p666 = scmp.le.s32.totalorder 2, %s8
    // Predicated region
    $region33: #{base_encoder_forward.16} parent=5 // pred_check
      %p667 = pneg %p666
    $region34: #{base_encoder_forward.16} parent=5 // pred_check_branch
      %669 = sbr.rel (%p667) target = $region36
    $region35: #{base_encoder_forward.16} parent=5 // pred_region
      %s670 = ssub.s32 %s8, 2
      // Predicated region
      $region37: #{base_encoder_forward.16} parent=35 // pred_check
        %p671 = pneg %p89
      $region38: #{base_encoder_forward.16} parent=35 // pred_check_branch
        %673 = sbr.rel (%p671) target = $region40
      $region39: #{base_encoder_forward.16} parent=35 // pred_region
        %p674 = scmp.lt.s32.totalorder %s14, 1
        %s675 = scalar_select %p674, %s14, 1
        %s676 = smul.addr %s675, 4
        %s677 = scalar_lea.vmem %s2, %s676
      $region40: #{base_encoder_forward.16} parent=35 // pred_fallthru
        _
    $region36: #{base_encoder_forward.16} parent=5 // pred_fallthru
      _
  $region6: #{base_encoder_forward.16} parent=0 // loop_footer
    %s12 = sadd.s32 1, %s8
  $region7: #{base_encoder_forward.16} parent=0 // loop_footer_branch
    %7 = sbr.rel target = $region3
  $region8: #{base_encoder_forward.16} parent=0 // loop_exit
    _

// kernel: base_encoder_forward.23
$region0: #{base_encoder_forward.23}
  #allocation0 [shape = 'u32[]', space=smem, size = 0x4, offset = 0x4, fixed_abs, tag = 'smem constant byte address 0x4 - core index']
  #allocation1 [shape = 'u32[144,128]{1,0:T(1,128)}', space=vmem, size = 0x12000, scoped, tag = 'internal scratch']
  %s0 = inlined_call_operand.vmem [shape: bf16[16,32], index: 0, kind: input, shape index: {}]
  %s1 = inlined_call_operand.vmem [shape: f32[1,32], index: 1, kind: input, shape index: {}]
  %s2 = inlined_call_operand.vmem [shape: f32[1,32], index: 2, kind: input, shape index: {}]
  %s3 = inlined_call_operand.vmem [shape: f32[16,32], index: 3, kind: output, shape index: {}]
  %s4 = sld [smem:[#allocation0]]
  $region22: #{base_encoder_forward.23} parent=0
    _
  %s6 = ssub.s32 1, %s4
  %s7 = scalar_select 0, %s6, %s4
  // Predicated region
  $region2: #{base_encoder_forward.23} parent=0 // pred_check
    _
  $region3: #{base_encoder_forward.23} parent=0 // pred_check_branch
    %9 = sbr.rel (0) target = $region5
  $region4: #{base_encoder_forward.23} parent=0 // pred_region
    _
  $region5: #{base_encoder_forward.23} parent=0 // pred_fallthru
    _
  // Predicated region
  $region6: #{base_encoder_forward.23} parent=0 // pred_check
    _
  $region7: #{base_encoder_forward.23} parent=0 // pred_check_branch
    %11 = sbr.rel (0) target = $region9
  $region8: #{base_encoder_forward.23} parent=0 // pred_region
    _
  $region9: #{base_encoder_forward.23} parent=0 // pred_fallthru
    _
  // Predicated region
  $region10: #{base_encoder_forward.23} parent=0 // pred_check
    _
  $region11: #{base_encoder_forward.23} parent=0 // pred_check_branch
    %13 = sbr.rel (0) target = $region13
  $region12: #{base_encoder_forward.23} parent=0 // pred_region
    _
  $region13: #{base_encoder_forward.23} parent=0 // pred_fallthru
    _
  %v14 = vld [vmem:[%s0] sm:$0xf]
  %v15 = vld [vmem:[%s0 + $0x4] sm:$0xf]
  %v16 = vunpack.c.l.bf16 %v14
  %v17 = vunpack.c.l.bf16 %v15
  %vm18 = vcmask 261120
  %v19 = vsel %vm18, %v16, 0.0
  %20 = vadd.xlane.f32.xlu0 %v19
  %v21 = vpop.xlane.xlu0 %20
  %v22 = vsel %vm18, %v17, 0.0
  %23 = vadd.xlane.f32.xlu0 %v22
  %v24 = vpop.xlane.xlu0 %23
  %v25 = vrcp.pop 32.0
  %v26 = vmul.f32 %v21, %v25
  %v27 = vmul.f32 %v24, %v25
  %v28 = vsub.f32 %v16, %v26
  %v29 = vsub.f32 %v17, %v27
  %v30 = vmul.f32 %v28, %v28
  %v31 = vmul.f32 %v29, %v29
  %v32 = vsel %vm18, %v30, 0.0
  %33 = vadd.xlane.f32.xlu0 %v32
  %v34 = vpop.xlane.xlu0 %33
  %v35 = vsel %vm18, %v31, 0.0
  %36 = vadd.xlane.f32.xlu0 %v35
  %v37 = vpop.xlane.xlu0 %36
  %v38 = vmul.f32 %v34, %v25
  %v39 = vmul.f32 %v37, %v25
  %v40 = vadd.f32 %v38, 1e-05
  %v41 = vadd.f32 %v39, 1e-05
  %v42 = vrsqrt.pop %v40
  %v43 = vrsqrt.pop %v41
  %v44 = vmul.f32 %v28, %v42
  %v45 = vmul.f32 %v29, %v43
  %v46 = vld [vmem:[%s1] sm:$0x1]
  %v48 = vlaneseq
  %v49 = vshrl.u32 %v48, 7
  %v50 = vsub.s32 0, %v49
  %v51 = vrot.slane %v46, %v50
  %v53 = vmul.f32 %v44, %v51
  %v54 = vmul.f32 %v45, %v51
  %v55 = vld [vmem:[%s2] sm:$0x1]
  %v57 = vlaneseq
  %v58 = vshrl.u32 %v57, 7
  %v59 = vsub.s32 0, %v58
  %v60 = vrot.slane %v55, %v59
  %v62 = vadd.f32 %v53, %v60
  %v63 = vadd.f32 %v54, %v60
  %64 = vst.msk [vmem:[%s3] sm:$0xff] %vm18, %v62
  %65 = vst.msk [vmem:[%s3 + $0x8] sm:$0xff] %vm18, %v63
  // Predicated region
  $region14: #{base_encoder_forward.23} parent=0 // pred_check
    _
  $region15: #{base_encoder_forward.23} parent=0 // pred_check_branch
    %67 = sbr.rel (0) target = $region17
  $region16: #{base_encoder_forward.23} parent=0 // pred_region
    _
  $region17: #{base_encoder_forward.23} parent=0 // pred_fallthru
    _
  // Predicated region
  $region18: #{base_encoder_forward.23} parent=0 // pred_check
    _
  $region19: #{base_encoder_forward.23} parent=0 // pred_check_branch
    %69 = sbr.rel (0) target = $region21
  $region20: #{base_encoder_forward.23} parent=0 // pred_region
    _
  $region21: #{base_encoder_forward.23} parent=0 // pred_fallthru
    _

// kernel: base_encoder_forward.18
$region0: #{base_encoder_forward.18}
  #allocation0 [shape = 'u32[]', space=smem, size = 0x4, offset = 0x4, fixed_abs, tag = 'smem constant byte address 0x4 - core index']
  #allocation1 [shape = 'u32[144,128]{1,0:T(1,128)}', space=vmem, size = 0x12000, scoped, tag = 'internal scratch']
  %s0 = inlined_call_operand.vmem [shape: bf16[16,32], index: 0, kind: input, shape index: {}]
  %s1 = inlined_call_operand.vmem [shape: f32[1,32], index: 1, kind: input, shape index: {}]
  %s2 = inlined_call_operand.vmem [shape: f32[1,32], index: 2, kind: input, shape index: {}]
  %s3 = inlined_call_operand.vmem [shape: bf16[32,64], index: 3, kind: input, shape index: {}]
  %s4 = inlined_call_operand.vmem [shape: f32[1,64], index: 4, kind: input, shape index: {}]
  %s5 = inlined_call_operand.vmem [shape: bf16[64,32], index: 5, kind: input, shape index: {}]
  %s6 = inlined_call_operand.vmem [shape: f32[1,32], index: 6, kind: input, shape index: {}]
  %s7 = inlined_call_operand.vmem [shape: bf16[16,32], index: 7, kind: output, shape index: {}]
  %s8 = sld [smem:[#allocation0]]
  $region38: #{base_encoder_forward.18} parent=0
    _
  %s10 = ssub.s32 1, %s8
  %s11 = scalar_select 0, %s10, %s8
  // Predicated region
  $region2: #{base_encoder_forward.18} parent=0 // pred_check
    _
  $region3: #{base_encoder_forward.18} parent=0 // pred_check_branch
    %13 = sbr.rel (0) target = $region5
  $region4: #{base_encoder_forward.18} parent=0 // pred_region
    _
  $region5: #{base_encoder_forward.18} parent=0 // pred_fallthru
    _
  // Predicated region
  $region6: #{base_encoder_forward.18} parent=0 // pred_check
    _
  $region7: #{base_encoder_forward.18} parent=0 // pred_check_branch
    %15 = sbr.rel (0) target = $region9
  $region8: #{base_encoder_forward.18} parent=0 // pred_region
    _
  $region9: #{base_encoder_forward.18} parent=0 // pred_fallthru
    _
  // Predicated region
  $region10: #{base_encoder_forward.18} parent=0 // pred_check
    _
  $region11: #{base_encoder_forward.18} parent=0 // pred_check_branch
    %17 = sbr.rel (0) target = $region13
  $region12: #{base_encoder_forward.18} parent=0 // pred_region
    _
  $region13: #{base_encoder_forward.18} parent=0 // pred_fallthru
    _
  // Predicated region
  $region14: #{base_encoder_forward.18} parent=0 // pred_check
    _
  $region15: #{base_encoder_forward.18} parent=0 // pred_check_branch
    %19 = sbr.rel (0) target = $region17
  $region16: #{base_encoder_forward.18} parent=0 // pred_region
    _
  $region17: #{base_encoder_forward.18} parent=0 // pred_fallthru
    _
  // Predicated region
  $region18: #{base_encoder_forward.18} parent=0 // pred_check
    _
  $region19: #{base_encoder_forward.18} parent=0 // pred_check_branch
    %21 = sbr.rel (0) target = $region21
  $region20: #{base_encoder_forward.18} parent=0 // pred_region
    _
  $region21: #{base_encoder_forward.18} parent=0 // pred_fallthru
    _
  // Predicated region
  $region22: #{base_encoder_forward.18} parent=0 // pred_check
    _
  $region23: #{base_encoder_forward.18} parent=0 // pred_check_branch
    %23 = sbr.rel (0) target = $region25
  $region24: #{base_encoder_forward.18} parent=0 // pred_region
    _
  $region25: #{base_encoder_forward.18} parent=0 // pred_fallthru
    _
  // Predicated region
  $region26: #{base_encoder_forward.18} parent=0 // pred_check
    _
  $region27: #{base_encoder_forward.18} parent=0 // pred_check_branch
    %25 = sbr.rel (0) target = $region29
  $region28: #{base_encoder_forward.18} parent=0 // pred_region
    _
  $region29: #{base_encoder_forward.18} parent=0 // pred_fallthru
    _
  %v27 = vld [vmem:[%s0] sm:$0xf]
  %v28 = vld [vmem:[%s0 + $0x4] sm:$0xf]
  %v29 = vunpack.c.l.bf16 %v27
  %v30 = vunpack.c.l.bf16 %v28
  %vm31 = vcmask 261120
  %v32 = vsel %vm31, %v29, 0.0
  %33 = vadd.xlane.f32.xlu0 %v32
  %v34 = vpop.xlane.xlu0 %33
  %v35 = vsel %vm31, %v30, 0.0
  %36 = vadd.xlane.f32.xlu0 %v35
  %v37 = vpop.xlane.xlu0 %36
  %v38 = vrcp.pop 32.0
  %v39 = vmul.f32 %v34, %v38
  %v40 = vmul.f32 %v37, %v38
  %v41 = vsub.f32 %v29, %v39
  %v42 = vsub.f32 %v30, %v40
  %v43 = vmul.f32 %v41, %v41
  %v44 = vmul.f32 %v42, %v42
  %v45 = vsel %vm31, %v43, 0.0
  %46 = vadd.xlane.f32.xlu0 %v45
  %v47 = vpop.xlane.xlu0 %46
  %v48 = vsel %vm31, %v44, 0.0
  %49 = vadd.xlane.f32.xlu0 %v48
  %v50 = vpop.xlane.xlu0 %49
  %v51 = vmul.f32 %v47, %v38
  %v52 = vmul.f32 %v50, %v38
  %v53 = vadd.f32 %v51, 1e-05
  %v54 = vadd.f32 %v52, 1e-05
  %v55 = vrsqrt.pop %v53
  %v56 = vrsqrt.pop %v54
  %v57 = vmul.f32 %v41, %v55
  %v58 = vmul.f32 %v42, %v56
  %v59 = vld [vmem:[%s1] sm:$0x1]
  %v61 = vlaneseq
  %v62 = vshrl.u32 %v61, 7
  %v63 = vsub.s32 0, %v62
  %v64 = vrot.slane %v59, %v63
  %v66 = vmul.f32 %v57, %v64
  %v67 = vmul.f32 %v58, %v64
  %v68 = vld [vmem:[%s2] sm:$0x1]
  %v70 = vlaneseq
  %v71 = vshrl.u32 %v70, 7
  %v72 = vsub.s32 0, %v71
  %v73 = vrot.slane %v68, %v72
  %v75 = vadd.f32 %v66, %v73
  %v76 = vadd.f32 %v67, %v73
  %v77 = vpack.c.bf16 %v76, %v75
  %v78 = vld [vmem:[%s6] sm:$0x1]
  %v80 = vlaneseq
  %v81 = vshrl.u32 %v80, 7
  %v82 = vsub.s32 0, %v81
  %v83 = vrot.slane %v78, %v82
  %v85 = vadd.f32 %v29, %v83
  %v86 = vadd.f32 %v30, %v83
  %v87 = vld [vmem:[%s3] sm:$0xf]
  %v88 = vld [vmem:[%s3 + $0x4] sm:$0xf]
  %v89 = vld [vmem:[%s3 + $0x8] sm:$0xf]
  %v90 = vld [vmem:[%s3 + $0xc] sm:$0xf]
  %v91 = vld [vmem:[%s4] sm:$0x1]
  %v93 = vlaneseq
  %v94 = vshrl.u32 %v93, 7
  %v95 = vsub.s32 0, %v94
  %v96 = vrot.slane %v91, %v95
  %v102 = vunpack.c.l.b16 %v87
  %v103 = vunpack.c.l.b16 %v88
  %v104 = vunpack.c.l.b16 %v89
  %v105 = vunpack.c.l.b16 %v90
  %v106 = vpack.c.b16 %v103, %v102
  %v107 = vpack.c.b16 %v105, %v104
  %v111 = vsel %vm31, %v77, 0
  %113 = vmatprep.subr.bf16.mxu0 0
  %114 = vmatpush1.bf16.msra.mxu0 %v106
  %115 = vmatprep.subr.bf16.mxu0 0
  %116 = vmatpush1.bf16.msra.mxu0 %v107
  %117 = vmatprep.subr.bf16.mxu0 0
  %118 = vmatpush1.bf16.msra.mxu0 0
  %119 = vmatprep.subr.bf16.mxu0 0
  %120 = vmatpush1.bf16.msra.mxu0 0
  %121 = vmatprep.subr.bf16.mxu0 0
  %122 = vmatpush1.bf16.msra.mxu0 0
  %123 = vmatprep.subr.bf16.mxu0 0
  %124 = vmatpush1.bf16.msra.mxu0 0
  %125 = vmatprep.subr.bf16.mxu0 0
  %126 = vmatpush1.bf16.msra.mxu0 0
  %127 = vmatprep.subr.bf16.mxu0 0
  %128 = vmatpush1.bf16.msra.mxu0 0
  %129 = vmatprep.subr.bf16.mxu0 0
  %130 = vmatpush1.bf16.msra.mxu0 0
  %131 = vmatprep.subr.bf16.mxu0 0
  %132 = vmatpush1.bf16.msra.mxu0 0
  %133 = vmatprep.subr.bf16.mxu0 0
  %134 = vmatpush1.bf16.msra.mxu0 0
  %135 = vmatprep.subr.bf16.mxu0 0
  %136 = vmatpush1.bf16.msra.mxu0 0
  %137 = vmatprep.subr.bf16.mxu0 0
  %138 = vmatpush1.bf16.msra.mxu0 0
  %139 = vmatprep.subr.bf16.mxu0 0
  %140 = vmatpush1.bf16.msra.mxu0 0
  %141 = vmatprep.subr.bf16.mxu0 0
  %142 = vmatpush1.bf16.msra.mxu0 0
  %143 = vmatprep.subr.bf16.mxu0 0
  %144 = vmatpush1.bf16.msra.mxu0 0
  %145 = vmatprep.mubr.bf16.mxu0 0
  %146 = vmatmul.mubr.bf16.gmra.mrb[0].mxu0 %v111
  %v147 = vpop.f32.mrb[0].mxu0
  %v148 = vadd.f32 %v96, %v147
  %v149 = vpop.f32.mrb[0].mxu0
  %v150 = vpop.f32.mrb[0].mxu0
  %v151 = vadd.f32 %v96, %v150
  %v152 = vpop.f32.mrb[0].mxu0
  %153 = vdwg.mxu0
  %v154 = vmax.f32 %v148, 0.0
  %v155 = vmax.f32 %v151, 0.0
  %v156 = vpack.c.bf16 %v155, %v154
  %v157 = vld [vmem:[%s5] sm:$0xf]
  %v158 = vld [vmem:[%s5 + $0x4] sm:$0xf]
  %v159 = vld [vmem:[%s5 + $0x8] sm:$0xf]
  %v160 = vld [vmem:[%s5 + $0xc] sm:$0xf]
  %v161 = vld [vmem:[%s5 + $0x10] sm:$0xf]
  %v162 = vld [vmem:[%s5 + $0x14] sm:$0xf]
  %v163 = vld [vmem:[%s5 + $0x18] sm:$0xf]
  %v164 = vld [vmem:[%s5 + $0x1c] sm:$0xf]
  %v173 = vunpack.c.l.b16 %v157
  %v174 = vunpack.c.l.b16 %v158
  %v175 = vunpack.c.l.b16 %v159
  %v176 = vunpack.c.l.b16 %v160
  %v177 = vunpack.c.l.b16 %v161
  %v178 = vunpack.c.l.b16 %v162
  %v179 = vunpack.c.l.b16 %v163
  %v180 = vunpack.c.l.b16 %v164
  %v181 = vpack.c.b16 %v174, %v173
  %v182 = vpack.c.b16 %v176, %v175
  %v183 = vpack.c.b16 %v178, %v177
  %v184 = vpack.c.b16 %v180, %v179
  %vm189 = vcmask 523264
  %v191 = vsel %vm189, %v156, 0
  %193 = vmatprep.subr.bf16.mxu0 0
  %194 = vmatpush1.bf16.msra.mxu0 %v181
  %195 = vmatprep.subr.bf16.mxu0 0
  %196 = vmatpush1.bf16.msra.mxu0 %v182
  %197 = vmatprep.subr.bf16.mxu0 0
  %198 = vmatpush1.bf16.msra.mxu0 %v183
  %199 = vmatprep.subr.bf16.mxu0 0
  %200 = vmatpush1.bf16.msra.mxu0 %v184
  %201 = vmatprep.subr.bf16.mxu0 0
  %202 = vmatpush1.bf16.msra.mxu0 0
  %203 = vmatprep.subr.bf16.mxu0 0
  %204 = vmatpush1.bf16.msra.mxu0 0
  %205 = vmatprep.subr.bf16.mxu0 0
  %206 = vmatpush1.bf16.msra.mxu0 0
  %207 = vmatprep.subr.bf16.mxu0 0
  %208 = vmatpush1.bf16.msra.mxu0 0
  %209 = vmatprep.subr.bf16.mxu0 0
  %210 = vmatpush1.bf16.msra.mxu0 0
  %211 = vmatprep.subr.bf16.mxu0 0
  %212 = vmatpush1.bf16.msra.mxu0 0
  %213 = vmatprep.subr.bf16.mxu0 0
  %214 = vmatpush1.bf16.msra.mxu0 0
  %215 = vmatprep.subr.bf16.mxu0 0
  %216 = vmatpush1.bf16.msra.mxu0 0
  %217 = vmatprep.subr.bf16.mxu0 0
  %218 = vmatpush1.bf16.msra.mxu0 0
  %219 = vmatprep.subr.bf16.mxu0 0
  %220 = vmatpush1.bf16.msra.mxu0 0
  %221 = vmatprep.subr.bf16.mxu0 0
  %222 = vmatpush1.bf16.msra.mxu0 0
  %223 = vmatprep.subr.bf16.mxu0 0
  %224 = vmatpush1.bf16.msra.mxu0 0
  %225 = vmatprep.mubr.bf16.mxu0 0
  %226 = vmatmul.mubr.bf16.gmra.mrb[0].mxu0 %v191
  %v227 = vpop.f32.mrb[0].mxu0
  %v228 = vadd.f32 0.0, %v227
  %v229 = vpop.f32.mrb[0].mxu0
  %v230 = vpop.f32.mrb[0].mxu0
  %v231 = vadd.f32 0.0, %v230
  %v232 = vpop.f32.mrb[0].mxu0
  %233 = vdwg.mxu0
  %v234 = vadd.f32 %v85, %v228
  %v235 = vadd.f32 %v86, %v231
  %v236 = vpack.c.bf16 %v235, %v234
  %v238 = vunpack.c.l.b16 %v236
  %v239 = vunpack.c.h.b16 %v236
  %v240 = vpack.c.b16 %v238, %v238
  %v241 = vpack.c.b16 %v239, %v239
  %vm244 = vcmask 257024
  %245 = vst.msk [vmem:[%s7] sm:$0xf] %vm244, %v240
  %246 = vst.msk [vmem:[%s7 + $0x4] sm:$0xf] %vm244, %v241
  // Predicated region
  $region30: #{base_encoder_forward.18} parent=0 // pred_check
    _
  $region31: #{base_encoder_forward.18} parent=0 // pred_check_branch
    %248 = sbr.rel (0) target = $region33
  $region32: #{base_encoder_forward.18} parent=0 // pred_region
    _
  $region33: #{base_encoder_forward.18} parent=0 // pred_fallthru
    _
  // Predicated region
  $region34: #{base_encoder_forward.18} parent=0 // pred_check
    _
  $region35: #{base_encoder_forward.18} parent=0 // pred_check_branch
    %250 = sbr.rel (0) target = $region37
  $region36: #{base_encoder_forward.18} parent=0 // pred_region
    _
  $region37: #{base_encoder_forward.18} parent=0 // pred_fallthru
    _

</llo_original>
